<compile_context>
chip_gen: v5e
topology: v5e:2x2
jax: 0.10.0
libtpu: 0.0.40
codegen_flags: <defaults>
</compile_context>

<pallas_src>
import functools

import jax
import jax.numpy as jnp
from jax import lax
from jax.experimental import pallas as pl
from jax.experimental.pallas import tpu as pltpu


MXU_DTYPE = jnp.bfloat16   # MXU operand dtype (f32 accumulate); gate/state math is f32.


def _ceil_to(x, m):
    return ((x + m - 1) // m) * m


def _pick_time_chunk(T, batch, d_in, hidden, cap=32, budget_bytes=24 * 1024 * 1024):
    """Largest Tc <= cap that divides T and whose per-chunk VMEM footprint
    (double-buffered x/out + f32 xproj + f32 hseq scratch) fits the budget."""
    def fits(tc):
        rows = tc * batch
        x_bytes = 2 * rows * d_in * 2           # bf16 input, double-buffered
        out_bytes = 2 * rows * hidden * 2       # bf16 output, double-buffered
        xp_bytes = rows * 4 * hidden * 4        # f32 projection scratch
        hs_bytes = rows * hidden * 4            # f32 hidden-sequence scratch
        return (x_bytes + out_bytes + xp_bytes + hs_bytes) <= budget_bytes

    tc = min(T, cap)
    while tc > 1 and (T % tc != 0 or not fits(tc)):
        tc -= 1
    return tc


# ----------------------------------------------------------------------------
# Shared chunked-recurrence body.
#   x_ref   : (Tc*Bp, D_in) bf16  current time chunk, time-major flattened
#   wih_ref : (D_in, 4Hp)   bf16  pre-transposed W_ih^T, gate order [i,f,o,g]
#   whh_ref : (Hp, 4Hp)     bf16  pre-transposed W_hh^T, gate order [i,f,o,g]
#   b_ref   : (1, 4Hp)      f32   b_ih + b_hh, gate order [i,f,o,g]
#   h_s,c_s : (Bp, Hp)      f32   VMEM scratch, persists across grid steps
#   xp_s    : (Tc*Bp, 4Hp)  f32   VMEM scratch for the hoisted input projection
#   hseq_s  : (Tc*Bp, Hp)   f32   optional VMEM scratch collecting per-step h
# ----------------------------------------------------------------------------
def _lstm_chunk_body(x_ref, wih_ref, whh_ref, b_ref, h_s, c_s, xp_s,
                     *, tc, batch, hidden, hseq_s=None):
    chunk = pl.program_id(0)

    @pl.when(chunk == 0)
    def _():
        h_s[...] = jnp.zeros_like(h_s)
        c_s[...] = jnp.zeros_like(c_s)

    # Hoisted input projection for the whole chunk -> f32 VMEM scratch so the
    # recurrence never keeps Tc*Bp*4Hp values live in vregs.
    xp_s[...] = (jnp.dot(x_ref[...], wih_ref[...],
                         preferred_element_type=jnp.float32) + b_ref[...])

    whh = whh_ref[...]
    H = hidden

    def step(t, carry):
        h, c = carry
        row = pl.multiple_of(t * batch, batch)
        pre = xp_s[pl.ds(row, batch), :] + jnp.dot(
            h.astype(whh.dtype), whh, preferred_element_type=jnp.float32)
        # Gates packed [i | f | o | g]: one sigmoid over 3H lanes, one tanh
        # over H lanes (all slices are 128-lane aligned after padding).
        sig = jax.nn.sigmoid(pre[:, 0:3 * H])
        g_g = jnp.tanh(pre[:, 3 * H:4 * H])
        i_g = sig[:, 0 * H:1 * H]
        f_g = sig[:, 1 * H:2 * H]
        o_g = sig[:, 2 * H:3 * H]
        c = f_g * c + i_g * g_g
        h = o_g * jnp.tanh(c)
        if hseq_s is not None:
            hseq_s[pl.ds(row, batch), :] = h     # aligned (8,128)-tile f32 store
        return h, c

    h, c = lax.fori_loop(0, tc, step, (h_s[...], c_s[...]),
                         unroll=min(tc, 8))
    h_s[...] = h
    c_s[...] = c
    return h


def _lstm_seq_kernel(x_ref, wih_ref, whh_ref, b_ref, out_ref,
                     h_s, c_s, xp_s, hseq_s, *, tc, batch, hidden):
    """Intermediate LSTM layer: emits the full hidden sequence (bf16)."""
    _lstm_chunk_body(x_ref, wih_ref, whh_ref, b_ref, h_s, c_s, xp_s,
                     tc=tc, batch=batch, hidden=hidden, hseq_s=hseq_s)
    # One large, lane-dense store per chunk instead of Tc small stores.
    out_ref[...] = hseq_s[...].astype(out_ref.dtype)


def _lstm_head_kernel(x_ref, wih_ref, whh_ref, b_ref,
                      w1_ref, b1_ref, w2_ref, b2_ref, out_ref,
                      h_s, c_s, xp_s, *, tc, batch, hidden):
    """Final LSTM layer fused with the MLP head; only (Bp, out) is written."""
    h = _lstm_chunk_body(x_ref, wih_ref, whh_ref, b_ref, h_s, c_s, xp_s,
                         tc=tc, batch=batch, hidden=hidden, hseq_s=None)

    @pl.when(pl.program_id(0) == pl.num_programs(0) - 1)
    def _():
        hid = jnp.dot(h, w1_ref[...], preferred_element_type=jnp.float32) + b1_ref[...]
        hid = jnp.maximum(hid, 0.0)
        # TODO(synk): head dropout p=0.2 is identity in eval mode.
        out_ref[...] = (jnp.dot(hid, w2_ref[...],
                                preferred_element_type=jnp.float32) + b2_ref[...])


# ----------------------------------------------------------------------------
# pallas_call wrappers
# ----------------------------------------------------------------------------
def lstm_layer_seq(x_flat, wih_t, whh_t, b, *, batch, tc):
    """x_flat: (T*Bp, D_in) bf16 -> (T*Bp, Hp) bf16 (time-major flattened)."""
    TB, d_in = x_flat.shape
    Hp, H4 = whh_t.shape
    n_chunks = TB // (tc * batch)
    kernel = functools.partial(_lstm_seq_kernel, tc=tc, batch=batch, hidden=Hp)
    return pl.pallas_call(
        kernel,
        out_shape=jax.ShapeDtypeStruct((TB, Hp), MXU_DTYPE),
        grid_spec=pltpu.PrefetchScalarGridSpec(
            num_scalar_prefetch=0,
            grid=(n_chunks,),
            in_specs=[
                pl.BlockSpec((tc * batch, d_in), lambda c: (c, 0)),  # x chunk
                pl.BlockSpec((d_in, H4), lambda c: (0, 0)),          # W_ih^T
                pl.BlockSpec((Hp, H4), lambda c: (0, 0)),            # W_hh^T
                pl.BlockSpec((1, H4), lambda c: (0, 0)),             # bias
            ],
            out_specs=pl.BlockSpec((tc * batch, Hp), lambda c: (c, 0)),
            scratch_shapes=[
                pltpu.VMEM((batch, Hp), jnp.float32),       # h state
                pltpu.VMEM((batch, Hp), jnp.float32),       # c state
                pltpu.VMEM((tc * batch, H4), jnp.float32),  # xproj scratch
                pltpu.VMEM((tc * batch, Hp), jnp.float32),  # hseq scratch
            ],
        ),
        compiler_params=pltpu.CompilerParams(
            dimension_semantics=("arbitrary",)),   # time recurrence: sequential
    )(x_flat, wih_t, whh_t, b)


def lstm_layer_final(x_flat, wih_t, whh_t, b, w1_t, b1, w2_t, b2, *, batch, tc):
    """Final layer + fused MLP head: (T*Bp, D_in) -> (Bp, out)."""
    TB, d_in = x_flat.shape
    Hp, H4 = whh_t.shape
    mid = w1_t.shape[1]
    out_size = w2_t.shape[1]
    n_chunks = TB // (tc * batch)
    kernel = functools.partial(_lstm_head_kernel, tc=tc, batch=batch, hidden=Hp)
    return pl.pallas_call(
        kernel,
        out_shape=jax.ShapeDtypeStruct((batch, out_size), jnp.float32),
        grid_spec=pltpu.PrefetchScalarGridSpec(
            num_scalar_prefetch=0,
            grid=(n_chunks,),
            in_specs=[
                pl.BlockSpec((tc * batch, d_in), lambda c: (c, 0)),  # x chunk
                pl.BlockSpec((d_in, H4), lambda c: (0, 0)),          # W_ih^T
                pl.BlockSpec((Hp, H4), lambda c: (0, 0)),            # W_hh^T
                pl.BlockSpec((1, H4), lambda c: (0, 0)),             # bias
                pl.BlockSpec((Hp, mid), lambda c: (0, 0)),           # W1^T
                pl.BlockSpec((1, mid), lambda c: (0, 0)),            # b1
                pl.BlockSpec((mid, out_size), lambda c: (0, 0)),     # W2^T
                pl.BlockSpec((1, out_size), lambda c: (0, 0)),       # b2
            ],
            out_specs=pl.BlockSpec((batch, out_size), lambda c: (0, 0)),
            scratch_shapes=[
                pltpu.VMEM((batch, Hp), jnp.float32),
                pltpu.VMEM((batch, Hp), jnp.float32),
                pltpu.VMEM((tc * batch, H4), jnp.float32),
            ],
        ),
        compiler_params=pltpu.CompilerParams(
            dimension_semantics=("arbitrary",)),
    )(x_flat, wih_t, whh_t, b, w1_t, b1, w2_t, b2)


# ----------------------------------------------------------------------------
# Parameter init (PyTorch-style U(-1/sqrt(H))) packed kernel-ready:
# gates reordered [i,f,o,g], each gate padded to Hp=ceil(H,128) lanes,
# pre-transposed, bf16 LSTM weights / f32 biases + head weights.
# Padded gate columns & padded hidden rows are zero, so with c0=h0=0 the padded
# hidden units stay exactly 0 and never influence the real units.
# ----------------------------------------------------------------------------
def _pack_gate_rows(w, H, Hp):
    """w: (4H, ...) with PyTorch gate rows [i,f,g,o] -> (4Hp, ...) as [i,f,o,g],
    each gate block zero-padded from H to Hp rows."""
    i_, f_, g_, o_ = w[0:H], w[H:2 * H], w[2 * H:3 * H], w[3 * H:4 * H]
    pad = lambda blk: jnp.pad(blk, ((0, Hp - H),) + ((0, 0),) * (blk.ndim - 1))
    return jnp.concatenate([pad(i_), pad(f_), pad(o_), pad(g_)], axis=0)


def init_params(key, input_size, hidden_size, num_layers, output_size):
    H = hidden_size
    Hp = _ceil_to(H, 128)
    mid = hidden_size // 2
    k = 1.0 / (H ** 0.5)

    def unif(key, shape, bound):
        return jax.random.uniform(key, shape, jnp.float32, -bound, bound)

    params = {"lstm": []}
    for layer in range(num_layers):
        d_in = input_size if layer == 0 else H
        key, k1, k2, k3, k4 = jax.random.split(key, 5)
        w_ih = unif(k1, (4 * H, d_in), k)          # PyTorch layout [i,f,g,o]
        w_hh = unif(k2, (4 * H, H), k)
        b_ih = unif(k3, (4 * H,), k)
        b_hh = unif(k4, (4 * H,), k)
        if layer > 0:                               # previous layer emits Hp features
            w_ih = jnp.pad(w_ih, ((0, 0), (0, Hp - H)))
        w_hh = jnp.pad(w_hh, ((0, 0), (0, Hp - H)))
        params["lstm"].append(dict(
            w_ih_t=_pack_gate_rows(w_ih, H, Hp).T.astype(MXU_DTYPE),   # (D_in, 4Hp)
            w_hh_t=_pack_gate_rows(w_hh, H, Hp).T.astype(MXU_DTYPE),   # (Hp, 4Hp)
            b=_pack_gate_rows((b_ih + b_hh)[:, None], H, Hp).T))       # (1, 4Hp) f32

    key, k1, k2, k3, k4 = jax.random.split(key, 5)
    k_lin1 = 1.0 / (H ** 0.5)
    k_lin2 = 1.0 / (mid ** 0.5)
    w1 = unif(k1, (mid, H), k_lin1)
    w2 = unif(k3, (output_size, mid), k_lin2)
    params["w1_t"] = jnp.pad(w1, ((0, 0), (0, Hp - H))).T              # (Hp, mid) f32
    params["b1"] = unif(k2, (mid,), k_lin1).reshape(1, mid)
    params["w2_t"] = w2.T                                              # (mid, out) f32
    params["b2"] = unif(k4, (output_size,), k_lin2).reshape(1, output_size)
    return params


# ----------------------------------------------------------------------------
# Full forward (matches LSTM.forward, eval mode): x (B, T, D_in) -> (B, out)
# ----------------------------------------------------------------------------
@jax.jit
def lstm_model_forward(params, x_btd):
    B, T, D_in = x_btd.shape
    Bp = _ceil_to(B, 8)                      # sublane padding
    layers = params["lstm"]
    Hp = layers[0]["w_hh_t"].shape[0]        # lane-padded hidden size
    tc = _pick_time_chunk(T, Bp, max(D_in, Hp), Hp)

    x = x_btd
    if Bp != B:
        x = jnp.pad(x, ((0, Bp - B), (0, 0), (0, 0)))
    # time-major, flattened 2D (row = t*Bp + b): every matmul stays plain 2D.
    x = jnp.transpose(x, (1, 0, 2)).reshape(T * Bp, D_in).astype(MXU_DTYPE)

    for lp in layers[:-1]:
        x = lstm_layer_seq(x, lp["w_ih_t"], lp["w_hh_t"], lp["b"],
                           batch=Bp, tc=tc)
        # TODO(synk): inter-layer dropout p=0.2 is identity in eval mode.
    lp = layers[-1]
    out = lstm_layer_final(x, lp["w_ih_t"], lp["w_hh_t"], lp["b"],
                           params["w1_t"], params["b1"],
                           params["w2_t"], params["b2"],
                           batch=Bp, tc=tc)
    return out[:B]


if __name__ == "__main__":
    INPUT_SIZE = 16
    HIDDEN_SIZE = 32
    NUM_LAYERS = 2
    OUTPUT_SIZE = 4
    BATCH = 2
    SEQ = 8

    key = jax.random.PRNGKey(0)
    key, pkey, xkey = jax.random.split(key, 3)
    params = init_params(pkey, INPUT_SIZE, HIDDEN_SIZE, NUM_LAYERS, OUTPUT_SIZE)
    x = jax.random.normal(xkey, (BATCH, SEQ, INPUT_SIZE), jnp.float32)

    out = lstm_model_forward(params, x)
    jax.block_until_ready(out)
    assert out.shape == (BATCH, OUTPUT_SIZE)
    assert bool(jnp.all(jnp.isfinite(out)))
    print("KERNEL_OK")
</pallas_src>

<mosaic_0001>
module attributes {stable_mosaic.version = 11 : i64} {
  func.func @_lstm_seq_kernel(%arg0: i32, %arg1: memref<64x16xbf16, #tpu.memory_space<vmem>>, %arg2: memref<16x512xbf16, #tpu.memory_space<vmem>>, %arg3: memref<128x512xbf16, #tpu.memory_space<vmem>>, %arg4: memref<1x512xf32, #tpu.memory_space<vmem>>, %arg5: memref<64x128xbf16, #tpu.memory_space<vmem>>, %arg6: memref<8x128xf32, #tpu.memory_space<vmem>>, %arg7: memref<8x128xf32, #tpu.memory_space<vmem>>, %arg8: memref<64x512xf32, #tpu.memory_space<vmem>>, %arg9: memref<64x128xf32, #tpu.memory_space<vmem>>) attributes {dimension_semantics = [#tpu.dimension_semantics<arbitrary>], iteration_bounds = array<i64: 1>, scalar_prefetch = 0 : i64, scratch_operands = 4 : i64, tpu.core_type = #tpu.core_type<tc>, window_params = [{transform_indices = @transform_0, window_bounds = array<i64: 64, 16>}, {pipeline_mode = #tpu.pipeline_mode<synchronous>, transform_indices = @transform_1, window_bounds = array<i64: 16, 512>}, {pipeline_mode = #tpu.pipeline_mode<synchronous>, transform_indices = @transform_2, window_bounds = array<i64: 128, 512>}, {pipeline_mode = #tpu.pipeline_mode<synchronous>, transform_indices = @transform_3, window_bounds = array<i64: 1, 512>}, {transform_indices = @transform_4, window_bounds = array<i64: 64, 128>}]} {
    %c0_i32 = arith.constant 0 : i32
    %0 = arith.cmpi eq, %arg0, %c0_i32 : i32
    %1 = arith.extui %0 : i1 to i32
    %c0_i32_0 = arith.constant 0 : i32
    %2 = arith.cmpi ne, %1, %c0_i32_0 : i32
    scf.if %2 {
      %cst_63 = arith.constant 0.000000e+00 : f32
      %218 = vector.broadcast %cst_63 : f32 to vector<8x128xf32>
      %c0_64 = arith.constant 0 : index
      %c0_65 = arith.constant 0 : index
      %219 = vector.load %arg6[%c0_64, %c0_65] : memref<8x128xf32, #tpu.memory_space<vmem>>, vector<8x128xf32>
      tpu.vector_store %arg6[%c0_64, %c0_65], %218 {strides = array<i32>} : memref<8x128xf32, #tpu.memory_space<vmem>>, vector<8x128xf32>,
      %cst_66 = arith.constant 0.000000e+00 : f32
      %220 = vector.broadcast %cst_66 : f32 to vector<8x128xf32>
      %c0_67 = arith.constant 0 : index
      %c0_68 = arith.constant 0 : index
      %221 = vector.load %arg7[%c0_67, %c0_68] : memref<8x128xf32, #tpu.memory_space<vmem>>, vector<8x128xf32>
      tpu.vector_store %arg7[%c0_67, %c0_68], %220 {strides = array<i32>} : memref<8x128xf32, #tpu.memory_space<vmem>>, vector<8x128xf32>,
    } else {
    }
    %c0 = arith.constant 0 : index
    %c0_1 = arith.constant 0 : index
    %3 = vector.load %arg1[%c0, %c0_1] : memref<64x16xbf16, #tpu.memory_space<vmem>>, vector<64x16xbf16>
    %c0_2 = arith.constant 0 : index
    %c0_3 = arith.constant 0 : index
    %4 = vector.load %arg2[%c0_2, %c0_3] : memref<16x512xbf16, #tpu.memory_space<vmem>>, vector<16x512xbf16>
    %cst = arith.constant dense<0.000000e+00> : vector<64x512xf32>
    %5 = tpu.matmul %3, %4, %cst {dimension_numbers = #tpu.dot_dimension_numbers<[1], [0], [0], [1], [0, 0, 1, 1], [], []>} : vector<64x16xbf16>, vector<16x512xbf16>, vector<64x512xf32> -> vector<64x512xf32>
    %c0_4 = arith.constant 0 : index
    %c0_5 = arith.constant 0 : index
    %6 = vector.load %arg4[%c0_4, %c0_5] : memref<1x512xf32, #tpu.memory_space<vmem>>, vector<1x512xf32>
    %7 = vector.broadcast %6 : vector<1x512xf32> to vector<64x512xf32>
    %8 = arith.addf %5, %7 : vector<64x512xf32>
    %c0_6 = arith.constant 0 : index
    %c0_7 = arith.constant 0 : index
    %9 = vector.load %arg8[%c0_6, %c0_7] : memref<64x512xf32, #tpu.memory_space<vmem>>, vector<64x512xf32>
    tpu.vector_store %arg8[%c0_6, %c0_7], %8 {strides = array<i32>} : memref<64x512xf32, #tpu.memory_space<vmem>>, vector<64x512xf32>,
    %c0_8 = arith.constant 0 : index
    %c0_9 = arith.constant 0 : index
    %10 = vector.load %arg3[%c0_8, %c0_9] : memref<128x512xbf16, #tpu.memory_space<vmem>>, vector<128x512xbf16>
    %c0_10 = arith.constant 0 : index
    %c0_11 = arith.constant 0 : index
    %11 = vector.load %arg6[%c0_10, %c0_11] : memref<8x128xf32, #tpu.memory_space<vmem>>, vector<8x128xf32>
    %c0_12 = arith.constant 0 : index
    %c0_13 = arith.constant 0 : index
    %12 = vector.load %arg7[%c0_12, %c0_13] : memref<8x128xf32, #tpu.memory_space<vmem>>, vector<8x128xf32>
    %c0_i32_14 = arith.constant 0 : i32
    %c8_i32 = arith.constant 8 : i32
    %13 = arith.muli %c0_i32_14, %c8_i32 : i32
    %14 = tpu.assume_multiple %13, 8 : i32
    %15 = arith.index_cast %14 : i32 to index
    %c0_15 = arith.constant 0 : index
    %16 = vector.load %arg8[%15, %c0_15] : memref<64x512xf32, #tpu.memory_space<vmem>>, vector<8x512xf32>
    %17 = arith.truncf %11 : vector<8x128xf32> to vector<8x128xbf16>
    %cst_16 = arith.constant dense<0.000000e+00> : vector<8x512xf32>
    %18 = tpu.matmul %17, %10, %cst_16 {dimension_numbers = #tpu.dot_dimension_numbers<[1], [0], [0], [1], [0, 0, 1, 1], [], []>} : vector<8x128xbf16>, vector<128x512xbf16>, vector<8x512xf32> -> vector<8x512xf32>
    %19 = arith.addf %16, %18 : vector<8x512xf32>
    %20 = vector.extract_strided_slice %19 {offsets = [0, 0], sizes = [8, 384], strides = [1, 1]} : vector<8x512xf32> to vector<8x384xf32>
    %21 = arith.negf %20 : vector<8x384xf32>
    %22 = math.exp %21 : vector<8x384xf32>
    %cst_17 = arith.constant 1.000000e+00 : f32
    %23 = vector.broadcast %cst_17 : f32 to vector<8x384xf32>
    %24 = arith.addf %23, %22 : vector<8x384xf32>
    %25 = arith.divf %23, %24 : vector<8x384xf32>
    %26 = vector.extract_strided_slice %19 {offsets = [0, 384], sizes = [8, 128], strides = [1, 1]} : vector<8x512xf32> to vector<8x128xf32>
    %27 = math.tanh %26 : vector<8x128xf32>
    %28 = vector.extract_strided_slice %25 {offsets = [0, 0], sizes = [8, 128], strides = [1, 1]} : vector<8x384xf32> to vector<8x128xf32>
    %29 = vector.extract_strided_slice %25 {offsets = [0, 128], sizes = [8, 128], strides = [1, 1]} : vector<8x384xf32> to vector<8x128xf32>
    %30 = vector.extract_strided_slice %25 {offsets = [0, 256], sizes = [8, 128], strides = [1, 1]} : vector<8x384xf32> to vector<8x128xf32>
    %31 = arith.mulf %29, %12 : vector<8x128xf32>
    %32 = arith.mulf %28, %27 : vector<8x128xf32>
    %33 = arith.addf %31, %32 : vector<8x128xf32>
    %34 = math.tanh %33 : vector<8x128xf32>
    %35 = arith.mulf %30, %34 : vector<8x128xf32>
    %36 = arith.index_cast %14 : i32 to index
    %c0_18 = arith.constant 0 : index
    %37 = vector.load %arg9[%36, %c0_18] : memref<64x128xf32, #tpu.memory_space<vmem>>, vector<8x128xf32>
    tpu.vector_store %arg9[%36, %c0_18], %35 {strides = array<i32>} : memref<64x128xf32, #tpu.memory_space<vmem>>, vector<8x128xf32>,
    %c1_i32 = arith.constant 1 : i32
    %c8_i32_19 = arith.constant 8 : i32
    %38 = arith.muli %c1_i32, %c8_i32_19 : i32
    %39 = tpu.assume_multiple %38, 8 : i32
    %40 = arith.index_cast %39 : i32 to index
    %c0_20 = arith.constant 0 : index
    %41 = vector.load %arg8[%40, %c0_20] : memref<64x512xf32, #tpu.memory_space<vmem>>, vector<8x512xf32>
    %42 = arith.truncf %35 : vector<8x128xf32> to vector<8x128xbf16>
    %cst_21 = arith.constant dense<0.000000e+00> : vector<8x512xf32>
    %43 = tpu.matmul %42, %10, %cst_21 {dimension_numbers = #tpu.dot_dimension_numbers<[1], [0], [0], [1], [0, 0, 1, 1], [], []>} : vector<8x128xbf16>, vector<128x512xbf16>, vector<8x512xf32> -> vector<8x512xf32>
    %44 = arith.addf %41, %43 : vector<8x512xf32>
    %45 = vector.extract_strided_slice %44 {offsets = [0, 0], sizes = [8, 384], strides = [1, 1]} : vector<8x512xf32> to vector<8x384xf32>
    %46 = arith.negf %45 : vector<8x384xf32>
    %47 = math.exp %46 : vector<8x384xf32>
    %cst_22 = arith.constant 1.000000e+00 : f32
    %48 = vector.broadcast %cst_22 : f32 to vector<8x384xf32>
    %49 = arith.addf %48, %47 : vector<8x384xf32>
    %50 = arith.divf %48, %49 : vector<8x384xf32>
    %51 = vector.extract_strided_slice %44 {offsets = [0, 384], sizes = [8, 128], strides = [1, 1]} : vector<8x512xf32> to vector<8x128xf32>
    %52 = math.tanh %51 : vector<8x128xf32>
    %53 = vector.extract_strided_slice %50 {offsets = [0, 0], sizes = [8, 128], strides = [1, 1]} : vector<8x384xf32> to vector<8x128xf32>
    %54 = vector.extract_strided_slice %50 {offsets = [0, 128], sizes = [8, 128], strides = [1, 1]} : vector<8x384xf32> to vector<8x128xf32>
    %55 = vector.extract_strided_slice %50 {offsets = [0, 256], sizes = [8, 128], strides = [1, 1]} : vector<8x384xf32> to vector<8x128xf32>
    %56 = arith.mulf %54, %33 : vector<8x128xf32>
    %57 = arith.mulf %53, %52 : vector<8x128xf32>
    %58 = arith.addf %56, %57 : vector<8x128xf32>
    %59 = math.tanh %58 : vector<8x128xf32>
    %60 = arith.mulf %55, %59 : vector<8x128xf32>
    %61 = arith.index_cast %39 : i32 to index
    %c0_23 = arith.constant 0 : index
    %62 = vector.load %arg9[%61, %c0_23] : memref<64x128xf32, #tpu.memory_space<vmem>>, vector<8x128xf32>
    tpu.vector_store %arg9[%61, %c0_23], %60 {strides = array<i32>} : memref<64x128xf32, #tpu.memory_space<vmem>>, vector<8x128xf32>,
    %c2_i32 = arith.constant 2 : i32
    %c8_i32_24 = arith.constant 8 : i32
    %63 = arith.muli %c2_i32, %c8_i32_24 : i32
    %64 = tpu.assume_multiple %63, 8 : i32
    %65 = arith.index_cast %64 : i32 to index
    %c0_25 = arith.constant 0 : index
    %66 = vector.load %arg8[%65, %c0_25] : memref<64x512xf32, #tpu.memory_space<vmem>>, vector<8x512xf32>
    %67 = arith.truncf %60 : vector<8x128xf32> to vector<8x128xbf16>
    %cst_26 = arith.constant dense<0.000000e+00> : vector<8x512xf32>
    %68 = tpu.matmul %67, %10, %cst_26 {dimension_numbers = #tpu.dot_dimension_numbers<[1], [0], [0], [1], [0, 0, 1, 1], [], []>} : vector<8x128xbf16>, vector<128x512xbf16>, vector<8x512xf32> -> vector<8x512xf32>
    %69 = arith.addf %66, %68 : vector<8x512xf32>
    %70 = vector.extract_strided_slice %69 {offsets = [0, 0], sizes = [8, 384], strides = [1, 1]} : vector<8x512xf32> to vector<8x384xf32>
    %71 = arith.negf %70 : vector<8x384xf32>
    %72 = math.exp %71 : vector<8x384xf32>
    %cst_27 = arith.constant 1.000000e+00 : f32
    %73 = vector.broadcast %cst_27 : f32 to vector<8x384xf32>
    %74 = arith.addf %73, %72 : vector<8x384xf32>
    %75 = arith.divf %73, %74 : vector<8x384xf32>
    %76 = vector.extract_strided_slice %69 {offsets = [0, 384], sizes = [8, 128], strides = [1, 1]} : vector<8x512xf32> to vector<8x128xf32>
    %77 = math.tanh %76 : vector<8x128xf32>
    %78 = vector.extract_strided_slice %75 {offsets = [0, 0], sizes = [8, 128], strides = [1, 1]} : vector<8x384xf32> to vector<8x128xf32>
    %79 = vector.extract_strided_slice %75 {offsets = [0, 128], sizes = [8, 128], strides = [1, 1]} : vector<8x384xf32> to vector<8x128xf32>
    %80 = vector.extract_strided_slice %75 {offsets = [0, 256], sizes = [8, 128], strides = [1, 1]} : vector<8x384xf32> to vector<8x128xf32>
    %81 = arith.mulf %79, %58 : vector<8x128xf32>
    %82 = arith.mulf %78, %77 : vector<8x128xf32>
    %83 = arith.addf %81, %82 : vector<8x128xf32>
    %84 = math.tanh %83 : vector<8x128xf32>
    %85 = arith.mulf %80, %84 : vector<8x128xf32>
    %86 = arith.index_cast %64 : i32 to index
    %c0_28 = arith.constant 0 : index
    %87 = vector.load %arg9[%86, %c0_28] : memref<64x128xf32, #tpu.memory_space<vmem>>, vector<8x128xf32>
    tpu.vector_store %arg9[%86, %c0_28], %85 {strides = array<i32>} : memref<64x128xf32, #tpu.memory_space<vmem>>, vector<8x128xf32>,
    %c3_i32 = arith.constant 3 : i32
    %c8_i32_29 = arith.constant 8 : i32
    %88 = arith.muli %c3_i32, %c8_i32_29 : i32
    %89 = tpu.assume_multiple %88, 8 : i32
    %90 = arith.index_cast %89 : i32 to index
    %c0_30 = arith.constant 0 : index
    %91 = vector.load %arg8[%90, %c0_30] : memref<64x512xf32, #tpu.memory_space<vmem>>, vector<8x512xf32>
    %92 = arith.truncf %85 : vector<8x128xf32> to vector<8x128xbf16>
    %cst_31 = arith.constant dense<0.000000e+00> : vector<8x512xf32>
    %93 = tpu.matmul %92, %10, %cst_31 {dimension_numbers = #tpu.dot_dimension_numbers<[1], [0], [0], [1], [0, 0, 1, 1], [], []>} : vector<8x128xbf16>, vector<128x512xbf16>, vector<8x512xf32> -> vector<8x512xf32>
    %94 = arith.addf %91, %93 : vector<8x512xf32>
    %95 = vector.extract_strided_slice %94 {offsets = [0, 0], sizes = [8, 384], strides = [1, 1]} : vector<8x512xf32> to vector<8x384xf32>
    %96 = arith.negf %95 : vector<8x384xf32>
    %97 = math.exp %96 : vector<8x384xf32>
    %cst_32 = arith.constant 1.000000e+00 : f32
    %98 = vector.broadcast %cst_32 : f32 to vector<8x384xf32>
    %99 = arith.addf %98, %97 : vector<8x384xf32>
    %100 = arith.divf %98, %99 : vector<8x384xf32>
    %101 = vector.extract_strided_slice %94 {offsets = [0, 384], sizes = [8, 128], strides = [1, 1]} : vector<8x512xf32> to vector<8x128xf32>
    %102 = math.tanh %101 : vector<8x128xf32>
    %103 = vector.extract_strided_slice %100 {offsets = [0, 0], sizes = [8, 128], strides = [1, 1]} : vector<8x384xf32> to vector<8x128xf32>
    %104 = vector.extract_strided_slice %100 {offsets = [0, 128], sizes = [8, 128], strides = [1, 1]} : vector<8x384xf32> to vector<8x128xf32>
    %105 = vector.extract_strided_slice %100 {offsets = [0, 256], sizes = [8, 128], strides = [1, 1]} : vector<8x384xf32> to vector<8x128xf32>
    %106 = arith.mulf %104, %83 : vector<8x128xf32>
    %107 = arith.mulf %103, %102 : vector<8x128xf32>
    %108 = arith.addf %106, %107 : vector<8x128xf32>
    %109 = math.tanh %108 : vector<8x128xf32>
    %110 = arith.mulf %105, %109 : vector<8x128xf32>
    %111 = arith.index_cast %89 : i32 to index
    %c0_33 = arith.constant 0 : index
    %112 = vector.load %arg9[%111, %c0_33] : memref<64x128xf32, #tpu.memory_space<vmem>>, vector<8x128xf32>
    tpu.vector_store %arg9[%111, %c0_33], %110 {strides = array<i32>} : memref<64x128xf32, #tpu.memory_space<vmem>>, vector<8x128xf32>,
    %c4_i32 = arith.constant 4 : i32
    %c8_i32_34 = arith.constant 8 : i32
    %113 = arith.muli %c4_i32, %c8_i32_34 : i32
    %114 = tpu.assume_multiple %113, 8 : i32
    %115 = arith.index_cast %114 : i32 to index
    %c0_35 = arith.constant 0 : index
    %116 = vector.load %arg8[%115, %c0_35] : memref<64x512xf32, #tpu.memory_space<vmem>>, vector<8x512xf32>
    %117 = arith.truncf %110 : vector<8x128xf32> to vector<8x128xbf16>
    %cst_36 = arith.constant dense<0.000000e+00> : vector<8x512xf32>
    %118 = tpu.matmul %117, %10, %cst_36 {dimension_numbers = #tpu.dot_dimension_numbers<[1], [0], [0], [1], [0, 0, 1, 1], [], []>} : vector<8x128xbf16>, vector<128x512xbf16>, vector<8x512xf32> -> vector<8x512xf32>
    %119 = arith.addf %116, %118 : vector<8x512xf32>
    %120 = vector.extract_strided_slice %119 {offsets = [0, 0], sizes = [8, 384], strides = [1, 1]} : vector<8x512xf32> to vector<8x384xf32>
    %121 = arith.negf %120 : vector<8x384xf32>
    %122 = math.exp %121 : vector<8x384xf32>
    %cst_37 = arith.constant 1.000000e+00 : f32
    %123 = vector.broadcast %cst_37 : f32 to vector<8x384xf32>
    %124 = arith.addf %123, %122 : vector<8x384xf32>
    %125 = arith.divf %123, %124 : vector<8x384xf32>
    %126 = vector.extract_strided_slice %119 {offsets = [0, 384], sizes = [8, 128], strides = [1, 1]} : vector<8x512xf32> to vector<8x128xf32>
    %127 = math.tanh %126 : vector<8x128xf32>
    %128 = vector.extract_strided_slice %125 {offsets = [0, 0], sizes = [8, 128], strides = [1, 1]} : vector<8x384xf32> to vector<8x128xf32>
    %129 = vector.extract_strided_slice %125 {offsets = [0, 128], sizes = [8, 128], strides = [1, 1]} : vector<8x384xf32> to vector<8x128xf32>
    %130 = vector.extract_strided_slice %125 {offsets = [0, 256], sizes = [8, 128], strides = [1, 1]} : vector<8x384xf32> to vector<8x128xf32>
    %131 = arith.mulf %129, %108 : vector<8x128xf32>
    %132 = arith.mulf %128, %127 : vector<8x128xf32>
    %133 = arith.addf %131, %132 : vector<8x128xf32>
    %134 = math.tanh %133 : vector<8x128xf32>
    %135 = arith.mulf %130, %134 : vector<8x128xf32>
    %136 = arith.index_cast %114 : i32 to index
    %c0_38 = arith.constant 0 : index
    %137 = vector.load %arg9[%136, %c0_38] : memref<64x128xf32, #tpu.memory_space<vmem>>, vector<8x128xf32>
    tpu.vector_store %arg9[%136, %c0_38], %135 {strides = array<i32>} : memref<64x128xf32, #tpu.memory_space<vmem>>, vector<8x128xf32>,
    %c5_i32 = arith.constant 5 : i32
    %c8_i32_39 = arith.constant 8 : i32
    %138 = arith.muli %c5_i32, %c8_i32_39 : i32
    %139 = tpu.assume_multiple %138, 8 : i32
    %140 = arith.index_cast %139 : i32 to index
    %c0_40 = arith.constant 0 : index
    %141 = vector.load %arg8[%140, %c0_40] : memref<64x512xf32, #tpu.memory_space<vmem>>, vector<8x512xf32>
    %142 = arith.truncf %135 : vector<8x128xf32> to vector<8x128xbf16>
    %cst_41 = arith.constant dense<0.000000e+00> : vector<8x512xf32>
    %143 = tpu.matmul %142, %10, %cst_41 {dimension_numbers = #tpu.dot_dimension_numbers<[1], [0], [0], [1], [0, 0, 1, 1], [], []>} : vector<8x128xbf16>, vector<128x512xbf16>, vector<8x512xf32> -> vector<8x512xf32>
    %144 = arith.addf %141, %143 : vector<8x512xf32>
    %145 = vector.extract_strided_slice %144 {offsets = [0, 0], sizes = [8, 384], strides = [1, 1]} : vector<8x512xf32> to vector<8x384xf32>
    %146 = arith.negf %145 : vector<8x384xf32>
    %147 = math.exp %146 : vector<8x384xf32>
    %cst_42 = arith.constant 1.000000e+00 : f32
    %148 = vector.broadcast %cst_42 : f32 to vector<8x384xf32>
    %149 = arith.addf %148, %147 : vector<8x384xf32>
    %150 = arith.divf %148, %149 : vector<8x384xf32>
    %151 = vector.extract_strided_slice %144 {offsets = [0, 384], sizes = [8, 128], strides = [1, 1]} : vector<8x512xf32> to vector<8x128xf32>
    %152 = math.tanh %151 : vector<8x128xf32>
    %153 = vector.extract_strided_slice %150 {offsets = [0, 0], sizes = [8, 128], strides = [1, 1]} : vector<8x384xf32> to vector<8x128xf32>
    %154 = vector.extract_strided_slice %150 {offsets = [0, 128], sizes = [8, 128], strides = [1, 1]} : vector<8x384xf32> to vector<8x128xf32>
    %155 = vector.extract_strided_slice %150 {offsets = [0, 256], sizes = [8, 128], strides = [1, 1]} : vector<8x384xf32> to vector<8x128xf32>
    %156 = arith.mulf %154, %133 : vector<8x128xf32>
    %157 = arith.mulf %153, %152 : vector<8x128xf32>
    %158 = arith.addf %156, %157 : vector<8x128xf32>
    %159 = math.tanh %158 : vector<8x128xf32>
    %160 = arith.mulf %155, %159 : vector<8x128xf32>
    %161 = arith.index_cast %139 : i32 to index
    %c0_43 = arith.constant 0 : index
    %162 = vector.load %arg9[%161, %c0_43] : memref<64x128xf32, #tpu.memory_space<vmem>>, vector<8x128xf32>
    tpu.vector_store %arg9[%161, %c0_43], %160 {strides = array<i32>} : memref<64x128xf32, #tpu.memory_space<vmem>>, vector<8x128xf32>,
    %c6_i32 = arith.constant 6 : i32
    %c8_i32_44 = arith.constant 8 : i32
    %163 = arith.muli %c6_i32, %c8_i32_44 : i32
    %164 = tpu.assume_multiple %163, 8 : i32
    %165 = arith.index_cast %164 : i32 to index
    %c0_45 = arith.constant 0 : index
    %166 = vector.load %arg8[%165, %c0_45] : memref<64x512xf32, #tpu.memory_space<vmem>>, vector<8x512xf32>
    %167 = arith.truncf %160 : vector<8x128xf32> to vector<8x128xbf16>
    %cst_46 = arith.constant dense<0.000000e+00> : vector<8x512xf32>
    %168 = tpu.matmul %167, %10, %cst_46 {dimension_numbers = #tpu.dot_dimension_numbers<[1], [0], [0], [1], [0, 0, 1, 1], [], []>} : vector<8x128xbf16>, vector<128x512xbf16>, vector<8x512xf32> -> vector<8x512xf32>
    %169 = arith.addf %166, %168 : vector<8x512xf32>
    %170 = vector.extract_strided_slice %169 {offsets = [0, 0], sizes = [8, 384], strides = [1, 1]} : vector<8x512xf32> to vector<8x384xf32>
    %171 = arith.negf %170 : vector<8x384xf32>
    %172 = math.exp %171 : vector<8x384xf32>
    %cst_47 = arith.constant 1.000000e+00 : f32
    %173 = vector.broadcast %cst_47 : f32 to vector<8x384xf32>
    %174 = arith.addf %173, %172 : vector<8x384xf32>
    %175 = arith.divf %173, %174 : vector<8x384xf32>
    %176 = vector.extract_strided_slice %169 {offsets = [0, 384], sizes = [8, 128], strides = [1, 1]} : vector<8x512xf32> to vector<8x128xf32>
    %177 = math.tanh %176 : vector<8x128xf32>
    %178 = vector.extract_strided_slice %175 {offsets = [0, 0], sizes = [8, 128], strides = [1, 1]} : vector<8x384xf32> to vector<8x128xf32>
    %179 = vector.extract_strided_slice %175 {offsets = [0, 128], sizes = [8, 128], strides = [1, 1]} : vector<8x384xf32> to vector<8x128xf32>
    %180 = vector.extract_strided_slice %175 {offsets = [0, 256], sizes = [8, 128], strides = [1, 1]} : vector<8x384xf32> to vector<8x128xf32>
    %181 = arith.mulf %179, %158 : vector<8x128xf32>
    %182 = arith.mulf %178, %177 : vector<8x128xf32>
    %183 = arith.addf %181, %182 : vector<8x128xf32>
    %184 = math.tanh %183 : vector<8x128xf32>
    %185 = arith.mulf %180, %184 : vector<8x128xf32>
    %186 = arith.index_cast %164 : i32 to index
    %c0_48 = arith.constant 0 : index
    %187 = vector.load %arg9[%186, %c0_48] : memref<64x128xf32, #tpu.memory_space<vmem>>, vector<8x128xf32>
    tpu.vector_store %arg9[%186, %c0_48], %185 {strides = array<i32>} : memref<64x128xf32, #tpu.memory_space<vmem>>, vector<8x128xf32>,
    %c7_i32 = arith.constant 7 : i32
    %c8_i32_49 = arith.constant 8 : i32
    %188 = arith.muli %c7_i32, %c8_i32_49 : i32
    %189 = tpu.assume_multiple %188, 8 : i32
    %190 = arith.index_cast %189 : i32 to index
    %c0_50 = arith.constant 0 : index
    %191 = vector.load %arg8[%190, %c0_50] : memref<64x512xf32, #tpu.memory_space<vmem>>, vector<8x512xf32>
    %192 = arith.truncf %185 : vector<8x128xf32> to vector<8x128xbf16>
    %cst_51 = arith.constant dense<0.000000e+00> : vector<8x512xf32>
    %193 = tpu.matmul %192, %10, %cst_51 {dimension_numbers = #tpu.dot_dimension_numbers<[1], [0], [0], [1], [0, 0, 1, 1], [], []>} : vector<8x128xbf16>, vector<128x512xbf16>, vector<8x512xf32> -> vector<8x512xf32>
    %194 = arith.addf %191, %193 : vector<8x512xf32>
    %195 = vector.extract_strided_slice %194 {offsets = [0, 0], sizes = [8, 384], strides = [1, 1]} : vector<8x512xf32> to vector<8x384xf32>
    %196 = arith.negf %195 : vector<8x384xf32>
    %197 = math.exp %196 : vector<8x384xf32>
    %cst_52 = arith.constant 1.000000e+00 : f32
    %198 = vector.broadcast %cst_52 : f32 to vector<8x384xf32>
    %199 = arith.addf %198, %197 : vector<8x384xf32>
    %200 = arith.divf %198, %199 : vector<8x384xf32>
    %201 = vector.extract_strided_slice %194 {offsets = [0, 384], sizes = [8, 128], strides = [1, 1]} : vector<8x512xf32> to vector<8x128xf32>
    %202 = math.tanh %201 : vector<8x128xf32>
    %203 = vector.extract_strided_slice %200 {offsets = [0, 0], sizes = [8, 128], strides = [1, 1]} : vector<8x384xf32> to vector<8x128xf32>
    %204 = vector.extract_strided_slice %200 {offsets = [0, 128], sizes = [8, 128], strides = [1, 1]} : vector<8x384xf32> to vector<8x128xf32>
    %205 = vector.extract_strided_slice %200 {offsets = [0, 256], sizes = [8, 128], strides = [1, 1]} : vector<8x384xf32> to vector<8x128xf32>
    %206 = arith.mulf %204, %183 : vector<8x128xf32>
    %207 = arith.mulf %203, %202 : vector<8x128xf32>
    %208 = arith.addf %206, %207 : vector<8x128xf32>
    %209 = math.tanh %208 : vector<8x128xf32>
    %210 = arith.mulf %205, %209 : vector<8x128xf32>
    %211 = arith.index_cast %189 : i32 to index
    %c0_53 = arith.constant 0 : index
    %212 = vector.load %arg9[%211, %c0_53] : memref<64x128xf32, #tpu.memory_space<vmem>>, vector<8x128xf32>
    tpu.vector_store %arg9[%211, %c0_53], %210 {strides = array<i32>} : memref<64x128xf32, #tpu.memory_space<vmem>>, vector<8x128xf32>,
    %c8_i32_54 = arith.constant 8 : i32
    %c0_55 = arith.constant 0 : index
    %c0_56 = arith.constant 0 : index
    %213 = vector.load %arg6[%c0_55, %c0_56] : memref<8x128xf32, #tpu.memory_space<vmem>>, vector<8x128xf32>
    tpu.vector_store %arg6[%c0_55, %c0_56], %210 {strides = array<i32>} : memref<8x128xf32, #tpu.memory_space<vmem>>, vector<8x128xf32>,
    %c0_57 = arith.constant 0 : index
    %c0_58 = arith.constant 0 : index
    %214 = vector.load %arg7[%c0_57, %c0_58] : memref<8x128xf32, #tpu.memory_space<vmem>>, vector<8x128xf32>
    tpu.vector_store %arg7[%c0_57, %c0_58], %208 {strides = array<i32>} : memref<8x128xf32, #tpu.memory_space<vmem>>, vector<8x128xf32>,
    %c0_59 = arith.constant 0 : index
    %c0_60 = arith.constant 0 : index
    %215 = vector.load %arg9[%c0_59, %c0_60] : memref<64x128xf32, #tpu.memory_space<vmem>>, vector<64x128xf32>
    %216 = arith.truncf %215 : vector<64x128xf32> to vector<64x128xbf16>
    %c0_61 = arith.constant 0 : index
    %c0_62 = arith.constant 0 : index
    %217 = vector.load %arg5[%c0_61, %c0_62] : memref<64x128xbf16, #tpu.memory_space<vmem>>, vector<64x128xbf16>
    tpu.vector_store %arg5[%c0_61, %c0_62], %216 {strides = array<i32>} : memref<64x128xbf16, #tpu.memory_space<vmem>>, vector<64x128xbf16>,
    return
  }
  func.func @transform_0(%arg0: i32) -> (i32, i32) {
    %c0_i32 = arith.constant 0 : i32
    %c0_i32_0 = arith.constant 0 : i32
    return %arg0, %c0_i32 : i32, i32
  }
  func.func @transform_1(%arg0: i32) -> (i32, i32) {
    %c0_i32 = arith.constant 0 : i32
    %c0_i32_0 = arith.constant 0 : i32
    %c0_i32_1 = arith.constant 0 : i32
    return %c0_i32, %c0_i32_0 : i32, i32
  }
  func.func @transform_2(%arg0: i32) -> (i32, i32) {
    %c0_i32 = arith.constant 0 : i32
    %c0_i32_0 = arith.constant 0 : i32
    %c0_i32_1 = arith.constant 0 : i32
    return %c0_i32, %c0_i32_0 : i32, i32
  }
  func.func @transform_3(%arg0: i32) -> (i32, i32) {
    %c0_i32 = arith.constant 0 : i32
    %c0_i32_0 = arith.constant 0 : i32
    %c0_i32_1 = arith.constant 0 : i32
    return %c0_i32, %c0_i32_0 : i32, i32
  }
  func.func @transform_4(%arg0: i32) -> (i32, i32) {
    %c0_i32 = arith.constant 0 : i32
    %c0_i32_0 = arith.constant 0 : i32
    return %arg0, %c0_i32 : i32, i32
  }
}

module attributes {stable_mosaic.version = 11 : i64} {
  func.func @_lstm_head_kernel(%arg0: i32, %arg1: memref<64x128xbf16, #tpu.memory_space<vmem>>, %arg2: memref<128x512xbf16, #tpu.memory_space<vmem>>, %arg3: memref<128x512xbf16, #tpu.memory_space<vmem>>, %arg4: memref<1x512xf32, #tpu.memory_space<vmem>>, %arg5: memref<128x16xf32, #tpu.memory_space<vmem>>, %arg6: memref<1x16xf32, #tpu.memory_space<vmem>>, %arg7: memref<16x4xf32, #tpu.memory_space<vmem>>, %arg8: memref<1x4xf32, #tpu.memory_space<vmem>>, %arg9: memref<8x4xf32, #tpu.memory_space<vmem>>, %arg10: memref<8x128xf32, #tpu.memory_space<vmem>>, %arg11: memref<8x128xf32, #tpu.memory_space<vmem>>, %arg12: memref<64x512xf32, #tpu.memory_space<vmem>>) attributes {dimension_semantics = [#tpu.dimension_semantics<arbitrary>], iteration_bounds = array<i64: 1>, scalar_prefetch = 0 : i64, scratch_operands = 3 : i64, tpu.core_type = #tpu.core_type<tc>, window_params = [{transform_indices = @transform_0, window_bounds = array<i64: 64, 128>}, {pipeline_mode = #tpu.pipeline_mode<synchronous>, transform_indices = @transform_1, window_bounds = array<i64: 128, 512>}, {pipeline_mode = #tpu.pipeline_mode<synchronous>, transform_indices = @transform_2, window_bounds = array<i64: 128, 512>}, {pipeline_mode = #tpu.pipeline_mode<synchronous>, transform_indices = @transform_3, window_bounds = array<i64: 1, 512>}, {pipeline_mode = #tpu.pipeline_mode<synchronous>, transform_indices = @transform_4, window_bounds = array<i64: 128, 16>}, {pipeline_mode = #tpu.pipeline_mode<synchronous>, transform_indices = @transform_5, window_bounds = array<i64: 1, 16>}, {pipeline_mode = #tpu.pipeline_mode<synchronous>, transform_indices = @transform_6, window_bounds = array<i64: 16, 4>}, {pipeline_mode = #tpu.pipeline_mode<synchronous>, transform_indices = @transform_7, window_bounds = array<i64: 1, 4>}, {pipeline_mode = #tpu.pipeline_mode<synchronous>, transform_indices = @transform_8, window_bounds = array<i64: 8, 4>}]} {
    %c0_i32 = arith.constant 0 : i32
    %0 = arith.cmpi eq, %arg0, %c0_i32 : i32
    %1 = arith.extui %0 : i1 to i32
    %c0_i32_0 = arith.constant 0 : i32
    %2 = arith.cmpi ne, %1, %c0_i32_0 : i32
    scf.if %2 {
      %cst_53 = arith.constant 0.000000e+00 : f32
      %202 = vector.broadcast %cst_53 : f32 to vector<8x128xf32>
      %c0_54 = arith.constant 0 : index
      %c0_55 = arith.constant 0 : index
      %203 = vector.load %arg10[%c0_54, %c0_55] : memref<8x128xf32, #tpu.memory_space<vmem>>, vector<8x128xf32>
      tpu.vector_store %arg10[%c0_54, %c0_55], %202 {strides = array<i32>} : memref<8x128xf32, #tpu.memory_space<vmem>>, vector<8x128xf32>,
      %cst_56 = arith.constant 0.000000e+00 : f32
      %204 = vector.broadcast %cst_56 : f32 to vector<8x128xf32>
      %c0_57 = arith.constant 0 : index
      %c0_58 = arith.constant 0 : index
      %205 = vector.load %arg11[%c0_57, %c0_58] : memref<8x128xf32, #tpu.memory_space<vmem>>, vector<8x128xf32>
      tpu.vector_store %arg11[%c0_57, %c0_58], %204 {strides = array<i32>} : memref<8x128xf32, #tpu.memory_space<vmem>>, vector<8x128xf32>,
    } else {
    }
    %c0 = arith.constant 0 : index
    %c0_1 = arith.constant 0 : index
    %3 = vector.load %arg1[%c0, %c0_1] : memref<64x128xbf16, #tpu.memory_space<vmem>>, vector<64x128xbf16>
    %c0_2 = arith.constant 0 : index
    %c0_3 = arith.constant 0 : index
    %4 = vector.load %arg2[%c0_2, %c0_3] : memref<128x512xbf16, #tpu.memory_space<vmem>>, vector<128x512xbf16>
    %cst = arith.constant dense<0.000000e+00> : vector<64x512xf32>
    %5 = tpu.matmul %3, %4, %cst {dimension_numbers = #tpu.dot_dimension_numbers<[1], [0], [0], [1], [0, 0, 1, 1], [], []>} : vector<64x128xbf16>, vector<128x512xbf16>, vector<64x512xf32> -> vector<64x512xf32>
    %c0_4 = arith.constant 0 : index
    %c0_5 = arith.constant 0 : index
    %6 = vector.load %arg4[%c0_4, %c0_5] : memref<1x512xf32, #tpu.memory_space<vmem>>, vector<1x512xf32>
    %7 = vector.broadcast %6 : vector<1x512xf32> to vector<64x512xf32>
    %8 = arith.addf %5, %7 : vector<64x512xf32>
    %c0_6 = arith.constant 0 : index
    %c0_7 = arith.constant 0 : index
    %9 = vector.load %arg12[%c0_6, %c0_7] : memref<64x512xf32, #tpu.memory_space<vmem>>, vector<64x512xf32>
    tpu.vector_store %arg12[%c0_6, %c0_7], %8 {strides = array<i32>} : memref<64x512xf32, #tpu.memory_space<vmem>>, vector<64x512xf32>,
    %c0_8 = arith.constant 0 : index
    %c0_9 = arith.constant 0 : index
    %10 = vector.load %arg3[%c0_8, %c0_9] : memref<128x512xbf16, #tpu.memory_space<vmem>>, vector<128x512xbf16>
    %c0_10 = arith.constant 0 : index
    %c0_11 = arith.constant 0 : index
    %11 = vector.load %arg10[%c0_10, %c0_11] : memref<8x128xf32, #tpu.memory_space<vmem>>, vector<8x128xf32>
    %c0_12 = arith.constant 0 : index
    %c0_13 = arith.constant 0 : index
    %12 = vector.load %arg11[%c0_12, %c0_13] : memref<8x128xf32, #tpu.memory_space<vmem>>, vector<8x128xf32>
    %c0_i32_14 = arith.constant 0 : i32
    %c8_i32 = arith.constant 8 : i32
    %13 = arith.muli %c0_i32_14, %c8_i32 : i32
    %14 = tpu.assume_multiple %13, 8 : i32
    %15 = arith.index_cast %14 : i32 to index
    %c0_15 = arith.constant 0 : index
    %16 = vector.load %arg12[%15, %c0_15] : memref<64x512xf32, #tpu.memory_space<vmem>>, vector<8x512xf32>
    %17 = arith.truncf %11 : vector<8x128xf32> to vector<8x128xbf16>
    %cst_16 = arith.constant dense<0.000000e+00> : vector<8x512xf32>
    %18 = tpu.matmul %17, %10, %cst_16 {dimension_numbers = #tpu.dot_dimension_numbers<[1], [0], [0], [1], [0, 0, 1, 1], [], []>} : vector<8x128xbf16>, vector<128x512xbf16>, vector<8x512xf32> -> vector<8x512xf32>
    %19 = arith.addf %16, %18 : vector<8x512xf32>
    %20 = vector.extract_strided_slice %19 {offsets = [0, 0], sizes = [8, 384], strides = [1, 1]} : vector<8x512xf32> to vector<8x384xf32>
    %21 = arith.negf %20 : vector<8x384xf32>
    %22 = math.exp %21 : vector<8x384xf32>
    %cst_17 = arith.constant 1.000000e+00 : f32
    %23 = vector.broadcast %cst_17 : f32 to vector<8x384xf32>
    %24 = arith.addf %23, %22 : vector<8x384xf32>
    %25 = arith.divf %23, %24 : vector<8x384xf32>
    %26 = vector.extract_strided_slice %19 {offsets = [0, 384], sizes = [8, 128], strides = [1, 1]} : vector<8x512xf32> to vector<8x128xf32>
    %27 = math.tanh %26 : vector<8x128xf32>
    %28 = vector.extract_strided_slice %25 {offsets = [0, 0], sizes = [8, 128], strides = [1, 1]} : vector<8x384xf32> to vector<8x128xf32>
    %29 = vector.extract_strided_slice %25 {offsets = [0, 128], sizes = [8, 128], strides = [1, 1]} : vector<8x384xf32> to vector<8x128xf32>
    %30 = vector.extract_strided_slice %25 {offsets = [0, 256], sizes = [8, 128], strides = [1, 1]} : vector<8x384xf32> to vector<8x128xf32>
    %31 = arith.mulf %29, %12 : vector<8x128xf32>
    %32 = arith.mulf %28, %27 : vector<8x128xf32>
    %33 = arith.addf %31, %32 : vector<8x128xf32>
    %34 = math.tanh %33 : vector<8x128xf32>
    %35 = arith.mulf %30, %34 : vector<8x128xf32>
    %c1_i32 = arith.constant 1 : i32
    %c8_i32_18 = arith.constant 8 : i32
    %36 = arith.muli %c1_i32, %c8_i32_18 : i32
    %37 = tpu.assume_multiple %36, 8 : i32
    %38 = arith.index_cast %37 : i32 to index
    %c0_19 = arith.constant 0 : index
    %39 = vector.load %arg12[%38, %c0_19] : memref<64x512xf32, #tpu.memory_space<vmem>>, vector<8x512xf32>
    %40 = arith.truncf %35 : vector<8x128xf32> to vector<8x128xbf16>
    %cst_20 = arith.constant dense<0.000000e+00> : vector<8x512xf32>
    %41 = tpu.matmul %40, %10, %cst_20 {dimension_numbers = #tpu.dot_dimension_numbers<[1], [0], [0], [1], [0, 0, 1, 1], [], []>} : vector<8x128xbf16>, vector<128x512xbf16>, vector<8x512xf32> -> vector<8x512xf32>
    %42 = arith.addf %39, %41 : vector<8x512xf32>
    %43 = vector.extract_strided_slice %42 {offsets = [0, 0], sizes = [8, 384], strides = [1, 1]} : vector<8x512xf32> to vector<8x384xf32>
    %44 = arith.negf %43 : vector<8x384xf32>
    %45 = math.exp %44 : vector<8x384xf32>
    %cst_21 = arith.constant 1.000000e+00 : f32
    %46 = vector.broadcast %cst_21 : f32 to vector<8x384xf32>
    %47 = arith.addf %46, %45 : vector<8x384xf32>
    %48 = arith.divf %46, %47 : vector<8x384xf32>
    %49 = vector.extract_strided_slice %42 {offsets = [0, 384], sizes = [8, 128], strides = [1, 1]} : vector<8x512xf32> to vector<8x128xf32>
    %50 = math.tanh %49 : vector<8x128xf32>
    %51 = vector.extract_strided_slice %48 {offsets = [0, 0], sizes = [8, 128], strides = [1, 1]} : vector<8x384xf32> to vector<8x128xf32>
    %52 = vector.extract_strided_slice %48 {offsets = [0, 128], sizes = [8, 128], strides = [1, 1]} : vector<8x384xf32> to vector<8x128xf32>
    %53 = vector.extract_strided_slice %48 {offsets = [0, 256], sizes = [8, 128], strides = [1, 1]} : vector<8x384xf32> to vector<8x128xf32>
    %54 = arith.mulf %52, %33 : vector<8x128xf32>
    %55 = arith.mulf %51, %50 : vector<8x128xf32>
    %56 = arith.addf %54, %55 : vector<8x128xf32>
    %57 = math.tanh %56 : vector<8x128xf32>
    %58 = arith.mulf %53, %57 : vector<8x128xf32>
    %c2_i32 = arith.constant 2 : i32
    %c8_i32_22 = arith.constant 8 : i32
    %59 = arith.muli %c2_i32, %c8_i32_22 : i32
    %60 = tpu.assume_multiple %59, 8 : i32
    %61 = arith.index_cast %60 : i32 to index
    %c0_23 = arith.constant 0 : index
    %62 = vector.load %arg12[%61, %c0_23] : memref<64x512xf32, #tpu.memory_space<vmem>>, vector<8x512xf32>
    %63 = arith.truncf %58 : vector<8x128xf32> to vector<8x128xbf16>
    %cst_24 = arith.constant dense<0.000000e+00> : vector<8x512xf32>
    %64 = tpu.matmul %63, %10, %cst_24 {dimension_numbers = #tpu.dot_dimension_numbers<[1], [0], [0], [1], [0, 0, 1, 1], [], []>} : vector<8x128xbf16>, vector<128x512xbf16>, vector<8x512xf32> -> vector<8x512xf32>
    %65 = arith.addf %62, %64 : vector<8x512xf32>
    %66 = vector.extract_strided_slice %65 {offsets = [0, 0], sizes = [8, 384], strides = [1, 1]} : vector<8x512xf32> to vector<8x384xf32>
    %67 = arith.negf %66 : vector<8x384xf32>
    %68 = math.exp %67 : vector<8x384xf32>
    %cst_25 = arith.constant 1.000000e+00 : f32
    %69 = vector.broadcast %cst_25 : f32 to vector<8x384xf32>
    %70 = arith.addf %69, %68 : vector<8x384xf32>
    %71 = arith.divf %69, %70 : vector<8x384xf32>
    %72 = vector.extract_strided_slice %65 {offsets = [0, 384], sizes = [8, 128], strides = [1, 1]} : vector<8x512xf32> to vector<8x128xf32>
    %73 = math.tanh %72 : vector<8x128xf32>
    %74 = vector.extract_strided_slice %71 {offsets = [0, 0], sizes = [8, 128], strides = [1, 1]} : vector<8x384xf32> to vector<8x128xf32>
    %75 = vector.extract_strided_slice %71 {offsets = [0, 128], sizes = [8, 128], strides = [1, 1]} : vector<8x384xf32> to vector<8x128xf32>
    %76 = vector.extract_strided_slice %71 {offsets = [0, 256], sizes = [8, 128], strides = [1, 1]} : vector<8x384xf32> to vector<8x128xf32>
    %77 = arith.mulf %75, %56 : vector<8x128xf32>
    %78 = arith.mulf %74, %73 : vector<8x128xf32>
    %79 = arith.addf %77, %78 : vector<8x128xf32>
    %80 = math.tanh %79 : vector<8x128xf32>
    %81 = arith.mulf %76, %80 : vector<8x128xf32>
    %c3_i32 = arith.constant 3 : i32
    %c8_i32_26 = arith.constant 8 : i32
    %82 = arith.muli %c3_i32, %c8_i32_26 : i32
    %83 = tpu.assume_multiple %82, 8 : i32
    %84 = arith.index_cast %83 : i32 to index
    %c0_27 = arith.constant 0 : index
    %85 = vector.load %arg12[%84, %c0_27] : memref<64x512xf32, #tpu.memory_space<vmem>>, vector<8x512xf32>
    %86 = arith.truncf %81 : vector<8x128xf32> to vector<8x128xbf16>
    %cst_28 = arith.constant dense<0.000000e+00> : vector<8x512xf32>
    %87 = tpu.matmul %86, %10, %cst_28 {dimension_numbers = #tpu.dot_dimension_numbers<[1], [0], [0], [1], [0, 0, 1, 1], [], []>} : vector<8x128xbf16>, vector<128x512xbf16>, vector<8x512xf32> -> vector<8x512xf32>
    %88 = arith.addf %85, %87 : vector<8x512xf32>
    %89 = vector.extract_strided_slice %88 {offsets = [0, 0], sizes = [8, 384], strides = [1, 1]} : vector<8x512xf32> to vector<8x384xf32>
    %90 = arith.negf %89 : vector<8x384xf32>
    %91 = math.exp %90 : vector<8x384xf32>
    %cst_29 = arith.constant 1.000000e+00 : f32
    %92 = vector.broadcast %cst_29 : f32 to vector<8x384xf32>
    %93 = arith.addf %92, %91 : vector<8x384xf32>
    %94 = arith.divf %92, %93 : vector<8x384xf32>
    %95 = vector.extract_strided_slice %88 {offsets = [0, 384], sizes = [8, 128], strides = [1, 1]} : vector<8x512xf32> to vector<8x128xf32>
    %96 = math.tanh %95 : vector<8x128xf32>
    %97 = vector.extract_strided_slice %94 {offsets = [0, 0], sizes = [8, 128], strides = [1, 1]} : vector<8x384xf32> to vector<8x128xf32>
    %98 = vector.extract_strided_slice %94 {offsets = [0, 128], sizes = [8, 128], strides = [1, 1]} : vector<8x384xf32> to vector<8x128xf32>
    %99 = vector.extract_strided_slice %94 {offsets = [0, 256], sizes = [8, 128], strides = [1, 1]} : vector<8x384xf32> to vector<8x128xf32>
    %100 = arith.mulf %98, %79 : vector<8x128xf32>
    %101 = arith.mulf %97, %96 : vector<8x128xf32>
    %102 = arith.addf %100, %101 : vector<8x128xf32>
    %103 = math.tanh %102 : vector<8x128xf32>
    %104 = arith.mulf %99, %103 : vector<8x128xf32>
    %c4_i32 = arith.constant 4 : i32
    %c8_i32_30 = arith.constant 8 : i32
    %105 = arith.muli %c4_i32, %c8_i32_30 : i32
    %106 = tpu.assume_multiple %105, 8 : i32
    %107 = arith.index_cast %106 : i32 to index
    %c0_31 = arith.constant 0 : index
    %108 = vector.load %arg12[%107, %c0_31] : memref<64x512xf32, #tpu.memory_space<vmem>>, vector<8x512xf32>
    %109 = arith.truncf %104 : vector<8x128xf32> to vector<8x128xbf16>
    %cst_32 = arith.constant dense<0.000000e+00> : vector<8x512xf32>
    %110 = tpu.matmul %109, %10, %cst_32 {dimension_numbers = #tpu.dot_dimension_numbers<[1], [0], [0], [1], [0, 0, 1, 1], [], []>} : vector<8x128xbf16>, vector<128x512xbf16>, vector<8x512xf32> -> vector<8x512xf32>
    %111 = arith.addf %108, %110 : vector<8x512xf32>
    %112 = vector.extract_strided_slice %111 {offsets = [0, 0], sizes = [8, 384], strides = [1, 1]} : vector<8x512xf32> to vector<8x384xf32>
    %113 = arith.negf %112 : vector<8x384xf32>
    %114 = math.exp %113 : vector<8x384xf32>
    %cst_33 = arith.constant 1.000000e+00 : f32
    %115 = vector.broadcast %cst_33 : f32 to vector<8x384xf32>
    %116 = arith.addf %115, %114 : vector<8x384xf32>
    %117 = arith.divf %115, %116 : vector<8x384xf32>
    %118 = vector.extract_strided_slice %111 {offsets = [0, 384], sizes = [8, 128], strides = [1, 1]} : vector<8x512xf32> to vector<8x128xf32>
    %119 = math.tanh %118 : vector<8x128xf32>
    %120 = vector.extract_strided_slice %117 {offsets = [0, 0], sizes = [8, 128], strides = [1, 1]} : vector<8x384xf32> to vector<8x128xf32>
    %121 = vector.extract_strided_slice %117 {offsets = [0, 128], sizes = [8, 128], strides = [1, 1]} : vector<8x384xf32> to vector<8x128xf32>
    %122 = vector.extract_strided_slice %117 {offsets = [0, 256], sizes = [8, 128], strides = [1, 1]} : vector<8x384xf32> to vector<8x128xf32>
    %123 = arith.mulf %121, %102 : vector<8x128xf32>
    %124 = arith.mulf %120, %119 : vector<8x128xf32>
    %125 = arith.addf %123, %124 : vector<8x128xf32>
    %126 = math.tanh %125 : vector<8x128xf32>
    %127 = arith.mulf %122, %126 : vector<8x128xf32>
    %c5_i32 = arith.constant 5 : i32
    %c8_i32_34 = arith.constant 8 : i32
    %128 = arith.muli %c5_i32, %c8_i32_34 : i32
    %129 = tpu.assume_multiple %128, 8 : i32
    %130 = arith.index_cast %129 : i32 to index
    %c0_35 = arith.constant 0 : index
    %131 = vector.load %arg12[%130, %c0_35] : memref<64x512xf32, #tpu.memory_space<vmem>>, vector<8x512xf32>
    %132 = arith.truncf %127 : vector<8x128xf32> to vector<8x128xbf16>
    %cst_36 = arith.constant dense<0.000000e+00> : vector<8x512xf32>
    %133 = tpu.matmul %132, %10, %cst_36 {dimension_numbers = #tpu.dot_dimension_numbers<[1], [0], [0], [1], [0, 0, 1, 1], [], []>} : vector<8x128xbf16>, vector<128x512xbf16>, vector<8x512xf32> -> vector<8x512xf32>
    %134 = arith.addf %131, %133 : vector<8x512xf32>
    %135 = vector.extract_strided_slice %134 {offsets = [0, 0], sizes = [8, 384], strides = [1, 1]} : vector<8x512xf32> to vector<8x384xf32>
    %136 = arith.negf %135 : vector<8x384xf32>
    %137 = math.exp %136 : vector<8x384xf32>
    %cst_37 = arith.constant 1.000000e+00 : f32
    %138 = vector.broadcast %cst_37 : f32 to vector<8x384xf32>
    %139 = arith.addf %138, %137 : vector<8x384xf32>
    %140 = arith.divf %138, %139 : vector<8x384xf32>
    %141 = vector.extract_strided_slice %134 {offsets = [0, 384], sizes = [8, 128], strides = [1, 1]} : vector<8x512xf32> to vector<8x128xf32>
    %142 = math.tanh %141 : vector<8x128xf32>
    %143 = vector.extract_strided_slice %140 {offsets = [0, 0], sizes = [8, 128], strides = [1, 1]} : vector<8x384xf32> to vector<8x128xf32>
    %144 = vector.extract_strided_slice %140 {offsets = [0, 128], sizes = [8, 128], strides = [1, 1]} : vector<8x384xf32> to vector<8x128xf32>
    %145 = vector.extract_strided_slice %140 {offsets = [0, 256], sizes = [8, 128], strides = [1, 1]} : vector<8x384xf32> to vector<8x128xf32>
    %146 = arith.mulf %144, %125 : vector<8x128xf32>
    %147 = arith.mulf %143, %142 : vector<8x128xf32>
    %148 = arith.addf %146, %147 : vector<8x128xf32>
    %149 = math.tanh %148 : vector<8x128xf32>
    %150 = arith.mulf %145, %149 : vector<8x128xf32>
    %c6_i32 = arith.constant 6 : i32
    %c8_i32_38 = arith.constant 8 : i32
    %151 = arith.muli %c6_i32, %c8_i32_38 : i32
    %152 = tpu.assume_multiple %151, 8 : i32
    %153 = arith.index_cast %152 : i32 to index
    %c0_39 = arith.constant 0 : index
    %154 = vector.load %arg12[%153, %c0_39] : memref<64x512xf32, #tpu.memory_space<vmem>>, vector<8x512xf32>
    %155 = arith.truncf %150 : vector<8x128xf32> to vector<8x128xbf16>
    %cst_40 = arith.constant dense<0.000000e+00> : vector<8x512xf32>
    %156 = tpu.matmul %155, %10, %cst_40 {dimension_numbers = #tpu.dot_dimension_numbers<[1], [0], [0], [1], [0, 0, 1, 1], [], []>} : vector<8x128xbf16>, vector<128x512xbf16>, vector<8x512xf32> -> vector<8x512xf32>
    %157 = arith.addf %154, %156 : vector<8x512xf32>
    %158 = vector.extract_strided_slice %157 {offsets = [0, 0], sizes = [8, 384], strides = [1, 1]} : vector<8x512xf32> to vector<8x384xf32>
    %159 = arith.negf %158 : vector<8x384xf32>
    %160 = math.exp %159 : vector<8x384xf32>
    %cst_41 = arith.constant 1.000000e+00 : f32
    %161 = vector.broadcast %cst_41 : f32 to vector<8x384xf32>
    %162 = arith.addf %161, %160 : vector<8x384xf32>
    %163 = arith.divf %161, %162 : vector<8x384xf32>
    %164 = vector.extract_strided_slice %157 {offsets = [0, 384], sizes = [8, 128], strides = [1, 1]} : vector<8x512xf32> to vector<8x128xf32>
    %165 = math.tanh %164 : vector<8x128xf32>
    %166 = vector.extract_strided_slice %163 {offsets = [0, 0], sizes = [8, 128], strides = [1, 1]} : vector<8x384xf32> to vector<8x128xf32>
    %167 = vector.extract_strided_slice %163 {offsets = [0, 128], sizes = [8, 128], strides = [1, 1]} : vector<8x384xf32> to vector<8x128xf32>
    %168 = vector.extract_strided_slice %163 {offsets = [0, 256], sizes = [8, 128], strides = [1, 1]} : vector<8x384xf32> to vector<8x128xf32>
    %169 = arith.mulf %167, %148 : vector<8x128xf32>
    %170 = arith.mulf %166, %165 : vector<8x128xf32>
    %171 = arith.addf %169, %170 : vector<8x128xf32>
    %172 = math.tanh %171 : vector<8x128xf32>
    %173 = arith.mulf %168, %172 : vector<8x128xf32>
    %c7_i32 = arith.constant 7 : i32
    %c8_i32_42 = arith.constant 8 : i32
    %174 = arith.muli %c7_i32, %c8_i32_42 : i32
    %175 = tpu.assume_multiple %174, 8 : i32
    %176 = arith.index_cast %175 : i32 to index
    %c0_43 = arith.constant 0 : index
    %177 = vector.load %arg12[%176, %c0_43] : memref<64x512xf32, #tpu.memory_space<vmem>>, vector<8x512xf32>
    %178 = arith.truncf %173 : vector<8x128xf32> to vector<8x128xbf16>
    %cst_44 = arith.constant dense<0.000000e+00> : vector<8x512xf32>
    %179 = tpu.matmul %178, %10, %cst_44 {dimension_numbers = #tpu.dot_dimension_numbers<[1], [0], [0], [1], [0, 0, 1, 1], [], []>} : vector<8x128xbf16>, vector<128x512xbf16>, vector<8x512xf32> -> vector<8x512xf32>
    %180 = arith.addf %177, %179 : vector<8x512xf32>
    %181 = vector.extract_strided_slice %180 {offsets = [0, 0], sizes = [8, 384], strides = [1, 1]} : vector<8x512xf32> to vector<8x384xf32>
    %182 = arith.negf %181 : vector<8x384xf32>
    %183 = math.exp %182 : vector<8x384xf32>
    %cst_45 = arith.constant 1.000000e+00 : f32
    %184 = vector.broadcast %cst_45 : f32 to vector<8x384xf32>
    %185 = arith.addf %184, %183 : vector<8x384xf32>
    %186 = arith.divf %184, %185 : vector<8x384xf32>
    %187 = vector.extract_strided_slice %180 {offsets = [0, 384], sizes = [8, 128], strides = [1, 1]} : vector<8x512xf32> to vector<8x128xf32>
    %188 = math.tanh %187 : vector<8x128xf32>
    %189 = vector.extract_strided_slice %186 {offsets = [0, 0], sizes = [8, 128], strides = [1, 1]} : vector<8x384xf32> to vector<8x128xf32>
    %190 = vector.extract_strided_slice %186 {offsets = [0, 128], sizes = [8, 128], strides = [1, 1]} : vector<8x384xf32> to vector<8x128xf32>
    %191 = vector.extract_strided_slice %186 {offsets = [0, 256], sizes = [8, 128], strides = [1, 1]} : vector<8x384xf32> to vector<8x128xf32>
    %192 = arith.mulf %190, %171 : vector<8x128xf32>
    %193 = arith.mulf %189, %188 : vector<8x128xf32>
    %194 = arith.addf %192, %193 : vector<8x128xf32>
    %195 = math.tanh %194 : vector<8x128xf32>
    %196 = arith.mulf %191, %195 : vector<8x128xf32>
    %c8_i32_46 = arith.constant 8 : i32
    %c0_47 = arith.constant 0 : index
    %c0_48 = arith.constant 0 : index
    %197 = vector.load %arg10[%c0_47, %c0_48] : memref<8x128xf32, #tpu.memory_space<vmem>>, vector<8x128xf32>
    tpu.vector_store %arg10[%c0_47, %c0_48], %196 {strides = array<i32>} : memref<8x128xf32, #tpu.memory_space<vmem>>, vector<8x128xf32>,
    %c0_49 = arith.constant 0 : index
    %c0_50 = arith.constant 0 : index
    %198 = vector.load %arg11[%c0_49, %c0_50] : memref<8x128xf32, #tpu.memory_space<vmem>>, vector<8x128xf32>
    tpu.vector_store %arg11[%c0_49, %c0_50], %194 {strides = array<i32>} : memref<8x128xf32, #tpu.memory_space<vmem>>, vector<8x128xf32>,
    %c0_i32_51 = arith.constant 0 : i32
    %199 = arith.cmpi eq, %arg0, %c0_i32_51 : i32
    %200 = arith.extui %199 : i1 to i32
    %c0_i32_52 = arith.constant 0 : i32
    %201 = arith.cmpi ne, %200, %c0_i32_52 : i32
    scf.if %201 {
      %c0_53 = arith.constant 0 : index
      %c0_54 = arith.constant 0 : index
      %202 = vector.load %arg5[%c0_53, %c0_54] : memref<128x16xf32, #tpu.memory_space<vmem>>, vector<128x16xf32>
      %cst_55 = arith.constant dense<0.000000e+00> : vector<8x16xf32>
      %203 = tpu.matmul %196, %202, %cst_55 {dimension_numbers = #tpu.dot_dimension_numbers<[1], [0], [0], [1], [0, 0, 1, 1], [], []>} : vector<8x128xf32>, vector<128x16xf32>, vector<8x16xf32> -> vector<8x16xf32>
      %c0_56 = arith.constant 0 : index
      %c0_57 = arith.constant 0 : index
      %204 = vector.load %arg6[%c0_56, %c0_57] : memref<1x16xf32, #tpu.memory_space<vmem>>, vector<1x16xf32>
      %205 = vector.broadcast %204 : vector<1x16xf32> to vector<8x16xf32>
      %206 = arith.addf %203, %205 : vector<8x16xf32>
      %cst_58 = arith.constant 0.000000e+00 : f32
      %207 = vector.broadcast %cst_58 : f32 to vector<8x16xf32>
      %208 = arith.maximumf %206, %207 : vector<8x16xf32>
      %c0_59 = arith.constant 0 : index
      %c0_60 = arith.constant 0 : index
      %209 = vector.load %arg7[%c0_59, %c0_60] : memref<16x4xf32, #tpu.memory_space<vmem>>, vector<16x4xf32>
      %cst_61 = arith.constant dense<0.000000e+00> : vector<8x4xf32>
      %210 = tpu.matmul %208, %209, %cst_61 {dimension_numbers = #tpu.dot_dimension_numbers<[1], [0], [0], [1], [0, 0, 1, 1], [], []>} : vector<8x16xf32>, vector<16x4xf32>, vector<8x4xf32> -> vector<8x4xf32>
      %c0_62 = arith.constant 0 : index
      %c0_63 = arith.constant 0 : index
      %211 = vector.load %arg8[%c0_62, %c0_63] : memref<1x4xf32, #tpu.memory_space<vmem>>, vector<1x4xf32>
      %212 = vector.broadcast %211 : vector<1x4xf32> to vector<8x4xf32>
      %213 = arith.addf %210, %212 : vector<8x4xf32>
      %c0_64 = arith.constant 0 : index
      %c0_65 = arith.constant 0 : index
      %214 = vector.load %arg9[%c0_64, %c0_65] : memref<8x4xf32, #tpu.memory_space<vmem>>, vector<8x4xf32>
      tpu.vector_store %arg9[%c0_64, %c0_65], %213 {strides = array<i32>} : memref<8x4xf32, #tpu.memory_space<vmem>>, vector<8x4xf32>,
    } else {
    }
    return
  }
  func.func @transform_0(%arg0: i32) -> (i32, i32) {
    %c0_i32 = arith.constant 0 : i32
    %c0_i32_0 = arith.constant 0 : i32
    return %arg0, %c0_i32 : i32, i32
  }
  func.func @transform_1(%arg0: i32) -> (i32, i32) {
    %c0_i32 = arith.constant 0 : i32
    %c0_i32_0 = arith.constant 0 : i32
    %c0_i32_1 = arith.constant 0 : i32
    return %c0_i32, %c0_i32_0 : i32, i32
  }
  func.func @transform_2(%arg0: i32) -> (i32, i32) {
    %c0_i32 = arith.constant 0 : i32
    %c0_i32_0 = arith.constant 0 : i32
    %c0_i32_1 = arith.constant 0 : i32
    return %c0_i32, %c0_i32_0 : i32, i32
  }
  func.func @transform_3(%arg0: i32) -> (i32, i32) {
    %c0_i32 = arith.constant 0 : i32
    %c0_i32_0 = arith.constant 0 : i32
    %c0_i32_1 = arith.constant 0 : i32
    return %c0_i32, %c0_i32_0 : i32, i32
  }
  func.func @transform_4(%arg0: i32) -> (i32, i32) {
    %c0_i32 = arith.constant 0 : i32
    %c0_i32_0 = arith.constant 0 : i32
    %c0_i32_1 = arith.constant 0 : i32
    return %c0_i32, %c0_i32_0 : i32, i32
  }
  func.func @transform_5(%arg0: i32) -> (i32, i32) {
    %c0_i32 = arith.constant 0 : i32
    %c0_i32_0 = arith.constant 0 : i32
    %c0_i32_1 = arith.constant 0 : i32
    return %c0_i32, %c0_i32_0 : i32, i32
  }
  func.func @transform_6(%arg0: i32) -> (i32, i32) {
    %c0_i32 = arith.constant 0 : i32
    %c0_i32_0 = arith.constant 0 : i32
    %c0_i32_1 = arith.constant 0 : i32
    return %c0_i32, %c0_i32_0 : i32, i32
  }
  func.func @transform_7(%arg0: i32) -> (i32, i32) {
    %c0_i32 = arith.constant 0 : i32
    %c0_i32_0 = arith.constant 0 : i32
    %c0_i32_1 = arith.constant 0 : i32
    return %c0_i32, %c0_i32_0 : i32, i32
  }
  func.func @transform_8(%arg0: i32) -> (i32, i32) {
    %c0_i32 = arith.constant 0 : i32
    %c0_i32_0 = arith.constant 0 : i32
    %c0_i32_1 = arith.constant 0 : i32
    return %c0_i32, %c0_i32_0 : i32, i32
  }
}

</mosaic_0001>

<llo_original>
// kernel: lstm_model_forward.2
$region0: #{lstm_model_forward.2}
  #allocation0 [shape = 'u32[]', space=smem, size = 0x4, offset = 0x4, fixed_abs, tag = 'smem constant byte address 0x4 - core index']
  #allocation1 [shape = 'u32[72,128]{1,0:T(1,128)}', space=vmem, size = 0x9000, scoped, tag = 'internal scratch']
  #allocation2 [shape = 'f32[8,128]{1,0:T(8,128)}', space=vmem, size = 0x1000, scoped, tag = 'scratch operand']
  #allocation3 [shape = 'f32[8,128]{1,0:T(8,128)}', space=vmem, size = 0x1000, scoped, tag = 'scratch operand']
  #allocation4 [shape = 'f32[64,512]{1,0:T(8,128)}', space=vmem, size = 0x20000, scoped, tag = 'scratch operand']
  #allocation5 [shape = 'f32[64,128]{1,0:T(8,128)}', space=vmem, size = 0x8000, scoped, tag = 'scratch operand']
  %s0 = inlined_call_operand.vmem [shape: bf16[64,16], index: 0, kind: input, shape index: {}]
  %s1 = inlined_call_operand.vmem [shape: bf16[16,512], index: 1, kind: input, shape index: {}]
  %s2 = inlined_call_operand.hbm [shape: bf16[128,512], index: 2, kind: input, shape index: {}]
  %s3 = inlined_call_operand.vmem [shape: f32[1,512], index: 3, kind: input, shape index: {}]
  %s4 = inlined_call_operand.vmem [shape: bf16[64,128], index: 4, kind: output, shape index: {}]
  %s5 = sld [smem:[#allocation0]]
  $region34: #{lstm_model_forward.2} parent=0
    _
  %s7 = ssub.s32 1, %s5
  %s8 = scalar_select 0, %s7, %s5
  $region1: #{lstm_model_forward.2} parent=0
    #allocation6 [shape = 'u8[131072]{0}', space=vmem, size = 0x20000, scoped, tag = 'input window, operand 2, single buffered']
    #allocation7 [shape = 's32[1]{0}', space=sflag, size = 0x4, scoped, tag = 'scoped memory for lstm_model_forward.2']
    %9 = vsyncpa [#allocation7], 0
    // Predicated region
    $region2: #{lstm_model_forward.2} parent=1 // pred_check
      _
    $region3: #{lstm_model_forward.2} parent=1 // pred_check_branch
      %11 = sbr.rel (0) target = $region5
    $region4: #{lstm_model_forward.2} parent=1 // pred_region
      _
    $region5: #{lstm_model_forward.2} parent=1 // pred_fallthru
      _
    // Predicated region
    $region6: #{lstm_model_forward.2} parent=1 // pred_check
      _
    $region7: #{lstm_model_forward.2} parent=1 // pred_check_branch
      %13 = sbr.rel (0) target = $region9
    $region8: #{lstm_model_forward.2} parent=1 // pred_region
      _
    $region9: #{lstm_model_forward.2} parent=1 // pred_fallthru
      _
    // Predicated region
    $region10: #{lstm_model_forward.2} parent=1 // pred_check
      _
    $region11: #{lstm_model_forward.2} parent=1 // pred_check_branch
      %15 = sbr.rel (0) target = $region13
    $region12: #{lstm_model_forward.2} parent=1 // pred_region
      %17 = vsyncadd [#allocation7], 0
      %s18 = sshll.u32 %s2, 4
      %s19 = int_to_ptr.hbm [resolvable:$true] %s18
      %s20 = sshll.u32 [#allocation6], 4
      %s21 = int_to_ptr.vmem [resolvable:$true] %s20
      %26 = dma.hbm_to_vmem [thread:$0]  %s19, 4096, %s21, [#allocation7], 256, 256, 16
    $region13: #{lstm_model_forward.2} parent=1 // pred_fallthru
      _
    // Predicated region
    $region14: #{lstm_model_forward.2} parent=1 // pred_check
      _
    $region15: #{lstm_model_forward.2} parent=1 // pred_check_branch
      %28 = sbr.rel (0) target = $region17
    $region16: #{lstm_model_forward.2} parent=1 // pred_region
      _
    $region17: #{lstm_model_forward.2} parent=1 // pred_fallthru
      _
    // Predicated region
    $region18: #{lstm_model_forward.2} parent=1 // pred_check
      _
    $region19: #{lstm_model_forward.2} parent=1 // pred_check_branch
      %30 = sbr.rel (0) target = $region21
    $region20: #{lstm_model_forward.2} parent=1 // pred_region
      %32 = dma.done [#allocation7], 4096
    $region21: #{lstm_model_forward.2} parent=1 // pred_fallthru
      _
    %p34 = scmp.eq.s32.totalorder 0, 0
    // Predicated region
    $region22: #{lstm_model_forward.2} parent=1 // pred_check
      %p35 = pneg %p34
    $region23: #{lstm_model_forward.2} parent=1 // pred_check_branch
      %37 = sbr.rel (%p35) target = $region25
    $region24: #{lstm_model_forward.2} parent=1 // pred_region
      %38 = vst [vmem:[#allocation2] sm:$0xff] 0.0
      %39 = vst [vmem:[#allocation3] sm:$0xff] 0.0
    $region25: #{lstm_model_forward.2} parent=1 // pred_fallthru
      _
    %v40 = vld [vmem:[%s0] sm:$0xf]
    %v41 = vld [vmem:[%s0 + $0x4] sm:$0xf]
    %v42 = vld [vmem:[%s0 + $0x8] sm:$0xf]
    %v43 = vld [vmem:[%s0 + $0xc] sm:$0xf]
    %v44 = vld [vmem:[%s0 + $0x10] sm:$0xf]
    %v45 = vld [vmem:[%s0 + $0x14] sm:$0xf]
    %v46 = vld [vmem:[%s0 + $0x18] sm:$0xf]
    %v47 = vld [vmem:[%s0 + $0x1c] sm:$0xf]
    %v48 = vld [vmem:[%s1] sm:$0xff]
    %v49 = vld [vmem:[%s1 + $0x8] sm:$0xff]
    %v50 = vld [vmem:[%s1 + $0x10] sm:$0xff]
    %v51 = vld [vmem:[%s1 + $0x18] sm:$0xff]
    %v52 = vld [vmem:[%s3] sm:$0xf]
    %v54 = vperm.slane %v52, 0
    %v55 = vperm.slane %v52, 1
    %v56 = vperm.slane %v52, 2
    %v57 = vperm.slane %v52, 3
    %v70 = vunpack.c.l.b16 %v40
    %v71 = vunpack.c.l.b16 %v41
    %v72 = vunpack.c.l.b16 %v42
    %v73 = vunpack.c.l.b16 %v43
    %v74 = vunpack.c.l.b16 %v44
    %v75 = vunpack.c.l.b16 %v45
    %v76 = vunpack.c.l.b16 %v46
    %v77 = vunpack.c.l.b16 %v47
    %v78 = vpack.c.b16 %v71, %v70
    %v79 = vpack.c.b16 %v73, %v72
    %v80 = vpack.c.b16 %v75, %v74
    %v81 = vpack.c.b16 %v77, %v76
    %v86 = vunpack.c.l.b16 %v48
    %v87 = vunpack.c.h.b16 %v48
    %v88 = vunpack.c.l.b16 %v49
    %v89 = vunpack.c.h.b16 %v49
    %v90 = vunpack.c.l.b16 %v50
    %v91 = vunpack.c.h.b16 %v50
    %v92 = vunpack.c.l.b16 %v51
    %v93 = vunpack.c.h.b16 %v51
    %v94 = vpack.c.b16 %v90, %v86
    %v95 = vpack.c.b16 %v91, %v87
    %v96 = vpack.c.b16 %v92, %v88
    %v97 = vpack.c.b16 %v93, %v89
    %vm102 = vcmask 130048
    %v104 = vsel %vm102, %v78, 0
    %v107 = vsel %vm102, %v79, 0
    %v110 = vsel %vm102, %v80, 0
    %v113 = vsel %vm102, %v81, 0
    %115 = vmatpush.bf16.msra.mxu0 0
    %116 = vmatpush.bf16.msra.mxu0 0
    %117 = vmatpush.bf16.msra.mxu0 0
    %118 = vmatpush.bf16.msra.mxu0 0
    %119 = vmatpush.bf16.msra.mxu0 0
    %120 = vmatpush.bf16.msra.mxu0 0
    %121 = vmatpush.bf16.msra.mxu0 0
    %122 = vmatpush.bf16.msra.mxu0 %v94
    %123 = vmatmul.bf16.gmra.mxu0 %v104
    %v124 = vpop.f32.mrf.mxu0
    %v125 = vadd.f32 %v54, %v124
    %v126 = vpop.f32.mrf.mxu0
    %v127 = vadd.f32 %v54, %v126
    %128 = vmatmul.bf16.gmra.mxu0 %v107
    %v129 = vpop.f32.mrf.mxu0
    %v130 = vadd.f32 %v54, %v129
    %v131 = vpop.f32.mrf.mxu0
    %v132 = vadd.f32 %v54, %v131
    %133 = vmatmul.bf16.gmra.mxu0 %v110
    %v134 = vpop.f32.mrf.mxu0
    %v135 = vadd.f32 %v54, %v134
    %v136 = vpop.f32.mrf.mxu0
    %v137 = vadd.f32 %v54, %v136
    %138 = vmatmul.bf16.gmra.mxu0 %v113
    %v139 = vpop.f32.mrf.mxu0
    %v140 = vadd.f32 %v54, %v139
    %v141 = vpop.f32.mrf.mxu0
    %v142 = vadd.f32 %v54, %v141
    %143 = vdwg.mxu0
    %144 = vmatpush.bf16.msra.mxu0 0
    %145 = vmatpush.bf16.msra.mxu0 0
    %146 = vmatpush.bf16.msra.mxu0 0
    %147 = vmatpush.bf16.msra.mxu0 0
    %148 = vmatpush.bf16.msra.mxu0 0
    %149 = vmatpush.bf16.msra.mxu0 0
    %150 = vmatpush.bf16.msra.mxu0 0
    %151 = vmatpush.bf16.msra.mxu0 %v95
    %152 = vmatmul.bf16.gmra.mxu0 %v104
    %v153 = vpop.f32.mrf.mxu0
    %v154 = vadd.f32 %v55, %v153
    %v155 = vpop.f32.mrf.mxu0
    %v156 = vadd.f32 %v55, %v155
    %157 = vmatmul.bf16.gmra.mxu0 %v107
    %v158 = vpop.f32.mrf.mxu0
    %v159 = vadd.f32 %v55, %v158
    %v160 = vpop.f32.mrf.mxu0
    %v161 = vadd.f32 %v55, %v160
    %162 = vmatmul.bf16.gmra.mxu0 %v110
    %v163 = vpop.f32.mrf.mxu0
    %v164 = vadd.f32 %v55, %v163
    %v165 = vpop.f32.mrf.mxu0
    %v166 = vadd.f32 %v55, %v165
    %167 = vmatmul.bf16.gmra.mxu0 %v113
    %v168 = vpop.f32.mrf.mxu0
    %v169 = vadd.f32 %v55, %v168
    %v170 = vpop.f32.mrf.mxu0
    %v171 = vadd.f32 %v55, %v170
    %172 = vdwg.mxu0
    %173 = vmatpush.bf16.msra.mxu0 0
    %174 = vmatpush.bf16.msra.mxu0 0
    %175 = vmatpush.bf16.msra.mxu0 0
    %176 = vmatpush.bf16.msra.mxu0 0
    %177 = vmatpush.bf16.msra.mxu0 0
    %178 = vmatpush.bf16.msra.mxu0 0
    %179 = vmatpush.bf16.msra.mxu0 0
    %180 = vmatpush.bf16.msra.mxu0 %v96
    %181 = vmatmul.bf16.gmra.mxu0 %v104
    %v182 = vpop.f32.mrf.mxu0
    %v183 = vadd.f32 %v56, %v182
    %v184 = vpop.f32.mrf.mxu0
    %v185 = vadd.f32 %v56, %v184
    %186 = vmatmul.bf16.gmra.mxu0 %v107
    %v187 = vpop.f32.mrf.mxu0
    %v188 = vadd.f32 %v56, %v187
    %v189 = vpop.f32.mrf.mxu0
    %v190 = vadd.f32 %v56, %v189
    %191 = vmatmul.bf16.gmra.mxu0 %v110
    %v192 = vpop.f32.mrf.mxu0
    %v193 = vadd.f32 %v56, %v192
    %v194 = vpop.f32.mrf.mxu0
    %v195 = vadd.f32 %v56, %v194
    %196 = vmatmul.bf16.gmra.mxu0 %v113
    %v197 = vpop.f32.mrf.mxu0
    %v198 = vadd.f32 %v56, %v197
    %v199 = vpop.f32.mrf.mxu0
    %v200 = vadd.f32 %v56, %v199
    %201 = vdwg.mxu0
    %202 = vmatpush.bf16.msra.mxu0 0
    %203 = vmatpush.bf16.msra.mxu0 0
    %204 = vmatpush.bf16.msra.mxu0 0
    %205 = vmatpush.bf16.msra.mxu0 0
    %206 = vmatpush.bf16.msra.mxu0 0
    %207 = vmatpush.bf16.msra.mxu0 0
    %208 = vmatpush.bf16.msra.mxu0 0
    %209 = vmatpush.bf16.msra.mxu0 %v97
    %210 = vmatmul.bf16.gmra.mxu0 %v104
    %v211 = vpop.f32.mrf.mxu0
    %v212 = vadd.f32 %v57, %v211
    %v213 = vpop.f32.mrf.mxu0
    %v214 = vadd.f32 %v57, %v213
    %215 = vmatmul.bf16.gmra.mxu0 %v107
    %v216 = vpop.f32.mrf.mxu0
    %v217 = vadd.f32 %v57, %v216
    %v218 = vpop.f32.mrf.mxu0
    %v219 = vadd.f32 %v57, %v218
    %220 = vmatmul.bf16.gmra.mxu0 %v110
    %v221 = vpop.f32.mrf.mxu0
    %v222 = vadd.f32 %v57, %v221
    %v223 = vpop.f32.mrf.mxu0
    %v224 = vadd.f32 %v57, %v223
    %225 = vmatmul.bf16.gmra.mxu0 %v113
    %v226 = vpop.f32.mrf.mxu0
    %v227 = vadd.f32 %v57, %v226
    %v228 = vpop.f32.mrf.mxu0
    %v229 = vadd.f32 %v57, %v228
    %230 = vdwg.mxu0
    %231 = vst [vmem:[#allocation4] sm:$0xff] %v125
    %232 = vst [vmem:[#allocation4 + $0x8] sm:$0xff] %v154
    %233 = vst [vmem:[#allocation4 + $0x10] sm:$0xff] %v183
    %234 = vst [vmem:[#allocation4 + $0x18] sm:$0xff] %v212
    %235 = vst [vmem:[#allocation4 + $0x20] sm:$0xff] %v127
    %236 = vst [vmem:[#allocation4 + $0x28] sm:$0xff] %v156
    %237 = vst [vmem:[#allocation4 + $0x30] sm:$0xff] %v185
    %238 = vst [vmem:[#allocation4 + $0x38] sm:$0xff] %v214
    %239 = vst [vmem:[#allocation4 + $0x40] sm:$0xff] %v130
    %240 = vst [vmem:[#allocation4 + $0x48] sm:$0xff] %v159
    %241 = vst [vmem:[#allocation4 + $0x50] sm:$0xff] %v188
    %242 = vst [vmem:[#allocation4 + $0x58] sm:$0xff] %v217
    %243 = vst [vmem:[#allocation4 + $0x60] sm:$0xff] %v132
    %244 = vst [vmem:[#allocation4 + $0x68] sm:$0xff] %v161
    %245 = vst [vmem:[#allocation4 + $0x70] sm:$0xff] %v190
    %246 = vst [vmem:[#allocation4 + $0x78] sm:$0xff] %v219
    %247 = vst [vmem:[#allocation4 + $0x80] sm:$0xff] %v135
    %248 = vst [vmem:[#allocation4 + $0x88] sm:$0xff] %v164
    %249 = vst [vmem:[#allocation4 + $0x90] sm:$0xff] %v193
    %250 = vst [vmem:[#allocation4 + $0x98] sm:$0xff] %v222
    %251 = vst [vmem:[#allocation4 + $0xa0] sm:$0xff] %v137
    %252 = vst [vmem:[#allocation4 + $0xa8] sm:$0xff] %v166
    %253 = vst [vmem:[#allocation4 + $0xb0] sm:$0xff] %v195
    %254 = vst [vmem:[#allocation4 + $0xb8] sm:$0xff] %v224
    %255 = vst [vmem:[#allocation4 + $0xc0] sm:$0xff] %v140
    %256 = vst [vmem:[#allocation4 + $0xc8] sm:$0xff] %v169
    %257 = vst [vmem:[#allocation4 + $0xd0] sm:$0xff] %v198
    %258 = vst [vmem:[#allocation4 + $0xd8] sm:$0xff] %v227
    %259 = vst [vmem:[#allocation4 + $0xe0] sm:$0xff] %v142
    %260 = vst [vmem:[#allocation4 + $0xe8] sm:$0xff] %v171
    %261 = vst [vmem:[#allocation4 + $0xf0] sm:$0xff] %v200
    %262 = vst [vmem:[#allocation4 + $0xf8] sm:$0xff] %v229
    %v263 = vld [vmem:[#allocation6] sm:$0xff]
    %v264 = vld [vmem:[#allocation6 + $0x8] sm:$0xff]
    %v265 = vld [vmem:[#allocation6 + $0x10] sm:$0xff]
    %v266 = vld [vmem:[#allocation6 + $0x18] sm:$0xff]
    %v267 = vld [vmem:[#allocation6 + $0x20] sm:$0xff]
    %v268 = vld [vmem:[#allocation6 + $0x28] sm:$0xff]
    %v269 = vld [vmem:[#allocation6 + $0x30] sm:$0xff]
    %v270 = vld [vmem:[#allocation6 + $0x38] sm:$0xff]
    %v271 = vld [vmem:[#allocation6 + $0x40] sm:$0xff]
    %v272 = vld [vmem:[#allocation6 + $0x48] sm:$0xff]
    %v273 = vld [vmem:[#allocation6 + $0x50] sm:$0xff]
    %v274 = vld [vmem:[#allocation6 + $0x58] sm:$0xff]
    %v275 = vld [vmem:[#allocation6 + $0x60] sm:$0xff]
    %v276 = vld [vmem:[#allocation6 + $0x68] sm:$0xff]
    %v277 = vld [vmem:[#allocation6 + $0x70] sm:$0xff]
    %v278 = vld [vmem:[#allocation6 + $0x78] sm:$0xff]
    %v279 = vld [vmem:[#allocation6 + $0x80] sm:$0xff]
    %v280 = vld [vmem:[#allocation6 + $0x88] sm:$0xff]
    %v281 = vld [vmem:[#allocation6 + $0x90] sm:$0xff]
    %v282 = vld [vmem:[#allocation6 + $0x98] sm:$0xff]
    %v283 = vld [vmem:[#allocation6 + $0xa0] sm:$0xff]
    %v284 = vld [vmem:[#allocation6 + $0xa8] sm:$0xff]
    %v285 = vld [vmem:[#allocation6 + $0xb0] sm:$0xff]
    %v286 = vld [vmem:[#allocation6 + $0xb8] sm:$0xff]
    %v287 = vld [vmem:[#allocation6 + $0xc0] sm:$0xff]
    %v288 = vld [vmem:[#allocation6 + $0xc8] sm:$0xff]
    %v289 = vld [vmem:[#allocation6 + $0xd0] sm:$0xff]
    %v290 = vld [vmem:[#allocation6 + $0xd8] sm:$0xff]
    %v291 = vld [vmem:[#allocation6 + $0xe0] sm:$0xff]
    %v292 = vld [vmem:[#allocation6 + $0xe8] sm:$0xff]
    %v293 = vld [vmem:[#allocation6 + $0xf0] sm:$0xff]
    %v294 = vld [vmem:[#allocation6 + $0xf8] sm:$0xff]
    %v295 = vld [vmem:[#allocation2] sm:$0xff]
    %v296 = vld [vmem:[#allocation3] sm:$0xff]
    %s297 = smul.u32 0, 4
    %s298 = smul.addr %s297, 8
    %s299 = scalar_lea.vmem [#allocation4], %s298
    %v300 = vld [vmem:[%s299] sm:$0xff]
    %v301 = vld [vmem:[%s299 + $0x8] sm:$0xff]
    %v302 = vld [vmem:[%s299 + $0x10] sm:$0xff]
    %v303 = vld [vmem:[%s299 + $0x18] sm:$0xff]
    %v304 = vpack.c.bf16 %v295, %v295
    %v337 = vunpack.c.l.b16 %v263
    %v338 = vunpack.c.h.b16 %v263
    %v339 = vunpack.c.l.b16 %v264
    %v340 = vunpack.c.h.b16 %v264
    %v341 = vunpack.c.l.b16 %v265
    %v342 = vunpack.c.h.b16 %v265
    %v343 = vunpack.c.l.b16 %v266
    %v344 = vunpack.c.h.b16 %v266
    %v345 = vunpack.c.l.b16 %v267
    %v346 = vunpack.c.h.b16 %v267
    %v347 = vunpack.c.l.b16 %v268
    %v348 = vunpack.c.h.b16 %v268
    %v349 = vunpack.c.l.b16 %v269
    %v350 = vunpack.c.h.b16 %v269
    %v351 = vunpack.c.l.b16 %v270
    %v352 = vunpack.c.h.b16 %v270
    %v353 = vunpack.c.l.b16 %v271
    %v354 = vunpack.c.h.b16 %v271
    %v355 = vunpack.c.l.b16 %v272
    %v356 = vunpack.c.h.b16 %v272
    %v357 = vunpack.c.l.b16 %v273
    %v358 = vunpack.c.h.b16 %v273
    %v359 = vunpack.c.l.b16 %v274
    %v360 = vunpack.c.h.b16 %v274
    %v361 = vunpack.c.l.b16 %v275
    %v362 = vunpack.c.h.b16 %v275
    %v363 = vunpack.c.l.b16 %v276
    %v364 = vunpack.c.h.b16 %v276
    %v365 = vunpack.c.l.b16 %v277
    %v366 = vunpack.c.h.b16 %v277
    %v367 = vunpack.c.l.b16 %v278
    %v368 = vunpack.c.h.b16 %v278
    %v369 = vunpack.c.l.b16 %v279
    %v370 = vunpack.c.h.b16 %v279
    %v371 = vunpack.c.l.b16 %v280
    %v372 = vunpack.c.h.b16 %v280
    %v373 = vunpack.c.l.b16 %v281
    %v374 = vunpack.c.h.b16 %v281
    %v375 = vunpack.c.l.b16 %v282
    %v376 = vunpack.c.h.b16 %v282
    %v377 = vunpack.c.l.b16 %v283
    %v378 = vunpack.c.h.b16 %v283
    %v379 = vunpack.c.l.b16 %v284
    %v380 = vunpack.c.h.b16 %v284
    %v381 = vunpack.c.l.b16 %v285
    %v382 = vunpack.c.h.b16 %v285
    %v383 = vunpack.c.l.b16 %v286
    %v384 = vunpack.c.h.b16 %v286
    %v385 = vunpack.c.l.b16 %v287
    %v386 = vunpack.c.h.b16 %v287
    %v387 = vunpack.c.l.b16 %v288
    %v388 = vunpack.c.h.b16 %v288
    %v389 = vunpack.c.l.b16 %v289
    %v390 = vunpack.c.h.b16 %v289
    %v391 = vunpack.c.l.b16 %v290
    %v392 = vunpack.c.h.b16 %v290
    %v393 = vunpack.c.l.b16 %v291
    %v394 = vunpack.c.h.b16 %v291
    %v395 = vunpack.c.l.b16 %v292
    %v396 = vunpack.c.h.b16 %v292
    %v397 = vunpack.c.l.b16 %v293
    %v398 = vunpack.c.h.b16 %v293
    %v399 = vunpack.c.l.b16 %v294
    %v400 = vunpack.c.h.b16 %v294
    %v401 = vpack.c.b16 %v341, %v337
    %v402 = vpack.c.b16 %v342, %v338
    %v403 = vpack.c.b16 %v343, %v339
    %v404 = vpack.c.b16 %v344, %v340
    %v405 = vpack.c.b16 %v349, %v345
    %v406 = vpack.c.b16 %v350, %v346
    %v407 = vpack.c.b16 %v351, %v347
    %v408 = vpack.c.b16 %v352, %v348
    %v409 = vpack.c.b16 %v357, %v353
    %v410 = vpack.c.b16 %v358, %v354
    %v411 = vpack.c.b16 %v359, %v355
    %v412 = vpack.c.b16 %v360, %v356
    %v413 = vpack.c.b16 %v365, %v361
    %v414 = vpack.c.b16 %v366, %v362
    %v415 = vpack.c.b16 %v367, %v363
    %v416 = vpack.c.b16 %v368, %v364
    %v417 = vpack.c.b16 %v373, %v369
    %v418 = vpack.c.b16 %v374, %v370
    %v419 = vpack.c.b16 %v375, %v371
    %v420 = vpack.c.b16 %v376, %v372
    %v421 = vpack.c.b16 %v381, %v377
    %v422 = vpack.c.b16 %v382, %v378
    %v423 = vpack.c.b16 %v383, %v379
    %v424 = vpack.c.b16 %v384, %v380
    %v425 = vpack.c.b16 %v389, %v385
    %v426 = vpack.c.b16 %v390, %v386
    %v427 = vpack.c.b16 %v391, %v387
    %v428 = vpack.c.b16 %v392, %v388
    %v429 = vpack.c.b16 %v397, %v393
    %v430 = vpack.c.b16 %v398, %v394
    %v431 = vpack.c.b16 %v399, %v395
    %v432 = vpack.c.b16 %v400, %v396
    %465 = vmatpush.bf16.msra.mxu0 %v429
    %466 = vmatpush.bf16.msra.mxu0 %v425
    %467 = vmatpush.bf16.msra.mxu0 %v421
    %468 = vmatpush.bf16.msra.mxu0 %v417
    %469 = vmatpush.bf16.msra.mxu0 %v413
    %470 = vmatpush.bf16.msra.mxu0 %v409
    %471 = vmatpush.bf16.msra.mxu0 %v405
    %472 = vmatpush.bf16.msra.mxu0 %v401
    %473 = vmatmul.bf16.gmra.mxu0 %v304
    %v474 = vpop.f32.mrf.mxu0
    %v475 = vadd.f32 0.0, %v474
    %v476 = vpop.f32.mrf.mxu0
    %477 = vdwg.mxu0
    %478 = vmatpush.bf16.msra.mxu0 %v430
    %479 = vmatpush.bf16.msra.mxu0 %v426
    %480 = vmatpush.bf16.msra.mxu0 %v422
    %481 = vmatpush.bf16.msra.mxu0 %v418
    %482 = vmatpush.bf16.msra.mxu0 %v414
    %483 = vmatpush.bf16.msra.mxu0 %v410
    %484 = vmatpush.bf16.msra.mxu0 %v406
    %485 = vmatpush.bf16.msra.mxu0 %v402
    %486 = vmatmul.bf16.gmra.mxu0 %v304
    %v487 = vpop.f32.mrf.mxu0
    %v488 = vadd.f32 0.0, %v487
    %v489 = vpop.f32.mrf.mxu0
    %490 = vdwg.mxu0
    %491 = vmatpush.bf16.msra.mxu0 %v431
    %492 = vmatpush.bf16.msra.mxu0 %v427
    %493 = vmatpush.bf16.msra.mxu0 %v423
    %494 = vmatpush.bf16.msra.mxu0 %v419
    %495 = vmatpush.bf16.msra.mxu0 %v415
    %496 = vmatpush.bf16.msra.mxu0 %v411
    %497 = vmatpush.bf16.msra.mxu0 %v407
    %498 = vmatpush.bf16.msra.mxu0 %v403
    %499 = vmatmul.bf16.gmra.mxu0 %v304
    %v500 = vpop.f32.mrf.mxu0
    %v501 = vadd.f32 0.0, %v500
    %v502 = vpop.f32.mrf.mxu0
    %503 = vdwg.mxu0
    %504 = vmatpush.bf16.msra.mxu0 %v432
    %505 = vmatpush.bf16.msra.mxu0 %v428
    %506 = vmatpush.bf16.msra.mxu0 %v424
    %507 = vmatpush.bf16.msra.mxu0 %v420
    %508 = vmatpush.bf16.msra.mxu0 %v416
    %509 = vmatpush.bf16.msra.mxu0 %v412
    %510 = vmatpush.bf16.msra.mxu0 %v408
    %511 = vmatpush.bf16.msra.mxu0 %v404
    %512 = vmatmul.bf16.gmra.mxu0 %v304
    %v513 = vpop.f32.mrf.mxu0
    %v514 = vadd.f32 0.0, %v513
    %v515 = vpop.f32.mrf.mxu0
    %516 = vdwg.mxu0
    %v517 = vadd.f32 %v300, %v475
    %v518 = vadd.f32 %v301, %v488
    %v519 = vadd.f32 %v302, %v501
    %v520 = vadd.f32 %v303, %v514
    %v521 = vxor.u32 %v517, 2147483648
    %v522 = vxor.u32 %v518, 2147483648
    %v523 = vxor.u32 %v519, 2147483648
    %v524 = vmul.f32 %v521, 1.442695
    %v525 = vpow.pop %v524
    %v526 = vmul.f32 %v522, 1.442695
    %v527 = vpow.pop %v526
    %v528 = vmul.f32 %v523, 1.442695
    %v529 = vpow.pop %v528
    %v530 = vadd.f32 %v525, 1.0
    %v531 = vadd.f32 %v527, 1.0
    %v532 = vadd.f32 %v529, 1.0
    %v533 = vrcp.pop %v530
    %v534 = vmul.f32 %v530, %v533
    %v535 = vsub.f32 1.0, %v534
    %v536 = vmul.f32 %v533, %v535
    %v537 = vadd.f32 %v533, %v536
    %vm538 = vweird.f32 %v530
    %vm539 = vweird.f32 %v533
    %vm540 = vmor %vm538, %vm539
    %v541 = vsel %vm540, %v533, %v537
    %v542 = vand.u32 2147483647, %v530
    %vm543 = vcmp.eq.f32.partialorder %v542, 8.507059e+37
    %v544 = vand.u32 %v530, 2147483648
    %v545 = vor.u32 1.1754944e-38, %v544
    %v546 = vsel %vm543, %v545, %v541
    %v547 = vmul.f32 1.0, %v546
    %v548 = vrcp.pop %v531
    %v549 = vmul.f32 %v531, %v548
    %v550 = vsub.f32 1.0, %v549
    %v551 = vmul.f32 %v548, %v550
    %v552 = vadd.f32 %v548, %v551
    %vm553 = vweird.f32 %v531
    %vm554 = vweird.f32 %v548
    %vm555 = vmor %vm553, %vm554
    %v556 = vsel %vm555, %v548, %v552
    %v557 = vand.u32 2147483647, %v531
    %vm558 = vcmp.eq.f32.partialorder %v557, 8.507059e+37
    %v559 = vand.u32 %v531, 2147483648
    %v560 = vor.u32 1.1754944e-38, %v559
    %v561 = vsel %vm558, %v560, %v556
    %v562 = vmul.f32 1.0, %v561
    %v563 = vrcp.pop %v532
    %v564 = vmul.f32 %v532, %v563
    %v565 = vsub.f32 1.0, %v564
    %v566 = vmul.f32 %v563, %v565
    %v567 = vadd.f32 %v563, %v566
    %vm568 = vweird.f32 %v532
    %vm569 = vweird.f32 %v563
    %vm570 = vmor %vm568, %vm569
    %v571 = vsel %vm570, %v563, %v567
    %v572 = vand.u32 2147483647, %v532
    %vm573 = vcmp.eq.f32.partialorder %v572, 8.507059e+37
    %v574 = vand.u32 %v532, 2147483648
    %v575 = vor.u32 1.1754944e-38, %v574
    %v576 = vsel %vm573, %v575, %v571
    %v577 = vmul.f32 1.0, %v576
    %v578 = vtanh.pop %v520
    %v579 = vmul.f32 %v562, %v296
    %v580 = vmul.f32 %v547, %v578
    %v581 = vadd.f32 %v579, %v580
    %v582 = vtanh.pop %v581
    %v583 = vmul.f32 %v577, %v582
    %584 = vst [vmem:[#allocation5] sm:$0xff] %v583
    %s585 = smul.u32 1, 4
    %s586 = smul.addr %s585, 8
    %s587 = scalar_lea.vmem [#allocation4], %s586
    %v588 = vld [vmem:[%s587] sm:$0xff]
    %v589 = vld [vmem:[%s587 + $0x8] sm:$0xff]
    %v590 = vld [vmem:[%s587 + $0x10] sm:$0xff]
    %v591 = vld [vmem:[%s587 + $0x18] sm:$0xff]
    %v592 = vpack.c.bf16 %v583, %v583
    %593 = vmatpush.bf16.msra.mxu0 %v429
    %594 = vmatpush.bf16.msra.mxu0 %v425
    %595 = vmatpush.bf16.msra.mxu0 %v421
    %596 = vmatpush.bf16.msra.mxu0 %v417
    %597 = vmatpush.bf16.msra.mxu0 %v413
    %598 = vmatpush.bf16.msra.mxu0 %v409
    %599 = vmatpush.bf16.msra.mxu0 %v405
    %600 = vmatpush.bf16.msra.mxu0 %v401
    %601 = vmatmul.bf16.gmra.mxu0 %v592
    %v602 = vpop.f32.mrf.mxu0
    %v603 = vadd.f32 0.0, %v602
    %v604 = vpop.f32.mrf.mxu0
    %605 = vdwg.mxu0
    %606 = vmatpush.bf16.msra.mxu0 %v430
    %607 = vmatpush.bf16.msra.mxu0 %v426
    %608 = vmatpush.bf16.msra.mxu0 %v422
    %609 = vmatpush.bf16.msra.mxu0 %v418
    %610 = vmatpush.bf16.msra.mxu0 %v414
    %611 = vmatpush.bf16.msra.mxu0 %v410
    %612 = vmatpush.bf16.msra.mxu0 %v406
    %613 = vmatpush.bf16.msra.mxu0 %v402
    %614 = vmatmul.bf16.gmra.mxu0 %v592
    %v615 = vpop.f32.mrf.mxu0
    %v616 = vadd.f32 0.0, %v615
    %v617 = vpop.f32.mrf.mxu0
    %618 = vdwg.mxu0
    %619 = vmatpush.bf16.msra.mxu0 %v431
    %620 = vmatpush.bf16.msra.mxu0 %v427
    %621 = vmatpush.bf16.msra.mxu0 %v423
    %622 = vmatpush.bf16.msra.mxu0 %v419
    %623 = vmatpush.bf16.msra.mxu0 %v415
    %624 = vmatpush.bf16.msra.mxu0 %v411
    %625 = vmatpush.bf16.msra.mxu0 %v407
    %626 = vmatpush.bf16.msra.mxu0 %v403
    %627 = vmatmul.bf16.gmra.mxu0 %v592
    %v628 = vpop.f32.mrf.mxu0
    %v629 = vadd.f32 0.0, %v628
    %v630 = vpop.f32.mrf.mxu0
    %631 = vdwg.mxu0
    %632 = vmatpush.bf16.msra.mxu0 %v432
    %633 = vmatpush.bf16.msra.mxu0 %v428
    %634 = vmatpush.bf16.msra.mxu0 %v424
    %635 = vmatpush.bf16.msra.mxu0 %v420
    %636 = vmatpush.bf16.msra.mxu0 %v416
    %637 = vmatpush.bf16.msra.mxu0 %v412
    %638 = vmatpush.bf16.msra.mxu0 %v408
    %639 = vmatpush.bf16.msra.mxu0 %v404
    %640 = vmatmul.bf16.gmra.mxu0 %v592
    %v641 = vpop.f32.mrf.mxu0
    %v642 = vadd.f32 0.0, %v641
    %v643 = vpop.f32.mrf.mxu0
    %644 = vdwg.mxu0
    %v645 = vadd.f32 %v588, %v603
    %v646 = vadd.f32 %v589, %v616
    %v647 = vadd.f32 %v590, %v629
    %v648 = vadd.f32 %v591, %v642
    %v649 = vxor.u32 %v645, 2147483648
    %v650 = vxor.u32 %v646, 2147483648
    %v651 = vxor.u32 %v647, 2147483648
    %v652 = vmul.f32 %v649, 1.442695
    %v653 = vpow.pop %v652
    %v654 = vmul.f32 %v650, 1.442695
    %v655 = vpow.pop %v654
    %v656 = vmul.f32 %v651, 1.442695
    %v657 = vpow.pop %v656
    %v658 = vadd.f32 %v653, 1.0
    %v659 = vadd.f32 %v655, 1.0
    %v660 = vadd.f32 %v657, 1.0
    %v661 = vrcp.pop %v658
    %v662 = vmul.f32 %v658, %v661
    %v663 = vsub.f32 1.0, %v662
    %v664 = vmul.f32 %v661, %v663
    %v665 = vadd.f32 %v661, %v664
    %vm666 = vweird.f32 %v658
    %vm667 = vweird.f32 %v661
    %vm668 = vmor %vm666, %vm667
    %v669 = vsel %vm668, %v661, %v665
    %v670 = vand.u32 2147483647, %v658
    %vm671 = vcmp.eq.f32.partialorder %v670, 8.507059e+37
    %v672 = vand.u32 %v658, 2147483648
    %v673 = vor.u32 1.1754944e-38, %v672
    %v674 = vsel %vm671, %v673, %v669
    %v675 = vmul.f32 1.0, %v674
    %v676 = vrcp.pop %v659
    %v677 = vmul.f32 %v659, %v676
    %v678 = vsub.f32 1.0, %v677
    %v679 = vmul.f32 %v676, %v678
    %v680 = vadd.f32 %v676, %v679
    %vm681 = vweird.f32 %v659
    %vm682 = vweird.f32 %v676
    %vm683 = vmor %vm681, %vm682
    %v684 = vsel %vm683, %v676, %v680
    %v685 = vand.u32 2147483647, %v659
    %vm686 = vcmp.eq.f32.partialorder %v685, 8.507059e+37
    %v687 = vand.u32 %v659, 2147483648
    %v688 = vor.u32 1.1754944e-38, %v687
    %v689 = vsel %vm686, %v688, %v684
    %v690 = vmul.f32 1.0, %v689
    %v691 = vrcp.pop %v660
    %v692 = vmul.f32 %v660, %v691
    %v693 = vsub.f32 1.0, %v692
    %v694 = vmul.f32 %v691, %v693
    %v695 = vadd.f32 %v691, %v694
    %vm696 = vweird.f32 %v660
    %vm697 = vweird.f32 %v691
    %vm698 = vmor %vm696, %vm697
    %v699 = vsel %vm698, %v691, %v695
    %v700 = vand.u32 2147483647, %v660
    %vm701 = vcmp.eq.f32.partialorder %v700, 8.507059e+37
    %v702 = vand.u32 %v660, 2147483648
    %v703 = vor.u32 1.1754944e-38, %v702
    %v704 = vsel %vm701, %v703, %v699
    %v705 = vmul.f32 1.0, %v704
    %v706 = vtanh.pop %v648
    %v707 = vmul.f32 %v690, %v581
    %v708 = vmul.f32 %v675, %v706
    %v709 = vadd.f32 %v707, %v708
    %v710 = vtanh.pop %v709
    %v711 = vmul.f32 %v705, %v710
    %s712 = scalar_lea.vmem [#allocation5], 8
    %713 = vst [vmem:[%s712] sm:$0xff] %v711
    %s714 = smul.u32 2, 4
    %s715 = smul.addr %s714, 8
    %s716 = scalar_lea.vmem [#allocation4], %s715
    %v717 = vld [vmem:[%s716] sm:$0xff]
    %v718 = vld [vmem:[%s716 + $0x8] sm:$0xff]
    %v719 = vld [vmem:[%s716 + $0x10] sm:$0xff]
    %v720 = vld [vmem:[%s716 + $0x18] sm:$0xff]
    %v721 = vpack.c.bf16 %v711, %v711
    %722 = vmatpush.bf16.msra.mxu0 %v429
    %723 = vmatpush.bf16.msra.mxu0 %v425
    %724 = vmatpush.bf16.msra.mxu0 %v421
    %725 = vmatpush.bf16.msra.mxu0 %v417
    %726 = vmatpush.bf16.msra.mxu0 %v413
    %727 = vmatpush.bf16.msra.mxu0 %v409
    %728 = vmatpush.bf16.msra.mxu0 %v405
    %729 = vmatpush.bf16.msra.mxu0 %v401
    %730 = vmatmul.bf16.gmra.mxu0 %v721
    %v731 = vpop.f32.mrf.mxu0
    %v732 = vadd.f32 0.0, %v731
    %v733 = vpop.f32.mrf.mxu0
    %734 = vdwg.mxu0
    %735 = vmatpush.bf16.msra.mxu0 %v430
    %736 = vmatpush.bf16.msra.mxu0 %v426
    %737 = vmatpush.bf16.msra.mxu0 %v422
    %738 = vmatpush.bf16.msra.mxu0 %v418
    %739 = vmatpush.bf16.msra.mxu0 %v414
    %740 = vmatpush.bf16.msra.mxu0 %v410
    %741 = vmatpush.bf16.msra.mxu0 %v406
    %742 = vmatpush.bf16.msra.mxu0 %v402
    %743 = vmatmul.bf16.gmra.mxu0 %v721
    %v744 = vpop.f32.mrf.mxu0
    %v745 = vadd.f32 0.0, %v744
    %v746 = vpop.f32.mrf.mxu0
    %747 = vdwg.mxu0
    %748 = vmatpush.bf16.msra.mxu0 %v431
    %749 = vmatpush.bf16.msra.mxu0 %v427
    %750 = vmatpush.bf16.msra.mxu0 %v423
    %751 = vmatpush.bf16.msra.mxu0 %v419
    %752 = vmatpush.bf16.msra.mxu0 %v415
    %753 = vmatpush.bf16.msra.mxu0 %v411
    %754 = vmatpush.bf16.msra.mxu0 %v407
    %755 = vmatpush.bf16.msra.mxu0 %v403
    %756 = vmatmul.bf16.gmra.mxu0 %v721
    %v757 = vpop.f32.mrf.mxu0
    %v758 = vadd.f32 0.0, %v757
    %v759 = vpop.f32.mrf.mxu0
    %760 = vdwg.mxu0
    %761 = vmatpush.bf16.msra.mxu0 %v432
    %762 = vmatpush.bf16.msra.mxu0 %v428
    %763 = vmatpush.bf16.msra.mxu0 %v424
    %764 = vmatpush.bf16.msra.mxu0 %v420
    %765 = vmatpush.bf16.msra.mxu0 %v416
    %766 = vmatpush.bf16.msra.mxu0 %v412
    %767 = vmatpush.bf16.msra.mxu0 %v408
    %768 = vmatpush.bf16.msra.mxu0 %v404
    %769 = vmatmul.bf16.gmra.mxu0 %v721
    %v770 = vpop.f32.mrf.mxu0
    %v771 = vadd.f32 0.0, %v770
    %v772 = vpop.f32.mrf.mxu0
    %773 = vdwg.mxu0
    %v774 = vadd.f32 %v717, %v732
    %v775 = vadd.f32 %v718, %v745
    %v776 = vadd.f32 %v719, %v758
    %v777 = vadd.f32 %v720, %v771
    %v778 = vxor.u32 %v774, 2147483648
    %v779 = vxor.u32 %v775, 2147483648
    %v780 = vxor.u32 %v776, 2147483648
    %v781 = vmul.f32 %v778, 1.442695
    %v782 = vpow.pop %v781
    %v783 = vmul.f32 %v779, 1.442695
    %v784 = vpow.pop %v783
    %v785 = vmul.f32 %v780, 1.442695
    %v786 = vpow.pop %v785
    %v787 = vadd.f32 %v782, 1.0
    %v788 = vadd.f32 %v784, 1.0
    %v789 = vadd.f32 %v786, 1.0
    %v790 = vrcp.pop %v787
    %v791 = vmul.f32 %v787, %v790
    %v792 = vsub.f32 1.0, %v791
    %v793 = vmul.f32 %v790, %v792
    %v794 = vadd.f32 %v790, %v793
    %vm795 = vweird.f32 %v787
    %vm796 = vweird.f32 %v790
    %vm797 = vmor %vm795, %vm796
    %v798 = vsel %vm797, %v790, %v794
    %v799 = vand.u32 2147483647, %v787
    %vm800 = vcmp.eq.f32.partialorder %v799, 8.507059e+37
    %v801 = vand.u32 %v787, 2147483648
    %v802 = vor.u32 1.1754944e-38, %v801
    %v803 = vsel %vm800, %v802, %v798
    %v804 = vmul.f32 1.0, %v803
    %v805 = vrcp.pop %v788
    %v806 = vmul.f32 %v788, %v805
    %v807 = vsub.f32 1.0, %v806
    %v808 = vmul.f32 %v805, %v807
    %v809 = vadd.f32 %v805, %v808
    %vm810 = vweird.f32 %v788
    %vm811 = vweird.f32 %v805
    %vm812 = vmor %vm810, %vm811
    %v813 = vsel %vm812, %v805, %v809
    %v814 = vand.u32 2147483647, %v788
    %vm815 = vcmp.eq.f32.partialorder %v814, 8.507059e+37
    %v816 = vand.u32 %v788, 2147483648
    %v817 = vor.u32 1.1754944e-38, %v816
    %v818 = vsel %vm815, %v817, %v813
    %v819 = vmul.f32 1.0, %v818
    %v820 = vrcp.pop %v789
    %v821 = vmul.f32 %v789, %v820
    %v822 = vsub.f32 1.0, %v821
    %v823 = vmul.f32 %v820, %v822
    %v824 = vadd.f32 %v820, %v823
    %vm825 = vweird.f32 %v789
    %vm826 = vweird.f32 %v820
    %vm827 = vmor %vm825, %vm826
    %v828 = vsel %vm827, %v820, %v824
    %v829 = vand.u32 2147483647, %v789
    %vm830 = vcmp.eq.f32.partialorder %v829, 8.507059e+37
    %v831 = vand.u32 %v789, 2147483648
    %v832 = vor.u32 1.1754944e-38, %v831
    %v833 = vsel %vm830, %v832, %v828
    %v834 = vmul.f32 1.0, %v833
    %v835 = vtanh.pop %v777
    %v836 = vmul.f32 %v819, %v709
    %v837 = vmul.f32 %v804, %v835
    %v838 = vadd.f32 %v836, %v837
    %v839 = vtanh.pop %v838
    %v840 = vmul.f32 %v834, %v839
    %s841 = scalar_lea.vmem [#allocation5], 16
    %842 = vst [vmem:[%s841] sm:$0xff] %v840
    %s843 = smul.u32 3, 4
    %s844 = smul.addr %s843, 8
    %s845 = scalar_lea.vmem [#allocation4], %s844
    %v846 = vld [vmem:[%s845] sm:$0xff]
    %v847 = vld [vmem:[%s845 + $0x8] sm:$0xff]
    %v848 = vld [vmem:[%s845 + $0x10] sm:$0xff]
    %v849 = vld [vmem:[%s845 + $0x18] sm:$0xff]
    %v850 = vpack.c.bf16 %v840, %v840
    %851 = vmatpush.bf16.msra.mxu0 %v429
    %852 = vmatpush.bf16.msra.mxu0 %v425
    %853 = vmatpush.bf16.msra.mxu0 %v421
    %854 = vmatpush.bf16.msra.mxu0 %v417
    %855 = vmatpush.bf16.msra.mxu0 %v413
    %856 = vmatpush.bf16.msra.mxu0 %v409
    %857 = vmatpush.bf16.msra.mxu0 %v405
    %858 = vmatpush.bf16.msra.mxu0 %v401
    %859 = vmatmul.bf16.gmra.mxu0 %v850
    %v860 = vpop.f32.mrf.mxu0
    %v861 = vadd.f32 0.0, %v860
    %v862 = vpop.f32.mrf.mxu0
    %863 = vdwg.mxu0
    %864 = vmatpush.bf16.msra.mxu0 %v430
    %865 = vmatpush.bf16.msra.mxu0 %v426
    %866 = vmatpush.bf16.msra.mxu0 %v422
    %867 = vmatpush.bf16.msra.mxu0 %v418
    %868 = vmatpush.bf16.msra.mxu0 %v414
    %869 = vmatpush.bf16.msra.mxu0 %v410
    %870 = vmatpush.bf16.msra.mxu0 %v406
    %871 = vmatpush.bf16.msra.mxu0 %v402
    %872 = vmatmul.bf16.gmra.mxu0 %v850
    %v873 = vpop.f32.mrf.mxu0
    %v874 = vadd.f32 0.0, %v873
    %v875 = vpop.f32.mrf.mxu0
    %876 = vdwg.mxu0
    %877 = vmatpush.bf16.msra.mxu0 %v431
    %878 = vmatpush.bf16.msra.mxu0 %v427
    %879 = vmatpush.bf16.msra.mxu0 %v423
    %880 = vmatpush.bf16.msra.mxu0 %v419
    %881 = vmatpush.bf16.msra.mxu0 %v415
    %882 = vmatpush.bf16.msra.mxu0 %v411
    %883 = vmatpush.bf16.msra.mxu0 %v407
    %884 = vmatpush.bf16.msra.mxu0 %v403
    %885 = vmatmul.bf16.gmra.mxu0 %v850
    %v886 = vpop.f32.mrf.mxu0
    %v887 = vadd.f32 0.0, %v886
    %v888 = vpop.f32.mrf.mxu0
    %889 = vdwg.mxu0
    %890 = vmatpush.bf16.msra.mxu0 %v432
    %891 = vmatpush.bf16.msra.mxu0 %v428
    %892 = vmatpush.bf16.msra.mxu0 %v424
    %893 = vmatpush.bf16.msra.mxu0 %v420
    %894 = vmatpush.bf16.msra.mxu0 %v416
    %895 = vmatpush.bf16.msra.mxu0 %v412
    %896 = vmatpush.bf16.msra.mxu0 %v408
    %897 = vmatpush.bf16.msra.mxu0 %v404
    %898 = vmatmul.bf16.gmra.mxu0 %v850
    %v899 = vpop.f32.mrf.mxu0
    %v900 = vadd.f32 0.0, %v899
    %v901 = vpop.f32.mrf.mxu0
    %902 = vdwg.mxu0
    %v903 = vadd.f32 %v846, %v861
    %v904 = vadd.f32 %v847, %v874
    %v905 = vadd.f32 %v848, %v887
    %v906 = vadd.f32 %v849, %v900
    %v907 = vxor.u32 %v903, 2147483648
    %v908 = vxor.u32 %v904, 2147483648
    %v909 = vxor.u32 %v905, 2147483648
    %v910 = vmul.f32 %v907, 1.442695
    %v911 = vpow.pop %v910
    %v912 = vmul.f32 %v908, 1.442695
    %v913 = vpow.pop %v912
    %v914 = vmul.f32 %v909, 1.442695
    %v915 = vpow.pop %v914
    %v916 = vadd.f32 %v911, 1.0
    %v917 = vadd.f32 %v913, 1.0
    %v918 = vadd.f32 %v915, 1.0
    %v919 = vrcp.pop %v916
    %v920 = vmul.f32 %v916, %v919
    %v921 = vsub.f32 1.0, %v920
    %v922 = vmul.f32 %v919, %v921
    %v923 = vadd.f32 %v919, %v922
    %vm924 = vweird.f32 %v916
    %vm925 = vweird.f32 %v919
    %vm926 = vmor %vm924, %vm925
    %v927 = vsel %vm926, %v919, %v923
    %v928 = vand.u32 2147483647, %v916
    %vm929 = vcmp.eq.f32.partialorder %v928, 8.507059e+37
    %v930 = vand.u32 %v916, 2147483648
    %v931 = vor.u32 1.1754944e-38, %v930
    %v932 = vsel %vm929, %v931, %v927
    %v933 = vmul.f32 1.0, %v932
    %v934 = vrcp.pop %v917
    %v935 = vmul.f32 %v917, %v934
    %v936 = vsub.f32 1.0, %v935
    %v937 = vmul.f32 %v934, %v936
    %v938 = vadd.f32 %v934, %v937
    %vm939 = vweird.f32 %v917
    %vm940 = vweird.f32 %v934
    %vm941 = vmor %vm939, %vm940
    %v942 = vsel %vm941, %v934, %v938
    %v943 = vand.u32 2147483647, %v917
    %vm944 = vcmp.eq.f32.partialorder %v943, 8.507059e+37
    %v945 = vand.u32 %v917, 2147483648
    %v946 = vor.u32 1.1754944e-38, %v945
    %v947 = vsel %vm944, %v946, %v942
    %v948 = vmul.f32 1.0, %v947
    %v949 = vrcp.pop %v918
    %v950 = vmul.f32 %v918, %v949
    %v951 = vsub.f32 1.0, %v950
    %v952 = vmul.f32 %v949, %v951
    %v953 = vadd.f32 %v949, %v952
    %vm954 = vweird.f32 %v918
    %vm955 = vweird.f32 %v949
    %vm956 = vmor %vm954, %vm955
    %v957 = vsel %vm956, %v949, %v953
    %v958 = vand.u32 2147483647, %v918
    %vm959 = vcmp.eq.f32.partialorder %v958, 8.507059e+37
    %v960 = vand.u32 %v918, 2147483648
    %v961 = vor.u32 1.1754944e-38, %v960
    %v962 = vsel %vm959, %v961, %v957
    %v963 = vmul.f32 1.0, %v962
    %v964 = vtanh.pop %v906
    %v965 = vmul.f32 %v948, %v838
    %v966 = vmul.f32 %v933, %v964
    %v967 = vadd.f32 %v965, %v966
    %v968 = vtanh.pop %v967
    %v969 = vmul.f32 %v963, %v968
    %s970 = scalar_lea.vmem [#allocation5], 24
    %971 = vst [vmem:[%s970] sm:$0xff] %v969
    %s972 = smul.u32 4, 4
    %s973 = smul.addr %s972, 8
    %s974 = scalar_lea.vmem [#allocation4], %s973
    %v975 = vld [vmem:[%s974] sm:$0xff]
    %v976 = vld [vmem:[%s974 + $0x8] sm:$0xff]
    %v977 = vld [vmem:[%s974 + $0x10] sm:$0xff]
    %v978 = vld [vmem:[%s974 + $0x18] sm:$0xff]
    %v979 = vpack.c.bf16 %v969, %v969
    %980 = vmatpush.bf16.msra.mxu0 %v429
    %981 = vmatpush.bf16.msra.mxu0 %v425
    %982 = vmatpush.bf16.msra.mxu0 %v421
    %983 = vmatpush.bf16.msra.mxu0 %v417
    %984 = vmatpush.bf16.msra.mxu0 %v413
    %985 = vmatpush.bf16.msra.mxu0 %v409
    %986 = vmatpush.bf16.msra.mxu0 %v405
    %987 = vmatpush.bf16.msra.mxu0 %v401
    %988 = vmatmul.bf16.gmra.mxu0 %v979
    %v989 = vpop.f32.mrf.mxu0
    %v990 = vadd.f32 0.0, %v989
    %v991 = vpop.f32.mrf.mxu0
    %992 = vdwg.mxu0
    %993 = vmatpush.bf16.msra.mxu0 %v430
    %994 = vmatpush.bf16.msra.mxu0 %v426
    %995 = vmatpush.bf16.msra.mxu0 %v422
    %996 = vmatpush.bf16.msra.mxu0 %v418
    %997 = vmatpush.bf16.msra.mxu0 %v414
    %998 = vmatpush.bf16.msra.mxu0 %v410
    %999 = vmatpush.bf16.msra.mxu0 %v406
    %1000 = vmatpush.bf16.msra.mxu0 %v402
    %1001 = vmatmul.bf16.gmra.mxu0 %v979
    %v1002 = vpop.f32.mrf.mxu0
    %v1003 = vadd.f32 0.0, %v1002
    %v1004 = vpop.f32.mrf.mxu0
    %1005 = vdwg.mxu0
    %1006 = vmatpush.bf16.msra.mxu0 %v431
    %1007 = vmatpush.bf16.msra.mxu0 %v427
    %1008 = vmatpush.bf16.msra.mxu0 %v423
    %1009 = vmatpush.bf16.msra.mxu0 %v419
    %1010 = vmatpush.bf16.msra.mxu0 %v415
    %1011 = vmatpush.bf16.msra.mxu0 %v411
    %1012 = vmatpush.bf16.msra.mxu0 %v407
    %1013 = vmatpush.bf16.msra.mxu0 %v403
    %1014 = vmatmul.bf16.gmra.mxu0 %v979
    %v1015 = vpop.f32.mrf.mxu0
    %v1016 = vadd.f32 0.0, %v1015
    %v1017 = vpop.f32.mrf.mxu0
    %1018 = vdwg.mxu0
    %1019 = vmatpush.bf16.msra.mxu0 %v432
    %1020 = vmatpush.bf16.msra.mxu0 %v428
    %1021 = vmatpush.bf16.msra.mxu0 %v424
    %1022 = vmatpush.bf16.msra.mxu0 %v420
    %1023 = vmatpush.bf16.msra.mxu0 %v416
    %1024 = vmatpush.bf16.msra.mxu0 %v412
    %1025 = vmatpush.bf16.msra.mxu0 %v408
    %1026 = vmatpush.bf16.msra.mxu0 %v404
    %1027 = vmatmul.bf16.gmra.mxu0 %v979
    %v1028 = vpop.f32.mrf.mxu0
    %v1029 = vadd.f32 0.0, %v1028
    %v1030 = vpop.f32.mrf.mxu0
    %1031 = vdwg.mxu0
    %v1032 = vadd.f32 %v975, %v990
    %v1033 = vadd.f32 %v976, %v1003
    %v1034 = vadd.f32 %v977, %v1016
    %v1035 = vadd.f32 %v978, %v1029
    %v1036 = vxor.u32 %v1032, 2147483648
    %v1037 = vxor.u32 %v1033, 2147483648
    %v1038 = vxor.u32 %v1034, 2147483648
    %v1039 = vmul.f32 %v1036, 1.442695
    %v1040 = vpow.pop %v1039
    %v1041 = vmul.f32 %v1037, 1.442695
    %v1042 = vpow.pop %v1041
    %v1043 = vmul.f32 %v1038, 1.442695
    %v1044 = vpow.pop %v1043
    %v1045 = vadd.f32 %v1040, 1.0
    %v1046 = vadd.f32 %v1042, 1.0
    %v1047 = vadd.f32 %v1044, 1.0
    %v1048 = vrcp.pop %v1045
    %v1049 = vmul.f32 %v1045, %v1048
    %v1050 = vsub.f32 1.0, %v1049
    %v1051 = vmul.f32 %v1048, %v1050
    %v1052 = vadd.f32 %v1048, %v1051
    %vm1053 = vweird.f32 %v1045
    %vm1054 = vweird.f32 %v1048
    %vm1055 = vmor %vm1053, %vm1054
    %v1056 = vsel %vm1055, %v1048, %v1052
    %v1057 = vand.u32 2147483647, %v1045
    %vm1058 = vcmp.eq.f32.partialorder %v1057, 8.507059e+37
    %v1059 = vand.u32 %v1045, 2147483648
    %v1060 = vor.u32 1.1754944e-38, %v1059
    %v1061 = vsel %vm1058, %v1060, %v1056
    %v1062 = vmul.f32 1.0, %v1061
    %v1063 = vrcp.pop %v1046
    %v1064 = vmul.f32 %v1046, %v1063
    %v1065 = vsub.f32 1.0, %v1064
    %v1066 = vmul.f32 %v1063, %v1065
    %v1067 = vadd.f32 %v1063, %v1066
    %vm1068 = vweird.f32 %v1046
    %vm1069 = vweird.f32 %v1063
    %vm1070 = vmor %vm1068, %vm1069
    %v1071 = vsel %vm1070, %v1063, %v1067
    %v1072 = vand.u32 2147483647, %v1046
    %vm1073 = vcmp.eq.f32.partialorder %v1072, 8.507059e+37
    %v1074 = vand.u32 %v1046, 2147483648
    %v1075 = vor.u32 1.1754944e-38, %v1074
    %v1076 = vsel %vm1073, %v1075, %v1071
    %v1077 = vmul.f32 1.0, %v1076
    %v1078 = vrcp.pop %v1047
    %v1079 = vmul.f32 %v1047, %v1078
    %v1080 = vsub.f32 1.0, %v1079
    %v1081 = vmul.f32 %v1078, %v1080
    %v1082 = vadd.f32 %v1078, %v1081
    %vm1083 = vweird.f32 %v1047
    %vm1084 = vweird.f32 %v1078
    %vm1085 = vmor %vm1083, %vm1084
    %v1086 = vsel %vm1085, %v1078, %v1082
    %v1087 = vand.u32 2147483647, %v1047
    %vm1088 = vcmp.eq.f32.partialorder %v1087, 8.507059e+37
    %v1089 = vand.u32 %v1047, 2147483648
    %v1090 = vor.u32 1.1754944e-38, %v1089
    %v1091 = vsel %vm1088, %v1090, %v1086
    %v1092 = vmul.f32 1.0, %v1091
    %v1093 = vtanh.pop %v1035
    %v1094 = vmul.f32 %v1077, %v967
    %v1095 = vmul.f32 %v1062, %v1093
    %v1096 = vadd.f32 %v1094, %v1095
    %v1097 = vtanh.pop %v1096
    %v1098 = vmul.f32 %v1092, %v1097
    %s1099 = scalar_lea.vmem [#allocation5], 32
    %1100 = vst [vmem:[%s1099] sm:$0xff] %v1098
    %s1101 = smul.u32 5, 4
    %s1102 = smul.addr %s1101, 8
    %s1103 = scalar_lea.vmem [#allocation4], %s1102
    %v1104 = vld [vmem:[%s1103] sm:$0xff]
    %v1105 = vld [vmem:[%s1103 + $0x8] sm:$0xff]
    %v1106 = vld [vmem:[%s1103 + $0x10] sm:$0xff]
    %v1107 = vld [vmem:[%s1103 + $0x18] sm:$0xff]
    %v1108 = vpack.c.bf16 %v1098, %v1098
    %1109 = vmatpush.bf16.msra.mxu0 %v429
    %1110 = vmatpush.bf16.msra.mxu0 %v425
    %1111 = vmatpush.bf16.msra.mxu0 %v421
    %1112 = vmatpush.bf16.msra.mxu0 %v417
    %1113 = vmatpush.bf16.msra.mxu0 %v413
    %1114 = vmatpush.bf16.msra.mxu0 %v409
    %1115 = vmatpush.bf16.msra.mxu0 %v405
    %1116 = vmatpush.bf16.msra.mxu0 %v401
    %1117 = vmatmul.bf16.gmra.mxu0 %v1108
    %v1118 = vpop.f32.mrf.mxu0
    %v1119 = vadd.f32 0.0, %v1118
    %v1120 = vpop.f32.mrf.mxu0
    %1121 = vdwg.mxu0
    %1122 = vmatpush.bf16.msra.mxu0 %v430
    %1123 = vmatpush.bf16.msra.mxu0 %v426
    %1124 = vmatpush.bf16.msra.mxu0 %v422
    %1125 = vmatpush.bf16.msra.mxu0 %v418
    %1126 = vmatpush.bf16.msra.mxu0 %v414
    %1127 = vmatpush.bf16.msra.mxu0 %v410
    %1128 = vmatpush.bf16.msra.mxu0 %v406
    %1129 = vmatpush.bf16.msra.mxu0 %v402
    %1130 = vmatmul.bf16.gmra.mxu0 %v1108
    %v1131 = vpop.f32.mrf.mxu0
    %v1132 = vadd.f32 0.0, %v1131
    %v1133 = vpop.f32.mrf.mxu0
    %1134 = vdwg.mxu0
    %1135 = vmatpush.bf16.msra.mxu0 %v431
    %1136 = vmatpush.bf16.msra.mxu0 %v427
    %1137 = vmatpush.bf16.msra.mxu0 %v423
    %1138 = vmatpush.bf16.msra.mxu0 %v419
    %1139 = vmatpush.bf16.msra.mxu0 %v415
    %1140 = vmatpush.bf16.msra.mxu0 %v411
    %1141 = vmatpush.bf16.msra.mxu0 %v407
    %1142 = vmatpush.bf16.msra.mxu0 %v403
    %1143 = vmatmul.bf16.gmra.mxu0 %v1108
    %v1144 = vpop.f32.mrf.mxu0
    %v1145 = vadd.f32 0.0, %v1144
    %v1146 = vpop.f32.mrf.mxu0
    %1147 = vdwg.mxu0
    %1148 = vmatpush.bf16.msra.mxu0 %v432
    %1149 = vmatpush.bf16.msra.mxu0 %v428
    %1150 = vmatpush.bf16.msra.mxu0 %v424
    %1151 = vmatpush.bf16.msra.mxu0 %v420
    %1152 = vmatpush.bf16.msra.mxu0 %v416
    %1153 = vmatpush.bf16.msra.mxu0 %v412
    %1154 = vmatpush.bf16.msra.mxu0 %v408
    %1155 = vmatpush.bf16.msra.mxu0 %v404
    %1156 = vmatmul.bf16.gmra.mxu0 %v1108
    %v1157 = vpop.f32.mrf.mxu0
    %v1158 = vadd.f32 0.0, %v1157
    %v1159 = vpop.f32.mrf.mxu0
    %1160 = vdwg.mxu0
    %v1161 = vadd.f32 %v1104, %v1119
    %v1162 = vadd.f32 %v1105, %v1132
    %v1163 = vadd.f32 %v1106, %v1145
    %v1164 = vadd.f32 %v1107, %v1158
    %v1165 = vxor.u32 %v1161, 2147483648
    %v1166 = vxor.u32 %v1162, 2147483648
    %v1167 = vxor.u32 %v1163, 2147483648
    %v1168 = vmul.f32 %v1165, 1.442695
    %v1169 = vpow.pop %v1168
    %v1170 = vmul.f32 %v1166, 1.442695
    %v1171 = vpow.pop %v1170
    %v1172 = vmul.f32 %v1167, 1.442695
    %v1173 = vpow.pop %v1172
    %v1174 = vadd.f32 %v1169, 1.0
    %v1175 = vadd.f32 %v1171, 1.0
    %v1176 = vadd.f32 %v1173, 1.0
    %v1177 = vrcp.pop %v1174
    %v1178 = vmul.f32 %v1174, %v1177
    %v1179 = vsub.f32 1.0, %v1178
    %v1180 = vmul.f32 %v1177, %v1179
    %v1181 = vadd.f32 %v1177, %v1180
    %vm1182 = vweird.f32 %v1174
    %vm1183 = vweird.f32 %v1177
    %vm1184 = vmor %vm1182, %vm1183
    %v1185 = vsel %vm1184, %v1177, %v1181
    %v1186 = vand.u32 2147483647, %v1174
    %vm1187 = vcmp.eq.f32.partialorder %v1186, 8.507059e+37
    %v1188 = vand.u32 %v1174, 2147483648
    %v1189 = vor.u32 1.1754944e-38, %v1188
    %v1190 = vsel %vm1187, %v1189, %v1185
    %v1191 = vmul.f32 1.0, %v1190
    %v1192 = vrcp.pop %v1175
    %v1193 = vmul.f32 %v1175, %v1192
    %v1194 = vsub.f32 1.0, %v1193
    %v1195 = vmul.f32 %v1192, %v1194
    %v1196 = vadd.f32 %v1192, %v1195
    %vm1197 = vweird.f32 %v1175
    %vm1198 = vweird.f32 %v1192
    %vm1199 = vmor %vm1197, %vm1198
    %v1200 = vsel %vm1199, %v1192, %v1196
    %v1201 = vand.u32 2147483647, %v1175
    %vm1202 = vcmp.eq.f32.partialorder %v1201, 8.507059e+37
    %v1203 = vand.u32 %v1175, 2147483648
    %v1204 = vor.u32 1.1754944e-38, %v1203
    %v1205 = vsel %vm1202, %v1204, %v1200
    %v1206 = vmul.f32 1.0, %v1205
    %v1207 = vrcp.pop %v1176
    %v1208 = vmul.f32 %v1176, %v1207
    %v1209 = vsub.f32 1.0, %v1208
    %v1210 = vmul.f32 %v1207, %v1209
    %v1211 = vadd.f32 %v1207, %v1210
    %vm1212 = vweird.f32 %v1176
    %vm1213 = vweird.f32 %v1207
    %vm1214 = vmor %vm1212, %vm1213
    %v1215 = vsel %vm1214, %v1207, %v1211
    %v1216 = vand.u32 2147483647, %v1176
    %vm1217 = vcmp.eq.f32.partialorder %v1216, 8.507059e+37
    %v1218 = vand.u32 %v1176, 2147483648
    %v1219 = vor.u32 1.1754944e-38, %v1218
    %v1220 = vsel %vm1217, %v1219, %v1215
    %v1221 = vmul.f32 1.0, %v1220
    %v1222 = vtanh.pop %v1164
    %v1223 = vmul.f32 %v1206, %v1096
    %v1224 = vmul.f32 %v1191, %v1222
    %v1225 = vadd.f32 %v1223, %v1224
    %v1226 = vtanh.pop %v1225
    %v1227 = vmul.f32 %v1221, %v1226
    %s1228 = scalar_lea.vmem [#allocation5], 40
    %1229 = vst [vmem:[%s1228] sm:$0xff] %v1227
    %s1230 = smul.u32 6, 4
    %s1231 = smul.addr %s1230, 8
    %s1232 = scalar_lea.vmem [#allocation4], %s1231
    %v1233 = vld [vmem:[%s1232] sm:$0xff]
    %v1234 = vld [vmem:[%s1232 + $0x8] sm:$0xff]
    %v1235 = vld [vmem:[%s1232 + $0x10] sm:$0xff]
    %v1236 = vld [vmem:[%s1232 + $0x18] sm:$0xff]
    %v1237 = vpack.c.bf16 %v1227, %v1227
    %1238 = vmatpush.bf16.msra.mxu0 %v429
    %1239 = vmatpush.bf16.msra.mxu0 %v425
    %1240 = vmatpush.bf16.msra.mxu0 %v421
    %1241 = vmatpush.bf16.msra.mxu0 %v417
    %1242 = vmatpush.bf16.msra.mxu0 %v413
    %1243 = vmatpush.bf16.msra.mxu0 %v409
    %1244 = vmatpush.bf16.msra.mxu0 %v405
    %1245 = vmatpush.bf16.msra.mxu0 %v401
    %1246 = vmatmul.bf16.gmra.mxu0 %v1237
    %v1247 = vpop.f32.mrf.mxu0
    %v1248 = vadd.f32 0.0, %v1247
    %v1249 = vpop.f32.mrf.mxu0
    %1250 = vdwg.mxu0
    %1251 = vmatpush.bf16.msra.mxu0 %v430
    %1252 = vmatpush.bf16.msra.mxu0 %v426
    %1253 = vmatpush.bf16.msra.mxu0 %v422
    %1254 = vmatpush.bf16.msra.mxu0 %v418
    %1255 = vmatpush.bf16.msra.mxu0 %v414
    %1256 = vmatpush.bf16.msra.mxu0 %v410
    %1257 = vmatpush.bf16.msra.mxu0 %v406
    %1258 = vmatpush.bf16.msra.mxu0 %v402
    %1259 = vmatmul.bf16.gmra.mxu0 %v1237
    %v1260 = vpop.f32.mrf.mxu0
    %v1261 = vadd.f32 0.0, %v1260
    %v1262 = vpop.f32.mrf.mxu0
    %1263 = vdwg.mxu0
    %1264 = vmatpush.bf16.msra.mxu0 %v431
    %1265 = vmatpush.bf16.msra.mxu0 %v427
    %1266 = vmatpush.bf16.msra.mxu0 %v423
    %1267 = vmatpush.bf16.msra.mxu0 %v419
    %1268 = vmatpush.bf16.msra.mxu0 %v415
    %1269 = vmatpush.bf16.msra.mxu0 %v411
    %1270 = vmatpush.bf16.msra.mxu0 %v407
    %1271 = vmatpush.bf16.msra.mxu0 %v403
    %1272 = vmatmul.bf16.gmra.mxu0 %v1237
    %v1273 = vpop.f32.mrf.mxu0
    %v1274 = vadd.f32 0.0, %v1273
    %v1275 = vpop.f32.mrf.mxu0
    %1276 = vdwg.mxu0
    %1277 = vmatpush.bf16.msra.mxu0 %v432
    %1278 = vmatpush.bf16.msra.mxu0 %v428
    %1279 = vmatpush.bf16.msra.mxu0 %v424
    %1280 = vmatpush.bf16.msra.mxu0 %v420
    %1281 = vmatpush.bf16.msra.mxu0 %v416
    %1282 = vmatpush.bf16.msra.mxu0 %v412
    %1283 = vmatpush.bf16.msra.mxu0 %v408
    %1284 = vmatpush.bf16.msra.mxu0 %v404
    %1285 = vmatmul.bf16.gmra.mxu0 %v1237
    %v1286 = vpop.f32.mrf.mxu0
    %v1287 = vadd.f32 0.0, %v1286
    %v1288 = vpop.f32.mrf.mxu0
    %1289 = vdwg.mxu0
    %v1290 = vadd.f32 %v1233, %v1248
    %v1291 = vadd.f32 %v1234, %v1261
    %v1292 = vadd.f32 %v1235, %v1274
    %v1293 = vadd.f32 %v1236, %v1287
    %v1294 = vxor.u32 %v1290, 2147483648
    %v1295 = vxor.u32 %v1291, 2147483648
    %v1296 = vxor.u32 %v1292, 2147483648
    %v1297 = vmul.f32 %v1294, 1.442695
    %v1298 = vpow.pop %v1297
    %v1299 = vmul.f32 %v1295, 1.442695
    %v1300 = vpow.pop %v1299
    %v1301 = vmul.f32 %v1296, 1.442695
    %v1302 = vpow.pop %v1301
    %v1303 = vadd.f32 %v1298, 1.0
    %v1304 = vadd.f32 %v1300, 1.0
    %v1305 = vadd.f32 %v1302, 1.0
    %v1306 = vrcp.pop %v1303
    %v1307 = vmul.f32 %v1303, %v1306
    %v1308 = vsub.f32 1.0, %v1307
    %v1309 = vmul.f32 %v1306, %v1308
    %v1310 = vadd.f32 %v1306, %v1309
    %vm1311 = vweird.f32 %v1303
    %vm1312 = vweird.f32 %v1306
    %vm1313 = vmor %vm1311, %vm1312
    %v1314 = vsel %vm1313, %v1306, %v1310
    %v1315 = vand.u32 2147483647, %v1303
    %vm1316 = vcmp.eq.f32.partialorder %v1315, 8.507059e+37
    %v1317 = vand.u32 %v1303, 2147483648
    %v1318 = vor.u32 1.1754944e-38, %v1317
    %v1319 = vsel %vm1316, %v1318, %v1314
    %v1320 = vmul.f32 1.0, %v1319
    %v1321 = vrcp.pop %v1304
    %v1322 = vmul.f32 %v1304, %v1321
    %v1323 = vsub.f32 1.0, %v1322
    %v1324 = vmul.f32 %v1321, %v1323
    %v1325 = vadd.f32 %v1321, %v1324
    %vm1326 = vweird.f32 %v1304
    %vm1327 = vweird.f32 %v1321
    %vm1328 = vmor %vm1326, %vm1327
    %v1329 = vsel %vm1328, %v1321, %v1325
    %v1330 = vand.u32 2147483647, %v1304
    %vm1331 = vcmp.eq.f32.partialorder %v1330, 8.507059e+37
    %v1332 = vand.u32 %v1304, 2147483648
    %v1333 = vor.u32 1.1754944e-38, %v1332
    %v1334 = vsel %vm1331, %v1333, %v1329
    %v1335 = vmul.f32 1.0, %v1334
    %v1336 = vrcp.pop %v1305
    %v1337 = vmul.f32 %v1305, %v1336
    %v1338 = vsub.f32 1.0, %v1337
    %v1339 = vmul.f32 %v1336, %v1338
    %v1340 = vadd.f32 %v1336, %v1339
    %vm1341 = vweird.f32 %v1305
    %vm1342 = vweird.f32 %v1336
    %vm1343 = vmor %vm1341, %vm1342
    %v1344 = vsel %vm1343, %v1336, %v1340
    %v1345 = vand.u32 2147483647, %v1305
    %vm1346 = vcmp.eq.f32.partialorder %v1345, 8.507059e+37
    %v1347 = vand.u32 %v1305, 2147483648
    %v1348 = vor.u32 1.1754944e-38, %v1347
    %v1349 = vsel %vm1346, %v1348, %v1344
    %v1350 = vmul.f32 1.0, %v1349
    %v1351 = vtanh.pop %v1293
    %v1352 = vmul.f32 %v1335, %v1225
    %v1353 = vmul.f32 %v1320, %v1351
    %v1354 = vadd.f32 %v1352, %v1353
    %v1355 = vtanh.pop %v1354
    %v1356 = vmul.f32 %v1350, %v1355
    %s1357 = scalar_lea.vmem [#allocation5], 48
    %1358 = vst [vmem:[%s1357] sm:$0xff] %v1356
    %s1359 = smul.u32 7, 4
    %s1360 = smul.addr %s1359, 8
    %s1361 = scalar_lea.vmem [#allocation4], %s1360
    %v1362 = vld [vmem:[%s1361] sm:$0xff]
    %v1363 = vld [vmem:[%s1361 + $0x8] sm:$0xff]
    %v1364 = vld [vmem:[%s1361 + $0x10] sm:$0xff]
    %v1365 = vld [vmem:[%s1361 + $0x18] sm:$0xff]
    %v1366 = vpack.c.bf16 %v1356, %v1356
    %1367 = vmatpush.bf16.msra.mxu0 %v429
    %1368 = vmatpush.bf16.msra.mxu0 %v425
    %1369 = vmatpush.bf16.msra.mxu0 %v421
    %1370 = vmatpush.bf16.msra.mxu0 %v417
    %1371 = vmatpush.bf16.msra.mxu0 %v413
    %1372 = vmatpush.bf16.msra.mxu0 %v409
    %1373 = vmatpush.bf16.msra.mxu0 %v405
    %1374 = vmatpush.bf16.msra.mxu0 %v401
    %1375 = vmatmul.bf16.gmra.mxu0 %v1366
    %v1376 = vpop.f32.mrf.mxu0
    %v1377 = vadd.f32 0.0, %v1376
    %v1378 = vpop.f32.mrf.mxu0
    %1379 = vdwg.mxu0
    %1380 = vmatpush.bf16.msra.mxu0 %v430
    %1381 = vmatpush.bf16.msra.mxu0 %v426
    %1382 = vmatpush.bf16.msra.mxu0 %v422
    %1383 = vmatpush.bf16.msra.mxu0 %v418
    %1384 = vmatpush.bf16.msra.mxu0 %v414
    %1385 = vmatpush.bf16.msra.mxu0 %v410
    %1386 = vmatpush.bf16.msra.mxu0 %v406
    %1387 = vmatpush.bf16.msra.mxu0 %v402
    %1388 = vmatmul.bf16.gmra.mxu0 %v1366
    %v1389 = vpop.f32.mrf.mxu0
    %v1390 = vadd.f32 0.0, %v1389
    %v1391 = vpop.f32.mrf.mxu0
    %1392 = vdwg.mxu0
    %1393 = vmatpush.bf16.msra.mxu0 %v431
    %1394 = vmatpush.bf16.msra.mxu0 %v427
    %1395 = vmatpush.bf16.msra.mxu0 %v423
    %1396 = vmatpush.bf16.msra.mxu0 %v419
    %1397 = vmatpush.bf16.msra.mxu0 %v415
    %1398 = vmatpush.bf16.msra.mxu0 %v411
    %1399 = vmatpush.bf16.msra.mxu0 %v407
    %1400 = vmatpush.bf16.msra.mxu0 %v403
    %1401 = vmatmul.bf16.gmra.mxu0 %v1366
    %v1402 = vpop.f32.mrf.mxu0
    %v1403 = vadd.f32 0.0, %v1402
    %v1404 = vpop.f32.mrf.mxu0
    %1405 = vdwg.mxu0
    %1406 = vmatpush.bf16.msra.mxu0 %v432
    %1407 = vmatpush.bf16.msra.mxu0 %v428
    %1408 = vmatpush.bf16.msra.mxu0 %v424
    %1409 = vmatpush.bf16.msra.mxu0 %v420
    %1410 = vmatpush.bf16.msra.mxu0 %v416
    %1411 = vmatpush.bf16.msra.mxu0 %v412
    %1412 = vmatpush.bf16.msra.mxu0 %v408
    %1413 = vmatpush.bf16.msra.mxu0 %v404
    %1414 = vmatmul.bf16.gmra.mxu0 %v1366
    %v1415 = vpop.f32.mrf.mxu0
    %v1416 = vadd.f32 0.0, %v1415
    %v1417 = vpop.f32.mrf.mxu0
    %1418 = vdwg.mxu0
    %v1419 = vadd.f32 %v1362, %v1377
    %v1420 = vadd.f32 %v1363, %v1390
    %v1421 = vadd.f32 %v1364, %v1403
    %v1422 = vadd.f32 %v1365, %v1416
    %v1423 = vxor.u32 %v1419, 2147483648
    %v1424 = vxor.u32 %v1420, 2147483648
    %v1425 = vxor.u32 %v1421, 2147483648
    %v1426 = vmul.f32 %v1423, 1.442695
    %v1427 = vpow.pop %v1426
    %v1428 = vmul.f32 %v1424, 1.442695
    %v1429 = vpow.pop %v1428
    %v1430 = vmul.f32 %v1425, 1.442695
    %v1431 = vpow.pop %v1430
    %v1432 = vadd.f32 %v1427, 1.0
    %v1433 = vadd.f32 %v1429, 1.0
    %v1434 = vadd.f32 %v1431, 1.0
    %v1435 = vrcp.pop %v1432
    %v1436 = vmul.f32 %v1432, %v1435
    %v1437 = vsub.f32 1.0, %v1436
    %v1438 = vmul.f32 %v1435, %v1437
    %v1439 = vadd.f32 %v1435, %v1438
    %vm1440 = vweird.f32 %v1432
    %vm1441 = vweird.f32 %v1435
    %vm1442 = vmor %vm1440, %vm1441
    %v1443 = vsel %vm1442, %v1435, %v1439
    %v1444 = vand.u32 2147483647, %v1432
    %vm1445 = vcmp.eq.f32.partialorder %v1444, 8.507059e+37
    %v1446 = vand.u32 %v1432, 2147483648
    %v1447 = vor.u32 1.1754944e-38, %v1446
    %v1448 = vsel %vm1445, %v1447, %v1443
    %v1449 = vmul.f32 1.0, %v1448
    %v1450 = vrcp.pop %v1433
    %v1451 = vmul.f32 %v1433, %v1450
    %v1452 = vsub.f32 1.0, %v1451
    %v1453 = vmul.f32 %v1450, %v1452
    %v1454 = vadd.f32 %v1450, %v1453
    %vm1455 = vweird.f32 %v1433
    %vm1456 = vweird.f32 %v1450
    %vm1457 = vmor %vm1455, %vm1456
    %v1458 = vsel %vm1457, %v1450, %v1454
    %v1459 = vand.u32 2147483647, %v1433
    %vm1460 = vcmp.eq.f32.partialorder %v1459, 8.507059e+37
    %v1461 = vand.u32 %v1433, 2147483648
    %v1462 = vor.u32 1.1754944e-38, %v1461
    %v1463 = vsel %vm1460, %v1462, %v1458
    %v1464 = vmul.f32 1.0, %v1463
    %v1465 = vrcp.pop %v1434
    %v1466 = vmul.f32 %v1434, %v1465
    %v1467 = vsub.f32 1.0, %v1466
    %v1468 = vmul.f32 %v1465, %v1467
    %v1469 = vadd.f32 %v1465, %v1468
    %vm1470 = vweird.f32 %v1434
    %vm1471 = vweird.f32 %v1465
    %vm1472 = vmor %vm1470, %vm1471
    %v1473 = vsel %vm1472, %v1465, %v1469
    %v1474 = vand.u32 2147483647, %v1434
    %vm1475 = vcmp.eq.f32.partialorder %v1474, 8.507059e+37
    %v1476 = vand.u32 %v1434, 2147483648
    %v1477 = vor.u32 1.1754944e-38, %v1476
    %v1478 = vsel %vm1475, %v1477, %v1473
    %v1479 = vmul.f32 1.0, %v1478
    %v1480 = vtanh.pop %v1422
    %v1481 = vmul.f32 %v1464, %v1354
    %v1482 = vmul.f32 %v1449, %v1480
    %v1483 = vadd.f32 %v1481, %v1482
    %v1484 = vtanh.pop %v1483
    %v1485 = vmul.f32 %v1479, %v1484
    %s1486 = scalar_lea.vmem [#allocation5], 56
    %1487 = vst [vmem:[%s1486] sm:$0xff] %v1485
    %1488 = vst [vmem:[#allocation2] sm:$0xff] %v1485
    %1489 = vst [vmem:[#allocation3] sm:$0xff] %v1483
    %v1490 = vld [vmem:[#allocation5] sm:$0xff]
    %v1491 = vld [vmem:[#allocation5 + $0x8] sm:$0xff]
    %v1492 = vld [vmem:[#allocation5 + $0x10] sm:$0xff]
    %v1493 = vld [vmem:[#allocation5 + $0x18] sm:$0xff]
    %v1494 = vld [vmem:[#allocation5 + $0x20] sm:$0xff]
    %v1495 = vld [vmem:[#allocation5 + $0x28] sm:$0xff]
    %v1496 = vld [vmem:[#allocation5 + $0x30] sm:$0xff]
    %v1497 = vld [vmem:[#allocation5 + $0x38] sm:$0xff]
    %v1498 = vpack.c.bf16 %v1490, %v1490
    %v1499 = vpack.c.bf16 %v1491, %v1491
    %v1500 = vpack.c.bf16 %v1492, %v1492
    %v1501 = vpack.c.bf16 %v1493, %v1493
    %v1502 = vpack.c.bf16 %v1494, %v1494
    %v1503 = vpack.c.bf16 %v1495, %v1495
    %v1504 = vpack.c.bf16 %v1496, %v1496
    %v1505 = vpack.c.bf16 %v1497, %v1497
    %1506 = vst [vmem:[%s4] sm:$0xf] %v1498
    %1507 = vst [vmem:[%s4 + $0x4] sm:$0xf] %v1499
    %1508 = vst [vmem:[%s4 + $0x8] sm:$0xf] %v1500
    %1509 = vst [vmem:[%s4 + $0xc] sm:$0xf] %v1501
    %1510 = vst [vmem:[%s4 + $0x10] sm:$0xf] %v1502
    %1511 = vst [vmem:[%s4 + $0x14] sm:$0xf] %v1503
    %1512 = vst [vmem:[%s4 + $0x18] sm:$0xf] %v1504
    %1513 = vst [vmem:[%s4 + $0x1c] sm:$0xf] %v1505
    // Predicated region
    $region26: #{lstm_model_forward.2} parent=1 // pred_check
      _
    $region27: #{lstm_model_forward.2} parent=1 // pred_check_branch
      %1515 = sbr.rel (0) target = $region29
    $region28: #{lstm_model_forward.2} parent=1 // pred_region
      _
    $region29: #{lstm_model_forward.2} parent=1 // pred_fallthru
      _
    // Predicated region
    $region30: #{lstm_model_forward.2} parent=1 // pred_check
      _
    $region31: #{lstm_model_forward.2} parent=1 // pred_check_branch
      %1517 = sbr.rel (0) target = $region33
    $region32: #{lstm_model_forward.2} parent=1 // pred_region
      _
    $region33: #{lstm_model_forward.2} parent=1 // pred_fallthru
      _
    %1518 = vsyncpa [#allocation7], 1

// kernel: lstm_model_forward.3
$region0: #{lstm_model_forward.3}
  #allocation0 [shape = 'u32[]', space=smem, size = 0x4, offset = 0x4, fixed_abs, tag = 'smem constant byte address 0x4 - core index']
  #allocation1 [shape = 'u32[72,128]{1,0:T(1,128)}', space=vmem, size = 0x9000, scoped, tag = 'internal scratch']
  #allocation2 [shape = 'f32[8,128]{1,0:T(8,128)}', space=vmem, size = 0x1000, scoped, tag = 'scratch operand']
  #allocation3 [shape = 'f32[8,128]{1,0:T(8,128)}', space=vmem, size = 0x1000, scoped, tag = 'scratch operand']
  #allocation4 [shape = 'f32[64,512]{1,0:T(8,128)}', space=vmem, size = 0x20000, scoped, tag = 'scratch operand']
  %s0 = inlined_call_operand.vmem [shape: bf16[64,128], index: 0, kind: input, shape index: {}]
  %s1 = inlined_call_operand.hbm [shape: bf16[128,512], index: 1, kind: input, shape index: {}]
  %s2 = inlined_call_operand.hbm [shape: bf16[128,512], index: 2, kind: input, shape index: {}]
  %s3 = inlined_call_operand.vmem [shape: f32[1,512], index: 3, kind: input, shape index: {}]
  %s4 = inlined_call_operand.vmem [shape: f32[128,16], index: 4, kind: input, shape index: {}]
  %s5 = inlined_call_operand.vmem [shape: f32[1,16], index: 5, kind: input, shape index: {}]
  %s6 = inlined_call_operand.vmem [shape: f32[16,4], index: 6, kind: input, shape index: {}]
  %s7 = inlined_call_operand.vmem [shape: f32[1,4], index: 7, kind: input, shape index: {}]
  %s8 = inlined_call_operand.vmem [shape: f32[8,4], index: 8, kind: output, shape index: {}]
  %s9 = sld [smem:[#allocation0]]
  $region58: #{lstm_model_forward.3} parent=0
    _
  %s11 = ssub.s32 1, %s9
  %s12 = scalar_select 0, %s11, %s9
  $region1: #{lstm_model_forward.3} parent=0
    #allocation5 [shape = 'u8[131072]{0}', space=vmem, size = 0x20000, scoped, tag = 'input window, operand 1, single buffered']
    #allocation6 [shape = 's32[1]{0}', space=sflag, size = 0x4, scoped, tag = 'scoped memory for lstm_model_forward.3']
    #allocation7 [shape = 'u8[131072]{0}', space=vmem, size = 0x20000, scoped, tag = 'input window, operand 2, single buffered']
    #allocation8 [shape = 's32[1]{0}', space=sflag, size = 0x4, scoped, tag = 'scoped memory for lstm_model_forward.3']
    %13 = vsyncpa [#allocation6], 0
    %14 = vsyncpa [#allocation8], 0
    // Predicated region
    $region2: #{lstm_model_forward.3} parent=1 // pred_check
      _
    $region3: #{lstm_model_forward.3} parent=1 // pred_check_branch
      %16 = sbr.rel (0) target = $region5
    $region4: #{lstm_model_forward.3} parent=1 // pred_region
      _
    $region5: #{lstm_model_forward.3} parent=1 // pred_fallthru
      _
    // Predicated region
    $region6: #{lstm_model_forward.3} parent=1 // pred_check
      _
    $region7: #{lstm_model_forward.3} parent=1 // pred_check_branch
      %18 = sbr.rel (0) target = $region9
    $region8: #{lstm_model_forward.3} parent=1 // pred_region
      %20 = vsyncadd [#allocation6], 0
      %s21 = sshll.u32 %s1, 4
      %s22 = int_to_ptr.hbm [resolvable:$true] %s21
      %s23 = sshll.u32 [#allocation5], 4
      %s24 = int_to_ptr.vmem [resolvable:$true] %s23
      %29 = dma.hbm_to_vmem [thread:$0]  %s22, 4096, %s24, [#allocation6], 256, 256, 16
    $region9: #{lstm_model_forward.3} parent=1 // pred_fallthru
      _
    // Predicated region
    $region10: #{lstm_model_forward.3} parent=1 // pred_check
      _
    $region11: #{lstm_model_forward.3} parent=1 // pred_check_branch
      %31 = sbr.rel (0) target = $region13
    $region12: #{lstm_model_forward.3} parent=1 // pred_region
      %33 = vsyncadd [#allocation8], 0
      %s34 = sshll.u32 %s2, 4
      %s35 = int_to_ptr.hbm [resolvable:$true] %s34
      %s36 = sshll.u32 [#allocation7], 4
      %s37 = int_to_ptr.vmem [resolvable:$true] %s36
      %42 = dma.hbm_to_vmem [thread:$0]  %s35, 4096, %s37, [#allocation8], 256, 256, 16
    $region13: #{lstm_model_forward.3} parent=1 // pred_fallthru
      _
    // Predicated region
    $region14: #{lstm_model_forward.3} parent=1 // pred_check
      _
    $region15: #{lstm_model_forward.3} parent=1 // pred_check_branch
      %44 = sbr.rel (0) target = $region17
    $region16: #{lstm_model_forward.3} parent=1 // pred_region
      _
    $region17: #{lstm_model_forward.3} parent=1 // pred_fallthru
      _
    // Predicated region
    $region18: #{lstm_model_forward.3} parent=1 // pred_check
      _
    $region19: #{lstm_model_forward.3} parent=1 // pred_check_branch
      %46 = sbr.rel (0) target = $region21
    $region20: #{lstm_model_forward.3} parent=1 // pred_region
      _
    $region21: #{lstm_model_forward.3} parent=1 // pred_fallthru
      _
    // Predicated region
    $region22: #{lstm_model_forward.3} parent=1 // pred_check
      _
    $region23: #{lstm_model_forward.3} parent=1 // pred_check_branch
      %48 = sbr.rel (0) target = $region25
    $region24: #{lstm_model_forward.3} parent=1 // pred_region
      _
    $region25: #{lstm_model_forward.3} parent=1 // pred_fallthru
      _
    // Predicated region
    $region26: #{lstm_model_forward.3} parent=1 // pred_check
      _
    $region27: #{lstm_model_forward.3} parent=1 // pred_check_branch
      %50 = sbr.rel (0) target = $region29
    $region28: #{lstm_model_forward.3} parent=1 // pred_region
      _
    $region29: #{lstm_model_forward.3} parent=1 // pred_fallthru
      _
    // Predicated region
    $region30: #{lstm_model_forward.3} parent=1 // pred_check
      _
    $region31: #{lstm_model_forward.3} parent=1 // pred_check_branch
      %52 = sbr.rel (0) target = $region33
    $region32: #{lstm_model_forward.3} parent=1 // pred_region
      _
    $region33: #{lstm_model_forward.3} parent=1 // pred_fallthru
      _
    // Predicated region
    $region34: #{lstm_model_forward.3} parent=1 // pred_check
      _
    $region35: #{lstm_model_forward.3} parent=1 // pred_check_branch
      %54 = sbr.rel (0) target = $region37
    $region36: #{lstm_model_forward.3} parent=1 // pred_region
      %56 = dma.done [#allocation6], 4096
    $region37: #{lstm_model_forward.3} parent=1 // pred_fallthru
      _
    // Predicated region
    $region38: #{lstm_model_forward.3} parent=1 // pred_check
      _
    $region39: #{lstm_model_forward.3} parent=1 // pred_check_branch
      %58 = sbr.rel (0) target = $region41
    $region40: #{lstm_model_forward.3} parent=1 // pred_region
      %60 = dma.done [#allocation8], 4096
    $region41: #{lstm_model_forward.3} parent=1 // pred_fallthru
      _
    %p61 = scmp.eq.s32.totalorder 0, 0
    // Predicated region
    $region42: #{lstm_model_forward.3} parent=1 // pred_check
      %p62 = pneg %p61
    $region43: #{lstm_model_forward.3} parent=1 // pred_check_branch
      %64 = sbr.rel (%p62) target = $region45
    $region44: #{lstm_model_forward.3} parent=1 // pred_region
      %65 = vst [vmem:[#allocation2] sm:$0xff] 0.0
      %66 = vst [vmem:[#allocation3] sm:$0xff] 0.0
    $region45: #{lstm_model_forward.3} parent=1 // pred_fallthru
      _
    %v67 = vld [vmem:[%s0] sm:$0xf]
    %v68 = vld [vmem:[%s0 + $0x4] sm:$0xf]
    %v69 = vld [vmem:[%s0 + $0x8] sm:$0xf]
    %v70 = vld [vmem:[%s0 + $0xc] sm:$0xf]
    %v71 = vld [vmem:[%s0 + $0x10] sm:$0xf]
    %v72 = vld [vmem:[%s0 + $0x14] sm:$0xf]
    %v73 = vld [vmem:[%s0 + $0x18] sm:$0xf]
    %v74 = vld [vmem:[%s0 + $0x1c] sm:$0xf]
    %v75 = vld [vmem:[#allocation5] sm:$0xff]
    %v76 = vld [vmem:[#allocation5 + $0x8] sm:$0xff]
    %v77 = vld [vmem:[#allocation5 + $0x10] sm:$0xff]
    %v78 = vld [vmem:[#allocation5 + $0x18] sm:$0xff]
    %v79 = vld [vmem:[#allocation5 + $0x20] sm:$0xff]
    %v80 = vld [vmem:[#allocation5 + $0x28] sm:$0xff]
    %v81 = vld [vmem:[#allocation5 + $0x30] sm:$0xff]
    %v82 = vld [vmem:[#allocation5 + $0x38] sm:$0xff]
    %v83 = vld [vmem:[#allocation5 + $0x40] sm:$0xff]
    %v84 = vld [vmem:[#allocation5 + $0x48] sm:$0xff]
    %v85 = vld [vmem:[#allocation5 + $0x50] sm:$0xff]
    %v86 = vld [vmem:[#allocation5 + $0x58] sm:$0xff]
    %v87 = vld [vmem:[#allocation5 + $0x60] sm:$0xff]
    %v88 = vld [vmem:[#allocation5 + $0x68] sm:$0xff]
    %v89 = vld [vmem:[#allocation5 + $0x70] sm:$0xff]
    %v90 = vld [vmem:[#allocation5 + $0x78] sm:$0xff]
    %v91 = vld [vmem:[#allocation5 + $0x80] sm:$0xff]
    %v92 = vld [vmem:[#allocation5 + $0x88] sm:$0xff]
    %v93 = vld [vmem:[#allocation5 + $0x90] sm:$0xff]
    %v94 = vld [vmem:[#allocation5 + $0x98] sm:$0xff]
    %v95 = vld [vmem:[#allocation5 + $0xa0] sm:$0xff]
    %v96 = vld [vmem:[#allocation5 + $0xa8] sm:$0xff]
    %v97 = vld [vmem:[#allocation5 + $0xb0] sm:$0xff]
    %v98 = vld [vmem:[#allocation5 + $0xb8] sm:$0xff]
    %v99 = vld [vmem:[#allocation5 + $0xc0] sm:$0xff]
    %v100 = vld [vmem:[#allocation5 + $0xc8] sm:$0xff]
    %v101 = vld [vmem:[#allocation5 + $0xd0] sm:$0xff]
    %v102 = vld [vmem:[#allocation5 + $0xd8] sm:$0xff]
    %v103 = vld [vmem:[#allocation5 + $0xe0] sm:$0xff]
    %v104 = vld [vmem:[#allocation5 + $0xe8] sm:$0xff]
    %v105 = vld [vmem:[#allocation5 + $0xf0] sm:$0xff]
    %v106 = vld [vmem:[#allocation5 + $0xf8] sm:$0xff]
    %v107 = vld [vmem:[%s3] sm:$0xf]
    %v109 = vperm.slane %v107, 0
    %v110 = vperm.slane %v107, 1
    %v111 = vperm.slane %v107, 2
    %v112 = vperm.slane %v107, 3
    %v125 = vunpack.c.l.b16 %v67
    %v126 = vunpack.c.l.b16 %v68
    %v127 = vunpack.c.l.b16 %v69
    %v128 = vunpack.c.l.b16 %v70
    %v129 = vunpack.c.l.b16 %v71
    %v130 = vunpack.c.l.b16 %v72
    %v131 = vunpack.c.l.b16 %v73
    %v132 = vunpack.c.l.b16 %v74
    %v133 = vpack.c.b16 %v126, %v125
    %v134 = vpack.c.b16 %v128, %v127
    %v135 = vpack.c.b16 %v130, %v129
    %v136 = vpack.c.b16 %v132, %v131
    %v173 = vunpack.c.l.b16 %v75
    %v174 = vunpack.c.h.b16 %v75
    %v175 = vunpack.c.l.b16 %v76
    %v176 = vunpack.c.h.b16 %v76
    %v177 = vunpack.c.l.b16 %v77
    %v178 = vunpack.c.h.b16 %v77
    %v179 = vunpack.c.l.b16 %v78
    %v180 = vunpack.c.h.b16 %v78
    %v181 = vunpack.c.l.b16 %v79
    %v182 = vunpack.c.h.b16 %v79
    %v183 = vunpack.c.l.b16 %v80
    %v184 = vunpack.c.h.b16 %v80
    %v185 = vunpack.c.l.b16 %v81
    %v186 = vunpack.c.h.b16 %v81
    %v187 = vunpack.c.l.b16 %v82
    %v188 = vunpack.c.h.b16 %v82
    %v189 = vunpack.c.l.b16 %v83
    %v190 = vunpack.c.h.b16 %v83
    %v191 = vunpack.c.l.b16 %v84
    %v192 = vunpack.c.h.b16 %v84
    %v193 = vunpack.c.l.b16 %v85
    %v194 = vunpack.c.h.b16 %v85
    %v195 = vunpack.c.l.b16 %v86
    %v196 = vunpack.c.h.b16 %v86
    %v197 = vunpack.c.l.b16 %v87
    %v198 = vunpack.c.h.b16 %v87
    %v199 = vunpack.c.l.b16 %v88
    %v200 = vunpack.c.h.b16 %v88
    %v201 = vunpack.c.l.b16 %v89
    %v202 = vunpack.c.h.b16 %v89
    %v203 = vunpack.c.l.b16 %v90
    %v204 = vunpack.c.h.b16 %v90
    %v205 = vunpack.c.l.b16 %v91
    %v206 = vunpack.c.h.b16 %v91
    %v207 = vunpack.c.l.b16 %v92
    %v208 = vunpack.c.h.b16 %v92
    %v209 = vunpack.c.l.b16 %v93
    %v210 = vunpack.c.h.b16 %v93
    %v211 = vunpack.c.l.b16 %v94
    %v212 = vunpack.c.h.b16 %v94
    %v213 = vunpack.c.l.b16 %v95
    %v214 = vunpack.c.h.b16 %v95
    %v215 = vunpack.c.l.b16 %v96
    %v216 = vunpack.c.h.b16 %v96
    %v217 = vunpack.c.l.b16 %v97
    %v218 = vunpack.c.h.b16 %v97
    %v219 = vunpack.c.l.b16 %v98
    %v220 = vunpack.c.h.b16 %v98
    %v221 = vunpack.c.l.b16 %v99
    %v222 = vunpack.c.h.b16 %v99
    %v223 = vunpack.c.l.b16 %v100
    %v224 = vunpack.c.h.b16 %v100
    %v225 = vunpack.c.l.b16 %v101
    %v226 = vunpack.c.h.b16 %v101
    %v227 = vunpack.c.l.b16 %v102
    %v228 = vunpack.c.h.b16 %v102
    %v229 = vunpack.c.l.b16 %v103
    %v230 = vunpack.c.h.b16 %v103
    %v231 = vunpack.c.l.b16 %v104
    %v232 = vunpack.c.h.b16 %v104
    %v233 = vunpack.c.l.b16 %v105
    %v234 = vunpack.c.h.b16 %v105
    %v235 = vunpack.c.l.b16 %v106
    %v236 = vunpack.c.h.b16 %v106
    %v237 = vpack.c.b16 %v177, %v173
    %v238 = vpack.c.b16 %v178, %v174
    %v239 = vpack.c.b16 %v179, %v175
    %v240 = vpack.c.b16 %v180, %v176
    %v241 = vpack.c.b16 %v185, %v181
    %v242 = vpack.c.b16 %v186, %v182
    %v243 = vpack.c.b16 %v187, %v183
    %v244 = vpack.c.b16 %v188, %v184
    %v245 = vpack.c.b16 %v193, %v189
    %v246 = vpack.c.b16 %v194, %v190
    %v247 = vpack.c.b16 %v195, %v191
    %v248 = vpack.c.b16 %v196, %v192
    %v249 = vpack.c.b16 %v201, %v197
    %v250 = vpack.c.b16 %v202, %v198
    %v251 = vpack.c.b16 %v203, %v199
    %v252 = vpack.c.b16 %v204, %v200
    %v253 = vpack.c.b16 %v209, %v205
    %v254 = vpack.c.b16 %v210, %v206
    %v255 = vpack.c.b16 %v211, %v207
    %v256 = vpack.c.b16 %v212, %v208
    %v257 = vpack.c.b16 %v217, %v213
    %v258 = vpack.c.b16 %v218, %v214
    %v259 = vpack.c.b16 %v219, %v215
    %v260 = vpack.c.b16 %v220, %v216
    %v261 = vpack.c.b16 %v225, %v221
    %v262 = vpack.c.b16 %v226, %v222
    %v263 = vpack.c.b16 %v227, %v223
    %v264 = vpack.c.b16 %v228, %v224
    %v265 = vpack.c.b16 %v233, %v229
    %v266 = vpack.c.b16 %v234, %v230
    %v267 = vpack.c.b16 %v235, %v231
    %v268 = vpack.c.b16 %v236, %v232
    %301 = vmatpush.bf16.msra.mxu0 %v265
    %302 = vmatpush.bf16.msra.mxu0 %v261
    %303 = vmatpush.bf16.msra.mxu0 %v257
    %304 = vmatpush.bf16.msra.mxu0 %v253
    %305 = vmatpush.bf16.msra.mxu0 %v249
    %306 = vmatpush.bf16.msra.mxu0 %v245
    %307 = vmatpush.bf16.msra.mxu0 %v241
    %308 = vmatpush.bf16.msra.mxu0 %v237
    %309 = vmatmul.bf16.gmra.mxu0 %v133
    %v310 = vpop.f32.mrf.mxu0
    %v311 = vadd.f32 %v109, %v310
    %v312 = vpop.f32.mrf.mxu0
    %v313 = vadd.f32 %v109, %v312
    %314 = vmatmul.bf16.gmra.mxu0 %v134
    %v315 = vpop.f32.mrf.mxu0
    %v316 = vadd.f32 %v109, %v315
    %v317 = vpop.f32.mrf.mxu0
    %v318 = vadd.f32 %v109, %v317
    %319 = vmatmul.bf16.gmra.mxu0 %v135
    %v320 = vpop.f32.mrf.mxu0
    %v321 = vadd.f32 %v109, %v320
    %v322 = vpop.f32.mrf.mxu0
    %v323 = vadd.f32 %v109, %v322
    %324 = vmatmul.bf16.gmra.mxu0 %v136
    %v325 = vpop.f32.mrf.mxu0
    %v326 = vadd.f32 %v109, %v325
    %v327 = vpop.f32.mrf.mxu0
    %v328 = vadd.f32 %v109, %v327
    %329 = vdwg.mxu0
    %330 = vmatpush.bf16.msra.mxu0 %v266
    %331 = vmatpush.bf16.msra.mxu0 %v262
    %332 = vmatpush.bf16.msra.mxu0 %v258
    %333 = vmatpush.bf16.msra.mxu0 %v254
    %334 = vmatpush.bf16.msra.mxu0 %v250
    %335 = vmatpush.bf16.msra.mxu0 %v246
    %336 = vmatpush.bf16.msra.mxu0 %v242
    %337 = vmatpush.bf16.msra.mxu0 %v238
    %338 = vmatmul.bf16.gmra.mxu0 %v133
    %v339 = vpop.f32.mrf.mxu0
    %v340 = vadd.f32 %v110, %v339
    %v341 = vpop.f32.mrf.mxu0
    %v342 = vadd.f32 %v110, %v341
    %343 = vmatmul.bf16.gmra.mxu0 %v134
    %v344 = vpop.f32.mrf.mxu0
    %v345 = vadd.f32 %v110, %v344
    %v346 = vpop.f32.mrf.mxu0
    %v347 = vadd.f32 %v110, %v346
    %348 = vmatmul.bf16.gmra.mxu0 %v135
    %v349 = vpop.f32.mrf.mxu0
    %v350 = vadd.f32 %v110, %v349
    %v351 = vpop.f32.mrf.mxu0
    %v352 = vadd.f32 %v110, %v351
    %353 = vmatmul.bf16.gmra.mxu0 %v136
    %v354 = vpop.f32.mrf.mxu0
    %v355 = vadd.f32 %v110, %v354
    %v356 = vpop.f32.mrf.mxu0
    %v357 = vadd.f32 %v110, %v356
    %358 = vdwg.mxu0
    %359 = vmatpush.bf16.msra.mxu0 %v267
    %360 = vmatpush.bf16.msra.mxu0 %v263
    %361 = vmatpush.bf16.msra.mxu0 %v259
    %362 = vmatpush.bf16.msra.mxu0 %v255
    %363 = vmatpush.bf16.msra.mxu0 %v251
    %364 = vmatpush.bf16.msra.mxu0 %v247
    %365 = vmatpush.bf16.msra.mxu0 %v243
    %366 = vmatpush.bf16.msra.mxu0 %v239
    %367 = vmatmul.bf16.gmra.mxu0 %v133
    %v368 = vpop.f32.mrf.mxu0
    %v369 = vadd.f32 %v111, %v368
    %v370 = vpop.f32.mrf.mxu0
    %v371 = vadd.f32 %v111, %v370
    %372 = vmatmul.bf16.gmra.mxu0 %v134
    %v373 = vpop.f32.mrf.mxu0
    %v374 = vadd.f32 %v111, %v373
    %v375 = vpop.f32.mrf.mxu0
    %v376 = vadd.f32 %v111, %v375
    %377 = vmatmul.bf16.gmra.mxu0 %v135
    %v378 = vpop.f32.mrf.mxu0
    %v379 = vadd.f32 %v111, %v378
    %v380 = vpop.f32.mrf.mxu0
    %v381 = vadd.f32 %v111, %v380
    %382 = vmatmul.bf16.gmra.mxu0 %v136
    %v383 = vpop.f32.mrf.mxu0
    %v384 = vadd.f32 %v111, %v383
    %v385 = vpop.f32.mrf.mxu0
    %v386 = vadd.f32 %v111, %v385
    %387 = vdwg.mxu0
    %388 = vmatpush.bf16.msra.mxu0 %v268
    %389 = vmatpush.bf16.msra.mxu0 %v264
    %390 = vmatpush.bf16.msra.mxu0 %v260
    %391 = vmatpush.bf16.msra.mxu0 %v256
    %392 = vmatpush.bf16.msra.mxu0 %v252
    %393 = vmatpush.bf16.msra.mxu0 %v248
    %394 = vmatpush.bf16.msra.mxu0 %v244
    %395 = vmatpush.bf16.msra.mxu0 %v240
    %396 = vmatmul.bf16.gmra.mxu0 %v133
    %v397 = vpop.f32.mrf.mxu0
    %v398 = vadd.f32 %v112, %v397
    %v399 = vpop.f32.mrf.mxu0
    %v400 = vadd.f32 %v112, %v399
    %401 = vmatmul.bf16.gmra.mxu0 %v134
    %v402 = vpop.f32.mrf.mxu0
    %v403 = vadd.f32 %v112, %v402
    %v404 = vpop.f32.mrf.mxu0
    %v405 = vadd.f32 %v112, %v404
    %406 = vmatmul.bf16.gmra.mxu0 %v135
    %v407 = vpop.f32.mrf.mxu0
    %v408 = vadd.f32 %v112, %v407
    %v409 = vpop.f32.mrf.mxu0
    %v410 = vadd.f32 %v112, %v409
    %411 = vmatmul.bf16.gmra.mxu0 %v136
    %v412 = vpop.f32.mrf.mxu0
    %v413 = vadd.f32 %v112, %v412
    %v414 = vpop.f32.mrf.mxu0
    %v415 = vadd.f32 %v112, %v414
    %416 = vdwg.mxu0
    %417 = vst [vmem:[#allocation4] sm:$0xff] %v311
    %418 = vst [vmem:[#allocation4 + $0x8] sm:$0xff] %v340
    %419 = vst [vmem:[#allocation4 + $0x10] sm:$0xff] %v369
    %420 = vst [vmem:[#allocation4 + $0x18] sm:$0xff] %v398
    %421 = vst [vmem:[#allocation4 + $0x20] sm:$0xff] %v313
    %422 = vst [vmem:[#allocation4 + $0x28] sm:$0xff] %v342
    %423 = vst [vmem:[#allocation4 + $0x30] sm:$0xff] %v371
    %424 = vst [vmem:[#allocation4 + $0x38] sm:$0xff] %v400
    %425 = vst [vmem:[#allocation4 + $0x40] sm:$0xff] %v316
    %426 = vst [vmem:[#allocation4 + $0x48] sm:$0xff] %v345
    %427 = vst [vmem:[#allocation4 + $0x50] sm:$0xff] %v374
    %428 = vst [vmem:[#allocation4 + $0x58] sm:$0xff] %v403
    %429 = vst [vmem:[#allocation4 + $0x60] sm:$0xff] %v318
    %430 = vst [vmem:[#allocation4 + $0x68] sm:$0xff] %v347
    %431 = vst [vmem:[#allocation4 + $0x70] sm:$0xff] %v376
    %432 = vst [vmem:[#allocation4 + $0x78] sm:$0xff] %v405
    %433 = vst [vmem:[#allocation4 + $0x80] sm:$0xff] %v321
    %434 = vst [vmem:[#allocation4 + $0x88] sm:$0xff] %v350
    %435 = vst [vmem:[#allocation4 + $0x90] sm:$0xff] %v379
    %436 = vst [vmem:[#allocation4 + $0x98] sm:$0xff] %v408
    %437 = vst [vmem:[#allocation4 + $0xa0] sm:$0xff] %v323
    %438 = vst [vmem:[#allocation4 + $0xa8] sm:$0xff] %v352
    %439 = vst [vmem:[#allocation4 + $0xb0] sm:$0xff] %v381
    %440 = vst [vmem:[#allocation4 + $0xb8] sm:$0xff] %v410
    %441 = vst [vmem:[#allocation4 + $0xc0] sm:$0xff] %v326
    %442 = vst [vmem:[#allocation4 + $0xc8] sm:$0xff] %v355
    %443 = vst [vmem:[#allocation4 + $0xd0] sm:$0xff] %v384
    %444 = vst [vmem:[#allocation4 + $0xd8] sm:$0xff] %v413
    %445 = vst [vmem:[#allocation4 + $0xe0] sm:$0xff] %v328
    %446 = vst [vmem:[#allocation4 + $0xe8] sm:$0xff] %v357
    %447 = vst [vmem:[#allocation4 + $0xf0] sm:$0xff] %v386
    %448 = vst [vmem:[#allocation4 + $0xf8] sm:$0xff] %v415
    %v449 = vld [vmem:[#allocation7] sm:$0xff]
    %v450 = vld [vmem:[#allocation7 + $0x8] sm:$0xff]
    %v451 = vld [vmem:[#allocation7 + $0x10] sm:$0xff]
    %v452 = vld [vmem:[#allocation7 + $0x18] sm:$0xff]
    %v453 = vld [vmem:[#allocation7 + $0x20] sm:$0xff]
    %v454 = vld [vmem:[#allocation7 + $0x28] sm:$0xff]
    %v455 = vld [vmem:[#allocation7 + $0x30] sm:$0xff]
    %v456 = vld [vmem:[#allocation7 + $0x38] sm:$0xff]
    %v457 = vld [vmem:[#allocation7 + $0x40] sm:$0xff]
    %v458 = vld [vmem:[#allocation7 + $0x48] sm:$0xff]
    %v459 = vld [vmem:[#allocation7 + $0x50] sm:$0xff]
    %v460 = vld [vmem:[#allocation7 + $0x58] sm:$0xff]
    %v461 = vld [vmem:[#allocation7 + $0x60] sm:$0xff]
    %v462 = vld [vmem:[#allocation7 + $0x68] sm:$0xff]
    %v463 = vld [vmem:[#allocation7 + $0x70] sm:$0xff]
    %v464 = vld [vmem:[#allocation7 + $0x78] sm:$0xff]
    %v465 = vld [vmem:[#allocation7 + $0x80] sm:$0xff]
    %v466 = vld [vmem:[#allocation7 + $0x88] sm:$0xff]
    %v467 = vld [vmem:[#allocation7 + $0x90] sm:$0xff]
    %v468 = vld [vmem:[#allocation7 + $0x98] sm:$0xff]
    %v469 = vld [vmem:[#allocation7 + $0xa0] sm:$0xff]
    %v470 = vld [vmem:[#allocation7 + $0xa8] sm:$0xff]
    %v471 = vld [vmem:[#allocation7 + $0xb0] sm:$0xff]
    %v472 = vld [vmem:[#allocation7 + $0xb8] sm:$0xff]
    %v473 = vld [vmem:[#allocation7 + $0xc0] sm:$0xff]
    %v474 = vld [vmem:[#allocation7 + $0xc8] sm:$0xff]
    %v475 = vld [vmem:[#allocation7 + $0xd0] sm:$0xff]
    %v476 = vld [vmem:[#allocation7 + $0xd8] sm:$0xff]
    %v477 = vld [vmem:[#allocation7 + $0xe0] sm:$0xff]
    %v478 = vld [vmem:[#allocation7 + $0xe8] sm:$0xff]
    %v479 = vld [vmem:[#allocation7 + $0xf0] sm:$0xff]
    %v480 = vld [vmem:[#allocation7 + $0xf8] sm:$0xff]
    %v481 = vld [vmem:[#allocation2] sm:$0xff]
    %v482 = vld [vmem:[#allocation3] sm:$0xff]
    %s483 = smul.u32 0, 4
    %s484 = smul.addr %s483, 8
    %s485 = scalar_lea.vmem [#allocation4], %s484
    %v486 = vld [vmem:[%s485] sm:$0xff]
    %v487 = vld [vmem:[%s485 + $0x8] sm:$0xff]
    %v488 = vld [vmem:[%s485 + $0x10] sm:$0xff]
    %v489 = vld [vmem:[%s485 + $0x18] sm:$0xff]
    %v490 = vpack.c.bf16 %v481, %v481
    %v523 = vunpack.c.l.b16 %v449
    %v524 = vunpack.c.h.b16 %v449
    %v525 = vunpack.c.l.b16 %v450
    %v526 = vunpack.c.h.b16 %v450
    %v527 = vunpack.c.l.b16 %v451
    %v528 = vunpack.c.h.b16 %v451
    %v529 = vunpack.c.l.b16 %v452
    %v530 = vunpack.c.h.b16 %v452
    %v531 = vunpack.c.l.b16 %v453
    %v532 = vunpack.c.h.b16 %v453
    %v533 = vunpack.c.l.b16 %v454
    %v534 = vunpack.c.h.b16 %v454
    %v535 = vunpack.c.l.b16 %v455
    %v536 = vunpack.c.h.b16 %v455
    %v537 = vunpack.c.l.b16 %v456
    %v538 = vunpack.c.h.b16 %v456
    %v539 = vunpack.c.l.b16 %v457
    %v540 = vunpack.c.h.b16 %v457
    %v541 = vunpack.c.l.b16 %v458
    %v542 = vunpack.c.h.b16 %v458
    %v543 = vunpack.c.l.b16 %v459
    %v544 = vunpack.c.h.b16 %v459
    %v545 = vunpack.c.l.b16 %v460
    %v546 = vunpack.c.h.b16 %v460
    %v547 = vunpack.c.l.b16 %v461
    %v548 = vunpack.c.h.b16 %v461
    %v549 = vunpack.c.l.b16 %v462
    %v550 = vunpack.c.h.b16 %v462
    %v551 = vunpack.c.l.b16 %v463
    %v552 = vunpack.c.h.b16 %v463
    %v553 = vunpack.c.l.b16 %v464
    %v554 = vunpack.c.h.b16 %v464
    %v555 = vunpack.c.l.b16 %v465
    %v556 = vunpack.c.h.b16 %v465
    %v557 = vunpack.c.l.b16 %v466
    %v558 = vunpack.c.h.b16 %v466
    %v559 = vunpack.c.l.b16 %v467
    %v560 = vunpack.c.h.b16 %v467
    %v561 = vunpack.c.l.b16 %v468
    %v562 = vunpack.c.h.b16 %v468
    %v563 = vunpack.c.l.b16 %v469
    %v564 = vunpack.c.h.b16 %v469
    %v565 = vunpack.c.l.b16 %v470
    %v566 = vunpack.c.h.b16 %v470
    %v567 = vunpack.c.l.b16 %v471
    %v568 = vunpack.c.h.b16 %v471
    %v569 = vunpack.c.l.b16 %v472
    %v570 = vunpack.c.h.b16 %v472
    %v571 = vunpack.c.l.b16 %v473
    %v572 = vunpack.c.h.b16 %v473
    %v573 = vunpack.c.l.b16 %v474
    %v574 = vunpack.c.h.b16 %v474
    %v575 = vunpack.c.l.b16 %v475
    %v576 = vunpack.c.h.b16 %v475
    %v577 = vunpack.c.l.b16 %v476
    %v578 = vunpack.c.h.b16 %v476
    %v579 = vunpack.c.l.b16 %v477
    %v580 = vunpack.c.h.b16 %v477
    %v581 = vunpack.c.l.b16 %v478
    %v582 = vunpack.c.h.b16 %v478
    %v583 = vunpack.c.l.b16 %v479
    %v584 = vunpack.c.h.b16 %v479
    %v585 = vunpack.c.l.b16 %v480
    %v586 = vunpack.c.h.b16 %v480
    %v587 = vpack.c.b16 %v527, %v523
    %v588 = vpack.c.b16 %v528, %v524
    %v589 = vpack.c.b16 %v529, %v525
    %v590 = vpack.c.b16 %v530, %v526
    %v591 = vpack.c.b16 %v535, %v531
    %v592 = vpack.c.b16 %v536, %v532
    %v593 = vpack.c.b16 %v537, %v533
    %v594 = vpack.c.b16 %v538, %v534
    %v595 = vpack.c.b16 %v543, %v539
    %v596 = vpack.c.b16 %v544, %v540
    %v597 = vpack.c.b16 %v545, %v541
    %v598 = vpack.c.b16 %v546, %v542
    %v599 = vpack.c.b16 %v551, %v547
    %v600 = vpack.c.b16 %v552, %v548
    %v601 = vpack.c.b16 %v553, %v549
    %v602 = vpack.c.b16 %v554, %v550
    %v603 = vpack.c.b16 %v559, %v555
    %v604 = vpack.c.b16 %v560, %v556
    %v605 = vpack.c.b16 %v561, %v557
    %v606 = vpack.c.b16 %v562, %v558
    %v607 = vpack.c.b16 %v567, %v563
    %v608 = vpack.c.b16 %v568, %v564
    %v609 = vpack.c.b16 %v569, %v565
    %v610 = vpack.c.b16 %v570, %v566
    %v611 = vpack.c.b16 %v575, %v571
    %v612 = vpack.c.b16 %v576, %v572
    %v613 = vpack.c.b16 %v577, %v573
    %v614 = vpack.c.b16 %v578, %v574
    %v615 = vpack.c.b16 %v583, %v579
    %v616 = vpack.c.b16 %v584, %v580
    %v617 = vpack.c.b16 %v585, %v581
    %v618 = vpack.c.b16 %v586, %v582
    %651 = vmatpush.bf16.msra.mxu0 %v615
    %652 = vmatpush.bf16.msra.mxu0 %v611
    %653 = vmatpush.bf16.msra.mxu0 %v607
    %654 = vmatpush.bf16.msra.mxu0 %v603
    %655 = vmatpush.bf16.msra.mxu0 %v599
    %656 = vmatpush.bf16.msra.mxu0 %v595
    %657 = vmatpush.bf16.msra.mxu0 %v591
    %658 = vmatpush.bf16.msra.mxu0 %v587
    %659 = vmatmul.bf16.gmra.mxu0 %v490
    %v660 = vpop.f32.mrf.mxu0
    %v661 = vadd.f32 0.0, %v660
    %v662 = vpop.f32.mrf.mxu0
    %663 = vdwg.mxu0
    %664 = vmatpush.bf16.msra.mxu0 %v616
    %665 = vmatpush.bf16.msra.mxu0 %v612
    %666 = vmatpush.bf16.msra.mxu0 %v608
    %667 = vmatpush.bf16.msra.mxu0 %v604
    %668 = vmatpush.bf16.msra.mxu0 %v600
    %669 = vmatpush.bf16.msra.mxu0 %v596
    %670 = vmatpush.bf16.msra.mxu0 %v592
    %671 = vmatpush.bf16.msra.mxu0 %v588
    %672 = vmatmul.bf16.gmra.mxu0 %v490
    %v673 = vpop.f32.mrf.mxu0
    %v674 = vadd.f32 0.0, %v673
    %v675 = vpop.f32.mrf.mxu0
    %676 = vdwg.mxu0
    %677 = vmatpush.bf16.msra.mxu0 %v617
    %678 = vmatpush.bf16.msra.mxu0 %v613
    %679 = vmatpush.bf16.msra.mxu0 %v609
    %680 = vmatpush.bf16.msra.mxu0 %v605
    %681 = vmatpush.bf16.msra.mxu0 %v601
    %682 = vmatpush.bf16.msra.mxu0 %v597
    %683 = vmatpush.bf16.msra.mxu0 %v593
    %684 = vmatpush.bf16.msra.mxu0 %v589
    %685 = vmatmul.bf16.gmra.mxu0 %v490
    %v686 = vpop.f32.mrf.mxu0
    %v687 = vadd.f32 0.0, %v686
    %v688 = vpop.f32.mrf.mxu0
    %689 = vdwg.mxu0
    %690 = vmatpush.bf16.msra.mxu0 %v618
    %691 = vmatpush.bf16.msra.mxu0 %v614
    %692 = vmatpush.bf16.msra.mxu0 %v610
    %693 = vmatpush.bf16.msra.mxu0 %v606
    %694 = vmatpush.bf16.msra.mxu0 %v602
    %695 = vmatpush.bf16.msra.mxu0 %v598
    %696 = vmatpush.bf16.msra.mxu0 %v594
    %697 = vmatpush.bf16.msra.mxu0 %v590
    %698 = vmatmul.bf16.gmra.mxu0 %v490
    %v699 = vpop.f32.mrf.mxu0
    %v700 = vadd.f32 0.0, %v699
    %v701 = vpop.f32.mrf.mxu0
    %702 = vdwg.mxu0
    %v703 = vadd.f32 %v486, %v661
    %v704 = vadd.f32 %v487, %v674
    %v705 = vadd.f32 %v488, %v687
    %v706 = vadd.f32 %v489, %v700
    %v707 = vxor.u32 %v703, 2147483648
    %v708 = vxor.u32 %v704, 2147483648
    %v709 = vxor.u32 %v705, 2147483648
    %v710 = vmul.f32 %v707, 1.442695
    %v711 = vpow.pop %v710
    %v712 = vmul.f32 %v708, 1.442695
    %v713 = vpow.pop %v712
    %v714 = vmul.f32 %v709, 1.442695
    %v715 = vpow.pop %v714
    %v716 = vadd.f32 %v711, 1.0
    %v717 = vadd.f32 %v713, 1.0
    %v718 = vadd.f32 %v715, 1.0
    %v719 = vrcp.pop %v716
    %v720 = vmul.f32 %v716, %v719
    %v721 = vsub.f32 1.0, %v720
    %v722 = vmul.f32 %v719, %v721
    %v723 = vadd.f32 %v719, %v722
    %vm724 = vweird.f32 %v716
    %vm725 = vweird.f32 %v719
    %vm726 = vmor %vm724, %vm725
    %v727 = vsel %vm726, %v719, %v723
    %v728 = vand.u32 2147483647, %v716
    %vm729 = vcmp.eq.f32.partialorder %v728, 8.507059e+37
    %v730 = vand.u32 %v716, 2147483648
    %v731 = vor.u32 1.1754944e-38, %v730
    %v732 = vsel %vm729, %v731, %v727
    %v733 = vmul.f32 1.0, %v732
    %v734 = vrcp.pop %v717
    %v735 = vmul.f32 %v717, %v734
    %v736 = vsub.f32 1.0, %v735
    %v737 = vmul.f32 %v734, %v736
    %v738 = vadd.f32 %v734, %v737
    %vm739 = vweird.f32 %v717
    %vm740 = vweird.f32 %v734
    %vm741 = vmor %vm739, %vm740
    %v742 = vsel %vm741, %v734, %v738
    %v743 = vand.u32 2147483647, %v717
    %vm744 = vcmp.eq.f32.partialorder %v743, 8.507059e+37
    %v745 = vand.u32 %v717, 2147483648
    %v746 = vor.u32 1.1754944e-38, %v745
    %v747 = vsel %vm744, %v746, %v742
    %v748 = vmul.f32 1.0, %v747
    %v749 = vrcp.pop %v718
    %v750 = vmul.f32 %v718, %v749
    %v751 = vsub.f32 1.0, %v750
    %v752 = vmul.f32 %v749, %v751
    %v753 = vadd.f32 %v749, %v752
    %vm754 = vweird.f32 %v718
    %vm755 = vweird.f32 %v749
    %vm756 = vmor %vm754, %vm755
    %v757 = vsel %vm756, %v749, %v753
    %v758 = vand.u32 2147483647, %v718
    %vm759 = vcmp.eq.f32.partialorder %v758, 8.507059e+37
    %v760 = vand.u32 %v718, 2147483648
    %v761 = vor.u32 1.1754944e-38, %v760
    %v762 = vsel %vm759, %v761, %v757
    %v763 = vmul.f32 1.0, %v762
    %v764 = vtanh.pop %v706
    %v765 = vmul.f32 %v748, %v482
    %v766 = vmul.f32 %v733, %v764
    %v767 = vadd.f32 %v765, %v766
    %v768 = vtanh.pop %v767
    %v769 = vmul.f32 %v763, %v768
    %s770 = smul.u32 1, 4
    %s771 = smul.addr %s770, 8
    %s772 = scalar_lea.vmem [#allocation4], %s771
    %v773 = vld [vmem:[%s772] sm:$0xff]
    %v774 = vld [vmem:[%s772 + $0x8] sm:$0xff]
    %v775 = vld [vmem:[%s772 + $0x10] sm:$0xff]
    %v776 = vld [vmem:[%s772 + $0x18] sm:$0xff]
    %v777 = vpack.c.bf16 %v769, %v769
    %778 = vmatpush.bf16.msra.mxu0 %v615
    %779 = vmatpush.bf16.msra.mxu0 %v611
    %780 = vmatpush.bf16.msra.mxu0 %v607
    %781 = vmatpush.bf16.msra.mxu0 %v603
    %782 = vmatpush.bf16.msra.mxu0 %v599
    %783 = vmatpush.bf16.msra.mxu0 %v595
    %784 = vmatpush.bf16.msra.mxu0 %v591
    %785 = vmatpush.bf16.msra.mxu0 %v587
    %786 = vmatmul.bf16.gmra.mxu0 %v777
    %v787 = vpop.f32.mrf.mxu0
    %v788 = vadd.f32 0.0, %v787
    %v789 = vpop.f32.mrf.mxu0
    %790 = vdwg.mxu0
    %791 = vmatpush.bf16.msra.mxu0 %v616
    %792 = vmatpush.bf16.msra.mxu0 %v612
    %793 = vmatpush.bf16.msra.mxu0 %v608
    %794 = vmatpush.bf16.msra.mxu0 %v604
    %795 = vmatpush.bf16.msra.mxu0 %v600
    %796 = vmatpush.bf16.msra.mxu0 %v596
    %797 = vmatpush.bf16.msra.mxu0 %v592
    %798 = vmatpush.bf16.msra.mxu0 %v588
    %799 = vmatmul.bf16.gmra.mxu0 %v777
    %v800 = vpop.f32.mrf.mxu0
    %v801 = vadd.f32 0.0, %v800
    %v802 = vpop.f32.mrf.mxu0
    %803 = vdwg.mxu0
    %804 = vmatpush.bf16.msra.mxu0 %v617
    %805 = vmatpush.bf16.msra.mxu0 %v613
    %806 = vmatpush.bf16.msra.mxu0 %v609
    %807 = vmatpush.bf16.msra.mxu0 %v605
    %808 = vmatpush.bf16.msra.mxu0 %v601
    %809 = vmatpush.bf16.msra.mxu0 %v597
    %810 = vmatpush.bf16.msra.mxu0 %v593
    %811 = vmatpush.bf16.msra.mxu0 %v589
    %812 = vmatmul.bf16.gmra.mxu0 %v777
    %v813 = vpop.f32.mrf.mxu0
    %v814 = vadd.f32 0.0, %v813
    %v815 = vpop.f32.mrf.mxu0
    %816 = vdwg.mxu0
    %817 = vmatpush.bf16.msra.mxu0 %v618
    %818 = vmatpush.bf16.msra.mxu0 %v614
    %819 = vmatpush.bf16.msra.mxu0 %v610
    %820 = vmatpush.bf16.msra.mxu0 %v606
    %821 = vmatpush.bf16.msra.mxu0 %v602
    %822 = vmatpush.bf16.msra.mxu0 %v598
    %823 = vmatpush.bf16.msra.mxu0 %v594
    %824 = vmatpush.bf16.msra.mxu0 %v590
    %825 = vmatmul.bf16.gmra.mxu0 %v777
    %v826 = vpop.f32.mrf.mxu0
    %v827 = vadd.f32 0.0, %v826
    %v828 = vpop.f32.mrf.mxu0
    %829 = vdwg.mxu0
    %v830 = vadd.f32 %v773, %v788
    %v831 = vadd.f32 %v774, %v801
    %v832 = vadd.f32 %v775, %v814
    %v833 = vadd.f32 %v776, %v827
    %v834 = vxor.u32 %v830, 2147483648
    %v835 = vxor.u32 %v831, 2147483648
    %v836 = vxor.u32 %v832, 2147483648
    %v837 = vmul.f32 %v834, 1.442695
    %v838 = vpow.pop %v837
    %v839 = vmul.f32 %v835, 1.442695
    %v840 = vpow.pop %v839
    %v841 = vmul.f32 %v836, 1.442695
    %v842 = vpow.pop %v841
    %v843 = vadd.f32 %v838, 1.0
    %v844 = vadd.f32 %v840, 1.0
    %v845 = vadd.f32 %v842, 1.0
    %v846 = vrcp.pop %v843
    %v847 = vmul.f32 %v843, %v846
    %v848 = vsub.f32 1.0, %v847
    %v849 = vmul.f32 %v846, %v848
    %v850 = vadd.f32 %v846, %v849
    %vm851 = vweird.f32 %v843
    %vm852 = vweird.f32 %v846
    %vm853 = vmor %vm851, %vm852
    %v854 = vsel %vm853, %v846, %v850
    %v855 = vand.u32 2147483647, %v843
    %vm856 = vcmp.eq.f32.partialorder %v855, 8.507059e+37
    %v857 = vand.u32 %v843, 2147483648
    %v858 = vor.u32 1.1754944e-38, %v857
    %v859 = vsel %vm856, %v858, %v854
    %v860 = vmul.f32 1.0, %v859
    %v861 = vrcp.pop %v844
    %v862 = vmul.f32 %v844, %v861
    %v863 = vsub.f32 1.0, %v862
    %v864 = vmul.f32 %v861, %v863
    %v865 = vadd.f32 %v861, %v864
    %vm866 = vweird.f32 %v844
    %vm867 = vweird.f32 %v861
    %vm868 = vmor %vm866, %vm867
    %v869 = vsel %vm868, %v861, %v865
    %v870 = vand.u32 2147483647, %v844
    %vm871 = vcmp.eq.f32.partialorder %v870, 8.507059e+37
    %v872 = vand.u32 %v844, 2147483648
    %v873 = vor.u32 1.1754944e-38, %v872
    %v874 = vsel %vm871, %v873, %v869
    %v875 = vmul.f32 1.0, %v874
    %v876 = vrcp.pop %v845
    %v877 = vmul.f32 %v845, %v876
    %v878 = vsub.f32 1.0, %v877
    %v879 = vmul.f32 %v876, %v878
    %v880 = vadd.f32 %v876, %v879
    %vm881 = vweird.f32 %v845
    %vm882 = vweird.f32 %v876
    %vm883 = vmor %vm881, %vm882
    %v884 = vsel %vm883, %v876, %v880
    %v885 = vand.u32 2147483647, %v845
    %vm886 = vcmp.eq.f32.partialorder %v885, 8.507059e+37
    %v887 = vand.u32 %v845, 2147483648
    %v888 = vor.u32 1.1754944e-38, %v887
    %v889 = vsel %vm886, %v888, %v884
    %v890 = vmul.f32 1.0, %v889
    %v891 = vtanh.pop %v833
    %v892 = vmul.f32 %v875, %v767
    %v893 = vmul.f32 %v860, %v891
    %v894 = vadd.f32 %v892, %v893
    %v895 = vtanh.pop %v894
    %v896 = vmul.f32 %v890, %v895
    %s897 = smul.u32 2, 4
    %s898 = smul.addr %s897, 8
    %s899 = scalar_lea.vmem [#allocation4], %s898
    %v900 = vld [vmem:[%s899] sm:$0xff]
    %v901 = vld [vmem:[%s899 + $0x8] sm:$0xff]
    %v902 = vld [vmem:[%s899 + $0x10] sm:$0xff]
    %v903 = vld [vmem:[%s899 + $0x18] sm:$0xff]
    %v904 = vpack.c.bf16 %v896, %v896
    %905 = vmatpush.bf16.msra.mxu0 %v615
    %906 = vmatpush.bf16.msra.mxu0 %v611
    %907 = vmatpush.bf16.msra.mxu0 %v607
    %908 = vmatpush.bf16.msra.mxu0 %v603
    %909 = vmatpush.bf16.msra.mxu0 %v599
    %910 = vmatpush.bf16.msra.mxu0 %v595
    %911 = vmatpush.bf16.msra.mxu0 %v591
    %912 = vmatpush.bf16.msra.mxu0 %v587
    %913 = vmatmul.bf16.gmra.mxu0 %v904
    %v914 = vpop.f32.mrf.mxu0
    %v915 = vadd.f32 0.0, %v914
    %v916 = vpop.f32.mrf.mxu0
    %917 = vdwg.mxu0
    %918 = vmatpush.bf16.msra.mxu0 %v616
    %919 = vmatpush.bf16.msra.mxu0 %v612
    %920 = vmatpush.bf16.msra.mxu0 %v608
    %921 = vmatpush.bf16.msra.mxu0 %v604
    %922 = vmatpush.bf16.msra.mxu0 %v600
    %923 = vmatpush.bf16.msra.mxu0 %v596
    %924 = vmatpush.bf16.msra.mxu0 %v592
    %925 = vmatpush.bf16.msra.mxu0 %v588
    %926 = vmatmul.bf16.gmra.mxu0 %v904
    %v927 = vpop.f32.mrf.mxu0
    %v928 = vadd.f32 0.0, %v927
    %v929 = vpop.f32.mrf.mxu0
    %930 = vdwg.mxu0
    %931 = vmatpush.bf16.msra.mxu0 %v617
    %932 = vmatpush.bf16.msra.mxu0 %v613
    %933 = vmatpush.bf16.msra.mxu0 %v609
    %934 = vmatpush.bf16.msra.mxu0 %v605
    %935 = vmatpush.bf16.msra.mxu0 %v601
    %936 = vmatpush.bf16.msra.mxu0 %v597
    %937 = vmatpush.bf16.msra.mxu0 %v593
    %938 = vmatpush.bf16.msra.mxu0 %v589
    %939 = vmatmul.bf16.gmra.mxu0 %v904
    %v940 = vpop.f32.mrf.mxu0
    %v941 = vadd.f32 0.0, %v940
    %v942 = vpop.f32.mrf.mxu0
    %943 = vdwg.mxu0
    %944 = vmatpush.bf16.msra.mxu0 %v618
    %945 = vmatpush.bf16.msra.mxu0 %v614
    %946 = vmatpush.bf16.msra.mxu0 %v610
    %947 = vmatpush.bf16.msra.mxu0 %v606
    %948 = vmatpush.bf16.msra.mxu0 %v602
    %949 = vmatpush.bf16.msra.mxu0 %v598
    %950 = vmatpush.bf16.msra.mxu0 %v594
    %951 = vmatpush.bf16.msra.mxu0 %v590
    %952 = vmatmul.bf16.gmra.mxu0 %v904
    %v953 = vpop.f32.mrf.mxu0
    %v954 = vadd.f32 0.0, %v953
    %v955 = vpop.f32.mrf.mxu0
    %956 = vdwg.mxu0
    %v957 = vadd.f32 %v900, %v915
    %v958 = vadd.f32 %v901, %v928
    %v959 = vadd.f32 %v902, %v941
    %v960 = vadd.f32 %v903, %v954
    %v961 = vxor.u32 %v957, 2147483648
    %v962 = vxor.u32 %v958, 2147483648
    %v963 = vxor.u32 %v959, 2147483648
    %v964 = vmul.f32 %v961, 1.442695
    %v965 = vpow.pop %v964
    %v966 = vmul.f32 %v962, 1.442695
    %v967 = vpow.pop %v966
    %v968 = vmul.f32 %v963, 1.442695
    %v969 = vpow.pop %v968
    %v970 = vadd.f32 %v965, 1.0
    %v971 = vadd.f32 %v967, 1.0
    %v972 = vadd.f32 %v969, 1.0
    %v973 = vrcp.pop %v970
    %v974 = vmul.f32 %v970, %v973
    %v975 = vsub.f32 1.0, %v974
    %v976 = vmul.f32 %v973, %v975
    %v977 = vadd.f32 %v973, %v976
    %vm978 = vweird.f32 %v970
    %vm979 = vweird.f32 %v973
    %vm980 = vmor %vm978, %vm979
    %v981 = vsel %vm980, %v973, %v977
    %v982 = vand.u32 2147483647, %v970
    %vm983 = vcmp.eq.f32.partialorder %v982, 8.507059e+37
    %v984 = vand.u32 %v970, 2147483648
    %v985 = vor.u32 1.1754944e-38, %v984
    %v986 = vsel %vm983, %v985, %v981
    %v987 = vmul.f32 1.0, %v986
    %v988 = vrcp.pop %v971
    %v989 = vmul.f32 %v971, %v988
    %v990 = vsub.f32 1.0, %v989
    %v991 = vmul.f32 %v988, %v990
    %v992 = vadd.f32 %v988, %v991
    %vm993 = vweird.f32 %v971
    %vm994 = vweird.f32 %v988
    %vm995 = vmor %vm993, %vm994
    %v996 = vsel %vm995, %v988, %v992
    %v997 = vand.u32 2147483647, %v971
    %vm998 = vcmp.eq.f32.partialorder %v997, 8.507059e+37
    %v999 = vand.u32 %v971, 2147483648
    %v1000 = vor.u32 1.1754944e-38, %v999
    %v1001 = vsel %vm998, %v1000, %v996
    %v1002 = vmul.f32 1.0, %v1001
    %v1003 = vrcp.pop %v972
    %v1004 = vmul.f32 %v972, %v1003
    %v1005 = vsub.f32 1.0, %v1004
    %v1006 = vmul.f32 %v1003, %v1005
    %v1007 = vadd.f32 %v1003, %v1006
    %vm1008 = vweird.f32 %v972
    %vm1009 = vweird.f32 %v1003
    %vm1010 = vmor %vm1008, %vm1009
    %v1011 = vsel %vm1010, %v1003, %v1007
    %v1012 = vand.u32 2147483647, %v972
    %vm1013 = vcmp.eq.f32.partialorder %v1012, 8.507059e+37
    %v1014 = vand.u32 %v972, 2147483648
    %v1015 = vor.u32 1.1754944e-38, %v1014
    %v1016 = vsel %vm1013, %v1015, %v1011
    %v1017 = vmul.f32 1.0, %v1016
    %v1018 = vtanh.pop %v960
    %v1019 = vmul.f32 %v1002, %v894
    %v1020 = vmul.f32 %v987, %v1018
    %v1021 = vadd.f32 %v1019, %v1020
    %v1022 = vtanh.pop %v1021
    %v1023 = vmul.f32 %v1017, %v1022
    %s1024 = smul.u32 3, 4
    %s1025 = smul.addr %s1024, 8
    %s1026 = scalar_lea.vmem [#allocation4], %s1025
    %v1027 = vld [vmem:[%s1026] sm:$0xff]
    %v1028 = vld [vmem:[%s1026 + $0x8] sm:$0xff]
    %v1029 = vld [vmem:[%s1026 + $0x10] sm:$0xff]
    %v1030 = vld [vmem:[%s1026 + $0x18] sm:$0xff]
    %v1031 = vpack.c.bf16 %v1023, %v1023
    %1032 = vmatpush.bf16.msra.mxu0 %v615
    %1033 = vmatpush.bf16.msra.mxu0 %v611
    %1034 = vmatpush.bf16.msra.mxu0 %v607
    %1035 = vmatpush.bf16.msra.mxu0 %v603
    %1036 = vmatpush.bf16.msra.mxu0 %v599
    %1037 = vmatpush.bf16.msra.mxu0 %v595
    %1038 = vmatpush.bf16.msra.mxu0 %v591
    %1039 = vmatpush.bf16.msra.mxu0 %v587
    %1040 = vmatmul.bf16.gmra.mxu0 %v1031
    %v1041 = vpop.f32.mrf.mxu0
    %v1042 = vadd.f32 0.0, %v1041
    %v1043 = vpop.f32.mrf.mxu0
    %1044 = vdwg.mxu0
    %1045 = vmatpush.bf16.msra.mxu0 %v616
    %1046 = vmatpush.bf16.msra.mxu0 %v612
    %1047 = vmatpush.bf16.msra.mxu0 %v608
    %1048 = vmatpush.bf16.msra.mxu0 %v604
    %1049 = vmatpush.bf16.msra.mxu0 %v600
    %1050 = vmatpush.bf16.msra.mxu0 %v596
    %1051 = vmatpush.bf16.msra.mxu0 %v592
    %1052 = vmatpush.bf16.msra.mxu0 %v588
    %1053 = vmatmul.bf16.gmra.mxu0 %v1031
    %v1054 = vpop.f32.mrf.mxu0
    %v1055 = vadd.f32 0.0, %v1054
    %v1056 = vpop.f32.mrf.mxu0
    %1057 = vdwg.mxu0
    %1058 = vmatpush.bf16.msra.mxu0 %v617
    %1059 = vmatpush.bf16.msra.mxu0 %v613
    %1060 = vmatpush.bf16.msra.mxu0 %v609
    %1061 = vmatpush.bf16.msra.mxu0 %v605
    %1062 = vmatpush.bf16.msra.mxu0 %v601
    %1063 = vmatpush.bf16.msra.mxu0 %v597
    %1064 = vmatpush.bf16.msra.mxu0 %v593
    %1065 = vmatpush.bf16.msra.mxu0 %v589
    %1066 = vmatmul.bf16.gmra.mxu0 %v1031
    %v1067 = vpop.f32.mrf.mxu0
    %v1068 = vadd.f32 0.0, %v1067
    %v1069 = vpop.f32.mrf.mxu0
    %1070 = vdwg.mxu0
    %1071 = vmatpush.bf16.msra.mxu0 %v618
    %1072 = vmatpush.bf16.msra.mxu0 %v614
    %1073 = vmatpush.bf16.msra.mxu0 %v610
    %1074 = vmatpush.bf16.msra.mxu0 %v606
    %1075 = vmatpush.bf16.msra.mxu0 %v602
    %1076 = vmatpush.bf16.msra.mxu0 %v598
    %1077 = vmatpush.bf16.msra.mxu0 %v594
    %1078 = vmatpush.bf16.msra.mxu0 %v590
    %1079 = vmatmul.bf16.gmra.mxu0 %v1031
    %v1080 = vpop.f32.mrf.mxu0
    %v1081 = vadd.f32 0.0, %v1080
    %v1082 = vpop.f32.mrf.mxu0
    %1083 = vdwg.mxu0
    %v1084 = vadd.f32 %v1027, %v1042
    %v1085 = vadd.f32 %v1028, %v1055
    %v1086 = vadd.f32 %v1029, %v1068
    %v1087 = vadd.f32 %v1030, %v1081
    %v1088 = vxor.u32 %v1084, 2147483648
    %v1089 = vxor.u32 %v1085, 2147483648
    %v1090 = vxor.u32 %v1086, 2147483648
    %v1091 = vmul.f32 %v1088, 1.442695
    %v1092 = vpow.pop %v1091
    %v1093 = vmul.f32 %v1089, 1.442695
    %v1094 = vpow.pop %v1093
    %v1095 = vmul.f32 %v1090, 1.442695
    %v1096 = vpow.pop %v1095
    %v1097 = vadd.f32 %v1092, 1.0
    %v1098 = vadd.f32 %v1094, 1.0
    %v1099 = vadd.f32 %v1096, 1.0
    %v1100 = vrcp.pop %v1097
    %v1101 = vmul.f32 %v1097, %v1100
    %v1102 = vsub.f32 1.0, %v1101
    %v1103 = vmul.f32 %v1100, %v1102
    %v1104 = vadd.f32 %v1100, %v1103
    %vm1105 = vweird.f32 %v1097
    %vm1106 = vweird.f32 %v1100
    %vm1107 = vmor %vm1105, %vm1106
    %v1108 = vsel %vm1107, %v1100, %v1104
    %v1109 = vand.u32 2147483647, %v1097
    %vm1110 = vcmp.eq.f32.partialorder %v1109, 8.507059e+37
    %v1111 = vand.u32 %v1097, 2147483648
    %v1112 = vor.u32 1.1754944e-38, %v1111
    %v1113 = vsel %vm1110, %v1112, %v1108
    %v1114 = vmul.f32 1.0, %v1113
    %v1115 = vrcp.pop %v1098
    %v1116 = vmul.f32 %v1098, %v1115
    %v1117 = vsub.f32 1.0, %v1116
    %v1118 = vmul.f32 %v1115, %v1117
    %v1119 = vadd.f32 %v1115, %v1118
    %vm1120 = vweird.f32 %v1098
    %vm1121 = vweird.f32 %v1115
    %vm1122 = vmor %vm1120, %vm1121
    %v1123 = vsel %vm1122, %v1115, %v1119
    %v1124 = vand.u32 2147483647, %v1098
    %vm1125 = vcmp.eq.f32.partialorder %v1124, 8.507059e+37
    %v1126 = vand.u32 %v1098, 2147483648
    %v1127 = vor.u32 1.1754944e-38, %v1126
    %v1128 = vsel %vm1125, %v1127, %v1123
    %v1129 = vmul.f32 1.0, %v1128
    %v1130 = vrcp.pop %v1099
    %v1131 = vmul.f32 %v1099, %v1130
    %v1132 = vsub.f32 1.0, %v1131
    %v1133 = vmul.f32 %v1130, %v1132
    %v1134 = vadd.f32 %v1130, %v1133
    %vm1135 = vweird.f32 %v1099
    %vm1136 = vweird.f32 %v1130
    %vm1137 = vmor %vm1135, %vm1136
    %v1138 = vsel %vm1137, %v1130, %v1134
    %v1139 = vand.u32 2147483647, %v1099
    %vm1140 = vcmp.eq.f32.partialorder %v1139, 8.507059e+37
    %v1141 = vand.u32 %v1099, 2147483648
    %v1142 = vor.u32 1.1754944e-38, %v1141
    %v1143 = vsel %vm1140, %v1142, %v1138
    %v1144 = vmul.f32 1.0, %v1143
    %v1145 = vtanh.pop %v1087
    %v1146 = vmul.f32 %v1129, %v1021
    %v1147 = vmul.f32 %v1114, %v1145
    %v1148 = vadd.f32 %v1146, %v1147
    %v1149 = vtanh.pop %v1148
    %v1150 = vmul.f32 %v1144, %v1149
    %s1151 = smul.u32 4, 4
    %s1152 = smul.addr %s1151, 8
    %s1153 = scalar_lea.vmem [#allocation4], %s1152
    %v1154 = vld [vmem:[%s1153] sm:$0xff]
    %v1155 = vld [vmem:[%s1153 + $0x8] sm:$0xff]
    %v1156 = vld [vmem:[%s1153 + $0x10] sm:$0xff]
    %v1157 = vld [vmem:[%s1153 + $0x18] sm:$0xff]
    %v1158 = vpack.c.bf16 %v1150, %v1150
    %1159 = vmatpush.bf16.msra.mxu0 %v615
    %1160 = vmatpush.bf16.msra.mxu0 %v611
    %1161 = vmatpush.bf16.msra.mxu0 %v607
    %1162 = vmatpush.bf16.msra.mxu0 %v603
    %1163 = vmatpush.bf16.msra.mxu0 %v599
    %1164 = vmatpush.bf16.msra.mxu0 %v595
    %1165 = vmatpush.bf16.msra.mxu0 %v591
    %1166 = vmatpush.bf16.msra.mxu0 %v587
    %1167 = vmatmul.bf16.gmra.mxu0 %v1158
    %v1168 = vpop.f32.mrf.mxu0
    %v1169 = vadd.f32 0.0, %v1168
    %v1170 = vpop.f32.mrf.mxu0
    %1171 = vdwg.mxu0
    %1172 = vmatpush.bf16.msra.mxu0 %v616
    %1173 = vmatpush.bf16.msra.mxu0 %v612
    %1174 = vmatpush.bf16.msra.mxu0 %v608
    %1175 = vmatpush.bf16.msra.mxu0 %v604
    %1176 = vmatpush.bf16.msra.mxu0 %v600
    %1177 = vmatpush.bf16.msra.mxu0 %v596
    %1178 = vmatpush.bf16.msra.mxu0 %v592
    %1179 = vmatpush.bf16.msra.mxu0 %v588
    %1180 = vmatmul.bf16.gmra.mxu0 %v1158
    %v1181 = vpop.f32.mrf.mxu0
    %v1182 = vadd.f32 0.0, %v1181
    %v1183 = vpop.f32.mrf.mxu0
    %1184 = vdwg.mxu0
    %1185 = vmatpush.bf16.msra.mxu0 %v617
    %1186 = vmatpush.bf16.msra.mxu0 %v613
    %1187 = vmatpush.bf16.msra.mxu0 %v609
    %1188 = vmatpush.bf16.msra.mxu0 %v605
    %1189 = vmatpush.bf16.msra.mxu0 %v601
    %1190 = vmatpush.bf16.msra.mxu0 %v597
    %1191 = vmatpush.bf16.msra.mxu0 %v593
    %1192 = vmatpush.bf16.msra.mxu0 %v589
    %1193 = vmatmul.bf16.gmra.mxu0 %v1158
    %v1194 = vpop.f32.mrf.mxu0
    %v1195 = vadd.f32 0.0, %v1194
    %v1196 = vpop.f32.mrf.mxu0
    %1197 = vdwg.mxu0
    %1198 = vmatpush.bf16.msra.mxu0 %v618
    %1199 = vmatpush.bf16.msra.mxu0 %v614
    %1200 = vmatpush.bf16.msra.mxu0 %v610
    %1201 = vmatpush.bf16.msra.mxu0 %v606
    %1202 = vmatpush.bf16.msra.mxu0 %v602
    %1203 = vmatpush.bf16.msra.mxu0 %v598
    %1204 = vmatpush.bf16.msra.mxu0 %v594
    %1205 = vmatpush.bf16.msra.mxu0 %v590
    %1206 = vmatmul.bf16.gmra.mxu0 %v1158
    %v1207 = vpop.f32.mrf.mxu0
    %v1208 = vadd.f32 0.0, %v1207
    %v1209 = vpop.f32.mrf.mxu0
    %1210 = vdwg.mxu0
    %v1211 = vadd.f32 %v1154, %v1169
    %v1212 = vadd.f32 %v1155, %v1182
    %v1213 = vadd.f32 %v1156, %v1195
    %v1214 = vadd.f32 %v1157, %v1208
    %v1215 = vxor.u32 %v1211, 2147483648
    %v1216 = vxor.u32 %v1212, 2147483648
    %v1217 = vxor.u32 %v1213, 2147483648
    %v1218 = vmul.f32 %v1215, 1.442695
    %v1219 = vpow.pop %v1218
    %v1220 = vmul.f32 %v1216, 1.442695
    %v1221 = vpow.pop %v1220
    %v1222 = vmul.f32 %v1217, 1.442695
    %v1223 = vpow.pop %v1222
    %v1224 = vadd.f32 %v1219, 1.0
    %v1225 = vadd.f32 %v1221, 1.0
    %v1226 = vadd.f32 %v1223, 1.0
    %v1227 = vrcp.pop %v1224
    %v1228 = vmul.f32 %v1224, %v1227
    %v1229 = vsub.f32 1.0, %v1228
    %v1230 = vmul.f32 %v1227, %v1229
    %v1231 = vadd.f32 %v1227, %v1230
    %vm1232 = vweird.f32 %v1224
    %vm1233 = vweird.f32 %v1227
    %vm1234 = vmor %vm1232, %vm1233
    %v1235 = vsel %vm1234, %v1227, %v1231
    %v1236 = vand.u32 2147483647, %v1224
    %vm1237 = vcmp.eq.f32.partialorder %v1236, 8.507059e+37
    %v1238 = vand.u32 %v1224, 2147483648
    %v1239 = vor.u32 1.1754944e-38, %v1238
    %v1240 = vsel %vm1237, %v1239, %v1235
    %v1241 = vmul.f32 1.0, %v1240
    %v1242 = vrcp.pop %v1225
    %v1243 = vmul.f32 %v1225, %v1242
    %v1244 = vsub.f32 1.0, %v1243
    %v1245 = vmul.f32 %v1242, %v1244
    %v1246 = vadd.f32 %v1242, %v1245
    %vm1247 = vweird.f32 %v1225
    %vm1248 = vweird.f32 %v1242
    %vm1249 = vmor %vm1247, %vm1248
    %v1250 = vsel %vm1249, %v1242, %v1246
    %v1251 = vand.u32 2147483647, %v1225
    %vm1252 = vcmp.eq.f32.partialorder %v1251, 8.507059e+37
    %v1253 = vand.u32 %v1225, 2147483648
    %v1254 = vor.u32 1.1754944e-38, %v1253
    %v1255 = vsel %vm1252, %v1254, %v1250
    %v1256 = vmul.f32 1.0, %v1255
    %v1257 = vrcp.pop %v1226
    %v1258 = vmul.f32 %v1226, %v1257
    %v1259 = vsub.f32 1.0, %v1258
    %v1260 = vmul.f32 %v1257, %v1259
    %v1261 = vadd.f32 %v1257, %v1260
    %vm1262 = vweird.f32 %v1226
    %vm1263 = vweird.f32 %v1257
    %vm1264 = vmor %vm1262, %vm1263
    %v1265 = vsel %vm1264, %v1257, %v1261
    %v1266 = vand.u32 2147483647, %v1226
    %vm1267 = vcmp.eq.f32.partialorder %v1266, 8.507059e+37
    %v1268 = vand.u32 %v1226, 2147483648
    %v1269 = vor.u32 1.1754944e-38, %v1268
    %v1270 = vsel %vm1267, %v1269, %v1265
    %v1271 = vmul.f32 1.0, %v1270
    %v1272 = vtanh.pop %v1214
    %v1273 = vmul.f32 %v1256, %v1148
    %v1274 = vmul.f32 %v1241, %v1272
    %v1275 = vadd.f32 %v1273, %v1274
    %v1276 = vtanh.pop %v1275
    %v1277 = vmul.f32 %v1271, %v1276
    %s1278 = smul.u32 5, 4
    %s1279 = smul.addr %s1278, 8
    %s1280 = scalar_lea.vmem [#allocation4], %s1279
    %v1281 = vld [vmem:[%s1280] sm:$0xff]
    %v1282 = vld [vmem:[%s1280 + $0x8] sm:$0xff]
    %v1283 = vld [vmem:[%s1280 + $0x10] sm:$0xff]
    %v1284 = vld [vmem:[%s1280 + $0x18] sm:$0xff]
    %v1285 = vpack.c.bf16 %v1277, %v1277
    %1286 = vmatpush.bf16.msra.mxu0 %v615
    %1287 = vmatpush.bf16.msra.mxu0 %v611
    %1288 = vmatpush.bf16.msra.mxu0 %v607
    %1289 = vmatpush.bf16.msra.mxu0 %v603
    %1290 = vmatpush.bf16.msra.mxu0 %v599
    %1291 = vmatpush.bf16.msra.mxu0 %v595
    %1292 = vmatpush.bf16.msra.mxu0 %v591
    %1293 = vmatpush.bf16.msra.mxu0 %v587
    %1294 = vmatmul.bf16.gmra.mxu0 %v1285
    %v1295 = vpop.f32.mrf.mxu0
    %v1296 = vadd.f32 0.0, %v1295
    %v1297 = vpop.f32.mrf.mxu0
    %1298 = vdwg.mxu0
    %1299 = vmatpush.bf16.msra.mxu0 %v616
    %1300 = vmatpush.bf16.msra.mxu0 %v612
    %1301 = vmatpush.bf16.msra.mxu0 %v608
    %1302 = vmatpush.bf16.msra.mxu0 %v604
    %1303 = vmatpush.bf16.msra.mxu0 %v600
    %1304 = vmatpush.bf16.msra.mxu0 %v596
    %1305 = vmatpush.bf16.msra.mxu0 %v592
    %1306 = vmatpush.bf16.msra.mxu0 %v588
    %1307 = vmatmul.bf16.gmra.mxu0 %v1285
    %v1308 = vpop.f32.mrf.mxu0
    %v1309 = vadd.f32 0.0, %v1308
    %v1310 = vpop.f32.mrf.mxu0
    %1311 = vdwg.mxu0
    %1312 = vmatpush.bf16.msra.mxu0 %v617
    %1313 = vmatpush.bf16.msra.mxu0 %v613
    %1314 = vmatpush.bf16.msra.mxu0 %v609
    %1315 = vmatpush.bf16.msra.mxu0 %v605
    %1316 = vmatpush.bf16.msra.mxu0 %v601
    %1317 = vmatpush.bf16.msra.mxu0 %v597
    %1318 = vmatpush.bf16.msra.mxu0 %v593
    %1319 = vmatpush.bf16.msra.mxu0 %v589
    %1320 = vmatmul.bf16.gmra.mxu0 %v1285
    %v1321 = vpop.f32.mrf.mxu0
    %v1322 = vadd.f32 0.0, %v1321
    %v1323 = vpop.f32.mrf.mxu0
    %1324 = vdwg.mxu0
    %1325 = vmatpush.bf16.msra.mxu0 %v618
    %1326 = vmatpush.bf16.msra.mxu0 %v614
    %1327 = vmatpush.bf16.msra.mxu0 %v610
    %1328 = vmatpush.bf16.msra.mxu0 %v606
    %1329 = vmatpush.bf16.msra.mxu0 %v602
    %1330 = vmatpush.bf16.msra.mxu0 %v598
    %1331 = vmatpush.bf16.msra.mxu0 %v594
    %1332 = vmatpush.bf16.msra.mxu0 %v590
    %1333 = vmatmul.bf16.gmra.mxu0 %v1285
    %v1334 = vpop.f32.mrf.mxu0
    %v1335 = vadd.f32 0.0, %v1334
    %v1336 = vpop.f32.mrf.mxu0
    %1337 = vdwg.mxu0
    %v1338 = vadd.f32 %v1281, %v1296
    %v1339 = vadd.f32 %v1282, %v1309
    %v1340 = vadd.f32 %v1283, %v1322
    %v1341 = vadd.f32 %v1284, %v1335
    %v1342 = vxor.u32 %v1338, 2147483648
    %v1343 = vxor.u32 %v1339, 2147483648
    %v1344 = vxor.u32 %v1340, 2147483648
    %v1345 = vmul.f32 %v1342, 1.442695
    %v1346 = vpow.pop %v1345
    %v1347 = vmul.f32 %v1343, 1.442695
    %v1348 = vpow.pop %v1347
    %v1349 = vmul.f32 %v1344, 1.442695
    %v1350 = vpow.pop %v1349
    %v1351 = vadd.f32 %v1346, 1.0
    %v1352 = vadd.f32 %v1348, 1.0
    %v1353 = vadd.f32 %v1350, 1.0
    %v1354 = vrcp.pop %v1351
    %v1355 = vmul.f32 %v1351, %v1354
    %v1356 = vsub.f32 1.0, %v1355
    %v1357 = vmul.f32 %v1354, %v1356
    %v1358 = vadd.f32 %v1354, %v1357
    %vm1359 = vweird.f32 %v1351
    %vm1360 = vweird.f32 %v1354
    %vm1361 = vmor %vm1359, %vm1360
    %v1362 = vsel %vm1361, %v1354, %v1358
    %v1363 = vand.u32 2147483647, %v1351
    %vm1364 = vcmp.eq.f32.partialorder %v1363, 8.507059e+37
    %v1365 = vand.u32 %v1351, 2147483648
    %v1366 = vor.u32 1.1754944e-38, %v1365
    %v1367 = vsel %vm1364, %v1366, %v1362
    %v1368 = vmul.f32 1.0, %v1367
    %v1369 = vrcp.pop %v1352
    %v1370 = vmul.f32 %v1352, %v1369
    %v1371 = vsub.f32 1.0, %v1370
    %v1372 = vmul.f32 %v1369, %v1371
    %v1373 = vadd.f32 %v1369, %v1372
    %vm1374 = vweird.f32 %v1352
    %vm1375 = vweird.f32 %v1369
    %vm1376 = vmor %vm1374, %vm1375
    %v1377 = vsel %vm1376, %v1369, %v1373
    %v1378 = vand.u32 2147483647, %v1352
    %vm1379 = vcmp.eq.f32.partialorder %v1378, 8.507059e+37
    %v1380 = vand.u32 %v1352, 2147483648
    %v1381 = vor.u32 1.1754944e-38, %v1380
    %v1382 = vsel %vm1379, %v1381, %v1377
    %v1383 = vmul.f32 1.0, %v1382
    %v1384 = vrcp.pop %v1353
    %v1385 = vmul.f32 %v1353, %v1384
    %v1386 = vsub.f32 1.0, %v1385
    %v1387 = vmul.f32 %v1384, %v1386
    %v1388 = vadd.f32 %v1384, %v1387
    %vm1389 = vweird.f32 %v1353
    %vm1390 = vweird.f32 %v1384
    %vm1391 = vmor %vm1389, %vm1390
    %v1392 = vsel %vm1391, %v1384, %v1388
    %v1393 = vand.u32 2147483647, %v1353
    %vm1394 = vcmp.eq.f32.partialorder %v1393, 8.507059e+37
    %v1395 = vand.u32 %v1353, 2147483648
    %v1396 = vor.u32 1.1754944e-38, %v1395
    %v1397 = vsel %vm1394, %v1396, %v1392
    %v1398 = vmul.f32 1.0, %v1397
    %v1399 = vtanh.pop %v1341
    %v1400 = vmul.f32 %v1383, %v1275
    %v1401 = vmul.f32 %v1368, %v1399
    %v1402 = vadd.f32 %v1400, %v1401
    %v1403 = vtanh.pop %v1402
    %v1404 = vmul.f32 %v1398, %v1403
    %s1405 = smul.u32 6, 4
    %s1406 = smul.addr %s1405, 8
    %s1407 = scalar_lea.vmem [#allocation4], %s1406
    %v1408 = vld [vmem:[%s1407] sm:$0xff]
    %v1409 = vld [vmem:[%s1407 + $0x8] sm:$0xff]
    %v1410 = vld [vmem:[%s1407 + $0x10] sm:$0xff]
    %v1411 = vld [vmem:[%s1407 + $0x18] sm:$0xff]
    %v1412 = vpack.c.bf16 %v1404, %v1404
    %1413 = vmatpush.bf16.msra.mxu0 %v615
    %1414 = vmatpush.bf16.msra.mxu0 %v611
    %1415 = vmatpush.bf16.msra.mxu0 %v607
    %1416 = vmatpush.bf16.msra.mxu0 %v603
    %1417 = vmatpush.bf16.msra.mxu0 %v599
    %1418 = vmatpush.bf16.msra.mxu0 %v595
    %1419 = vmatpush.bf16.msra.mxu0 %v591
    %1420 = vmatpush.bf16.msra.mxu0 %v587
    %1421 = vmatmul.bf16.gmra.mxu0 %v1412
    %v1422 = vpop.f32.mrf.mxu0
    %v1423 = vadd.f32 0.0, %v1422
    %v1424 = vpop.f32.mrf.mxu0
    %1425 = vdwg.mxu0
    %1426 = vmatpush.bf16.msra.mxu0 %v616
    %1427 = vmatpush.bf16.msra.mxu0 %v612
    %1428 = vmatpush.bf16.msra.mxu0 %v608
    %1429 = vmatpush.bf16.msra.mxu0 %v604
    %1430 = vmatpush.bf16.msra.mxu0 %v600
    %1431 = vmatpush.bf16.msra.mxu0 %v596
    %1432 = vmatpush.bf16.msra.mxu0 %v592
    %1433 = vmatpush.bf16.msra.mxu0 %v588
    %1434 = vmatmul.bf16.gmra.mxu0 %v1412
    %v1435 = vpop.f32.mrf.mxu0
    %v1436 = vadd.f32 0.0, %v1435
    %v1437 = vpop.f32.mrf.mxu0
    %1438 = vdwg.mxu0
    %1439 = vmatpush.bf16.msra.mxu0 %v617
    %1440 = vmatpush.bf16.msra.mxu0 %v613
    %1441 = vmatpush.bf16.msra.mxu0 %v609
    %1442 = vmatpush.bf16.msra.mxu0 %v605
    %1443 = vmatpush.bf16.msra.mxu0 %v601
    %1444 = vmatpush.bf16.msra.mxu0 %v597
    %1445 = vmatpush.bf16.msra.mxu0 %v593
    %1446 = vmatpush.bf16.msra.mxu0 %v589
    %1447 = vmatmul.bf16.gmra.mxu0 %v1412
    %v1448 = vpop.f32.mrf.mxu0
    %v1449 = vadd.f32 0.0, %v1448
    %v1450 = vpop.f32.mrf.mxu0
    %1451 = vdwg.mxu0
    %1452 = vmatpush.bf16.msra.mxu0 %v618
    %1453 = vmatpush.bf16.msra.mxu0 %v614
    %1454 = vmatpush.bf16.msra.mxu0 %v610
    %1455 = vmatpush.bf16.msra.mxu0 %v606
    %1456 = vmatpush.bf16.msra.mxu0 %v602
    %1457 = vmatpush.bf16.msra.mxu0 %v598
    %1458 = vmatpush.bf16.msra.mxu0 %v594
    %1459 = vmatpush.bf16.msra.mxu0 %v590
    %1460 = vmatmul.bf16.gmra.mxu0 %v1412
    %v1461 = vpop.f32.mrf.mxu0
    %v1462 = vadd.f32 0.0, %v1461
    %v1463 = vpop.f32.mrf.mxu0
    %1464 = vdwg.mxu0
    %v1465 = vadd.f32 %v1408, %v1423
    %v1466 = vadd.f32 %v1409, %v1436
    %v1467 = vadd.f32 %v1410, %v1449
    %v1468 = vadd.f32 %v1411, %v1462
    %v1469 = vxor.u32 %v1465, 2147483648
    %v1470 = vxor.u32 %v1466, 2147483648
    %v1471 = vxor.u32 %v1467, 2147483648
    %v1472 = vmul.f32 %v1469, 1.442695
    %v1473 = vpow.pop %v1472
    %v1474 = vmul.f32 %v1470, 1.442695
    %v1475 = vpow.pop %v1474
    %v1476 = vmul.f32 %v1471, 1.442695
    %v1477 = vpow.pop %v1476
    %v1478 = vadd.f32 %v1473, 1.0
    %v1479 = vadd.f32 %v1475, 1.0
    %v1480 = vadd.f32 %v1477, 1.0
    %v1481 = vrcp.pop %v1478
    %v1482 = vmul.f32 %v1478, %v1481
    %v1483 = vsub.f32 1.0, %v1482
    %v1484 = vmul.f32 %v1481, %v1483
    %v1485 = vadd.f32 %v1481, %v1484
    %vm1486 = vweird.f32 %v1478
    %vm1487 = vweird.f32 %v1481
    %vm1488 = vmor %vm1486, %vm1487
    %v1489 = vsel %vm1488, %v1481, %v1485
    %v1490 = vand.u32 2147483647, %v1478
    %vm1491 = vcmp.eq.f32.partialorder %v1490, 8.507059e+37
    %v1492 = vand.u32 %v1478, 2147483648
    %v1493 = vor.u32 1.1754944e-38, %v1492
    %v1494 = vsel %vm1491, %v1493, %v1489
    %v1495 = vmul.f32 1.0, %v1494
    %v1496 = vrcp.pop %v1479
    %v1497 = vmul.f32 %v1479, %v1496
    %v1498 = vsub.f32 1.0, %v1497
    %v1499 = vmul.f32 %v1496, %v1498
    %v1500 = vadd.f32 %v1496, %v1499
    %vm1501 = vweird.f32 %v1479
    %vm1502 = vweird.f32 %v1496
    %vm1503 = vmor %vm1501, %vm1502
    %v1504 = vsel %vm1503, %v1496, %v1500
    %v1505 = vand.u32 2147483647, %v1479
    %vm1506 = vcmp.eq.f32.partialorder %v1505, 8.507059e+37
    %v1507 = vand.u32 %v1479, 2147483648
    %v1508 = vor.u32 1.1754944e-38, %v1507
    %v1509 = vsel %vm1506, %v1508, %v1504
    %v1510 = vmul.f32 1.0, %v1509
    %v1511 = vrcp.pop %v1480
    %v1512 = vmul.f32 %v1480, %v1511
    %v1513 = vsub.f32 1.0, %v1512
    %v1514 = vmul.f32 %v1511, %v1513
    %v1515 = vadd.f32 %v1511, %v1514
    %vm1516 = vweird.f32 %v1480
    %vm1517 = vweird.f32 %v1511
    %vm1518 = vmor %vm1516, %vm1517
    %v1519 = vsel %vm1518, %v1511, %v1515
    %v1520 = vand.u32 2147483647, %v1480
    %vm1521 = vcmp.eq.f32.partialorder %v1520, 8.507059e+37
    %v1522 = vand.u32 %v1480, 2147483648
    %v1523 = vor.u32 1.1754944e-38, %v1522
    %v1524 = vsel %vm1521, %v1523, %v1519
    %v1525 = vmul.f32 1.0, %v1524
    %v1526 = vtanh.pop %v1468
    %v1527 = vmul.f32 %v1510, %v1402
    %v1528 = vmul.f32 %v1495, %v1526
    %v1529 = vadd.f32 %v1527, %v1528
    %v1530 = vtanh.pop %v1529
    %v1531 = vmul.f32 %v1525, %v1530
    %s1532 = smul.u32 7, 4
    %s1533 = smul.addr %s1532, 8
    %s1534 = scalar_lea.vmem [#allocation4], %s1533
    %v1535 = vld [vmem:[%s1534] sm:$0xff]
    %v1536 = vld [vmem:[%s1534 + $0x8] sm:$0xff]
    %v1537 = vld [vmem:[%s1534 + $0x10] sm:$0xff]
    %v1538 = vld [vmem:[%s1534 + $0x18] sm:$0xff]
    %v1539 = vpack.c.bf16 %v1531, %v1531
    %1540 = vmatpush.bf16.msra.mxu0 %v615
    %1541 = vmatpush.bf16.msra.mxu0 %v611
    %1542 = vmatpush.bf16.msra.mxu0 %v607
    %1543 = vmatpush.bf16.msra.mxu0 %v603
    %1544 = vmatpush.bf16.msra.mxu0 %v599
    %1545 = vmatpush.bf16.msra.mxu0 %v595
    %1546 = vmatpush.bf16.msra.mxu0 %v591
    %1547 = vmatpush.bf16.msra.mxu0 %v587
    %1548 = vmatmul.bf16.gmra.mxu0 %v1539
    %v1549 = vpop.f32.mrf.mxu0
    %v1550 = vadd.f32 0.0, %v1549
    %v1551 = vpop.f32.mrf.mxu0
    %1552 = vdwg.mxu0
    %1553 = vmatpush.bf16.msra.mxu0 %v616
    %1554 = vmatpush.bf16.msra.mxu0 %v612
    %1555 = vmatpush.bf16.msra.mxu0 %v608
    %1556 = vmatpush.bf16.msra.mxu0 %v604
    %1557 = vmatpush.bf16.msra.mxu0 %v600
    %1558 = vmatpush.bf16.msra.mxu0 %v596
    %1559 = vmatpush.bf16.msra.mxu0 %v592
    %1560 = vmatpush.bf16.msra.mxu0 %v588
    %1561 = vmatmul.bf16.gmra.mxu0 %v1539
    %v1562 = vpop.f32.mrf.mxu0
    %v1563 = vadd.f32 0.0, %v1562
    %v1564 = vpop.f32.mrf.mxu0
    %1565 = vdwg.mxu0
    %1566 = vmatpush.bf16.msra.mxu0 %v617
    %1567 = vmatpush.bf16.msra.mxu0 %v613
    %1568 = vmatpush.bf16.msra.mxu0 %v609
    %1569 = vmatpush.bf16.msra.mxu0 %v605
    %1570 = vmatpush.bf16.msra.mxu0 %v601
    %1571 = vmatpush.bf16.msra.mxu0 %v597
    %1572 = vmatpush.bf16.msra.mxu0 %v593
    %1573 = vmatpush.bf16.msra.mxu0 %v589
    %1574 = vmatmul.bf16.gmra.mxu0 %v1539
    %v1575 = vpop.f32.mrf.mxu0
    %v1576 = vadd.f32 0.0, %v1575
    %v1577 = vpop.f32.mrf.mxu0
    %1578 = vdwg.mxu0
    %1579 = vmatpush.bf16.msra.mxu0 %v618
    %1580 = vmatpush.bf16.msra.mxu0 %v614
    %1581 = vmatpush.bf16.msra.mxu0 %v610
    %1582 = vmatpush.bf16.msra.mxu0 %v606
    %1583 = vmatpush.bf16.msra.mxu0 %v602
    %1584 = vmatpush.bf16.msra.mxu0 %v598
    %1585 = vmatpush.bf16.msra.mxu0 %v594
    %1586 = vmatpush.bf16.msra.mxu0 %v590
    %1587 = vmatmul.bf16.gmra.mxu0 %v1539
    %v1588 = vpop.f32.mrf.mxu0
    %v1589 = vadd.f32 0.0, %v1588
    %v1590 = vpop.f32.mrf.mxu0
    %1591 = vdwg.mxu0
    %v1592 = vadd.f32 %v1535, %v1550
    %v1593 = vadd.f32 %v1536, %v1563
    %v1594 = vadd.f32 %v1537, %v1576
    %v1595 = vadd.f32 %v1538, %v1589
    %v1596 = vxor.u32 %v1592, 2147483648
    %v1597 = vxor.u32 %v1593, 2147483648
    %v1598 = vxor.u32 %v1594, 2147483648
    %v1599 = vmul.f32 %v1596, 1.442695
    %v1600 = vpow.pop %v1599
    %v1601 = vmul.f32 %v1597, 1.442695
    %v1602 = vpow.pop %v1601
    %v1603 = vmul.f32 %v1598, 1.442695
    %v1604 = vpow.pop %v1603
    %v1605 = vadd.f32 %v1600, 1.0
    %v1606 = vadd.f32 %v1602, 1.0
    %v1607 = vadd.f32 %v1604, 1.0
    %v1608 = vrcp.pop %v1605
    %v1609 = vmul.f32 %v1605, %v1608
    %v1610 = vsub.f32 1.0, %v1609
    %v1611 = vmul.f32 %v1608, %v1610
    %v1612 = vadd.f32 %v1608, %v1611
    %vm1613 = vweird.f32 %v1605
    %vm1614 = vweird.f32 %v1608
    %vm1615 = vmor %vm1613, %vm1614
    %v1616 = vsel %vm1615, %v1608, %v1612
    %v1617 = vand.u32 2147483647, %v1605
    %vm1618 = vcmp.eq.f32.partialorder %v1617, 8.507059e+37
    %v1619 = vand.u32 %v1605, 2147483648
    %v1620 = vor.u32 1.1754944e-38, %v1619
    %v1621 = vsel %vm1618, %v1620, %v1616
    %v1622 = vmul.f32 1.0, %v1621
    %v1623 = vrcp.pop %v1606
    %v1624 = vmul.f32 %v1606, %v1623
    %v1625 = vsub.f32 1.0, %v1624
    %v1626 = vmul.f32 %v1623, %v1625
    %v1627 = vadd.f32 %v1623, %v1626
    %vm1628 = vweird.f32 %v1606
    %vm1629 = vweird.f32 %v1623
    %vm1630 = vmor %vm1628, %vm1629
    %v1631 = vsel %vm1630, %v1623, %v1627
    %v1632 = vand.u32 2147483647, %v1606
    %vm1633 = vcmp.eq.f32.partialorder %v1632, 8.507059e+37
    %v1634 = vand.u32 %v1606, 2147483648
    %v1635 = vor.u32 1.1754944e-38, %v1634
    %v1636 = vsel %vm1633, %v1635, %v1631
    %v1637 = vmul.f32 1.0, %v1636
    %v1638 = vrcp.pop %v1607
    %v1639 = vmul.f32 %v1607, %v1638
    %v1640 = vsub.f32 1.0, %v1639
    %v1641 = vmul.f32 %v1638, %v1640
    %v1642 = vadd.f32 %v1638, %v1641
    %vm1643 = vweird.f32 %v1607
    %vm1644 = vweird.f32 %v1638
    %vm1645 = vmor %vm1643, %vm1644
    %v1646 = vsel %vm1645, %v1638, %v1642
    %v1647 = vand.u32 2147483647, %v1607
    %vm1648 = vcmp.eq.f32.partialorder %v1647, 8.507059e+37
    %v1649 = vand.u32 %v1607, 2147483648
    %v1650 = vor.u32 1.1754944e-38, %v1649
    %v1651 = vsel %vm1648, %v1650, %v1646
    %v1652 = vmul.f32 1.0, %v1651
    %v1653 = vtanh.pop %v1595
    %v1654 = vmul.f32 %v1637, %v1529
    %v1655 = vmul.f32 %v1622, %v1653
    %v1656 = vadd.f32 %v1654, %v1655
    %v1657 = vtanh.pop %v1656
    %v1658 = vmul.f32 %v1652, %v1657
    %1659 = vst [vmem:[#allocation2] sm:$0xff] %v1658
    %1660 = vst [vmem:[#allocation3] sm:$0xff] %v1656
    // Predicated region
    $region46: #{lstm_model_forward.3} parent=1 // pred_check
      %p1661 = pneg %p61
    $region47: #{lstm_model_forward.3} parent=1 // pred_check_branch
      %1663 = sbr.rel (%p1661) target = $region49
    $region48: #{lstm_model_forward.3} parent=1 // pred_region
      %v1664 = vld [vmem:[%s4] sm:$0xff]
      %v1665 = vld [vmem:[%s4 + $0x8] sm:$0xff]
      %v1666 = vld [vmem:[%s4 + $0x10] sm:$0xff]
      %v1667 = vld [vmem:[%s4 + $0x18] sm:$0xff]
      %v1668 = vld [vmem:[%s4 + $0x20] sm:$0xff]
      %v1669 = vld [vmem:[%s4 + $0x28] sm:$0xff]
      %v1670 = vld [vmem:[%s4 + $0x30] sm:$0xff]
      %v1671 = vld [vmem:[%s4 + $0x38] sm:$0xff]
      %v1672 = vld [vmem:[%s4 + $0x40] sm:$0xff]
      %v1673 = vld [vmem:[%s4 + $0x48] sm:$0xff]
      %v1674 = vld [vmem:[%s4 + $0x50] sm:$0xff]
      %v1675 = vld [vmem:[%s4 + $0x58] sm:$0xff]
      %v1676 = vld [vmem:[%s4 + $0x60] sm:$0xff]
      %v1677 = vld [vmem:[%s4 + $0x68] sm:$0xff]
      %v1678 = vld [vmem:[%s4 + $0x70] sm:$0xff]
      %v1679 = vld [vmem:[%s4 + $0x78] sm:$0xff]
      %v1680 = vld [vmem:[%s5] sm:$0x1]
      %v1682 = vperm.slane %v1680, 0
      %1684 = vmatpush.msra.mxu0 %v1679
      %1685 = vmatpush.msra.mxu0 %v1678
      %1686 = vmatpush.msra.mxu0 %v1677
      %1687 = vmatpush.msra.mxu0 %v1676
      %1688 = vmatpush.msra.mxu0 %v1675
      %1689 = vmatpush.msra.mxu0 %v1674
      %1690 = vmatpush.msra.mxu0 %v1673
      %1691 = vmatpush.msra.mxu0 %v1672
      %1692 = vmatpush.msra.mxu0 %v1671
      %1693 = vmatpush.msra.mxu0 %v1670
      %1694 = vmatpush.msra.mxu0 %v1669
      %1695 = vmatpush.msra.mxu0 %v1668
      %1696 = vmatpush.msra.mxu0 %v1667
      %1697 = vmatpush.msra.mxu0 %v1666
      %1698 = vmatpush.msra.mxu0 %v1665
      %1699 = vmatpush.msra.mxu0 %v1664
      %1700 = vmatmul.f32.gmra.mxu0 %v1658
      %v1701 = vpop.f32.mrf.mxu0
      %v1702 = vadd.f32 %v1682, %v1701
      %1703 = vdwg.mxu0
      %v1704 = vmax.f32 %v1702, 0.0
      %v1705 = vld [vmem:[%s6] sm:$0xff]
      %v1706 = vld [vmem:[%s6 + $0x8] sm:$0xff]
      %v1707 = vld [vmem:[%s7] sm:$0x1]
      %v1709 = vperm.slane %v1707, 0
      %vm1711 = vcmask 130048
      %v1713 = vsel %vm1711, %v1704, 0
      %1715 = vmatpush.msra.mxu0 0.0
      %1716 = vmatpush.msra.mxu0 0.0
      %1717 = vmatpush.msra.mxu0 0.0
      %1718 = vmatpush.msra.mxu0 0.0
      %1719 = vmatpush.msra.mxu0 0.0
      %1720 = vmatpush.msra.mxu0 0.0
      %1721 = vmatpush.msra.mxu0 0.0
      %1722 = vmatpush.msra.mxu0 0.0
      %1723 = vmatpush.msra.mxu0 0.0
      %1724 = vmatpush.msra.mxu0 0.0
      %1725 = vmatpush.msra.mxu0 0.0
      %1726 = vmatpush.msra.mxu0 0.0
      %1727 = vmatpush.msra.mxu0 0.0
      %1728 = vmatpush.msra.mxu0 0.0
      %1729 = vmatpush.msra.mxu0 %v1706
      %1730 = vmatpush.msra.mxu0 %v1705
      %1731 = vmatmul.f32.gmra.mxu0 %v1713
      %v1732 = vpop.f32.mrf.mxu0
      %v1733 = vadd.f32 %v1709, %v1732
      %1734 = vdwg.mxu0
      %vm1735 = vcmask 31744
      %1736 = vst.msk [vmem:[%s8] sm:$0xff] %vm1735, %v1733
    $region49: #{lstm_model_forward.3} parent=1 // pred_fallthru
      _
    // Predicated region
    $region50: #{lstm_model_forward.3} parent=1 // pred_check
      _
    $region51: #{lstm_model_forward.3} parent=1 // pred_check_branch
      %1738 = sbr.rel (0) target = $region53
    $region52: #{lstm_model_forward.3} parent=1 // pred_region
      _
    $region53: #{lstm_model_forward.3} parent=1 // pred_fallthru
      _
    // Predicated region
    $region54: #{lstm_model_forward.3} parent=1 // pred_check
      _
    $region55: #{lstm_model_forward.3} parent=1 // pred_check_branch
      %1740 = sbr.rel (0) target = $region57
    $region56: #{lstm_model_forward.3} parent=1 // pred_region
      _
    $region57: #{lstm_model_forward.3} parent=1 // pred_fallthru
      _
    %1741 = vsyncpa [#allocation6], 1
    %1742 = vsyncpa [#allocation8], 1

</llo_original>
